<compile_context>
chip_gen: v6e
topology: v6e:2x2x1
jax: 0.10.0
libtpu: 0.0.40
codegen_flags: <defaults>
</compile_context>

<pallas_src>
import functools

import jax
import jax.numpy as jnp
from jax import lax
from jax.experimental import pallas as pl
from jax.experimental.pallas import tpu as pltpu


# ----------------------------- small helpers -------------------------------

def _round_up(n, m):
    return ((n + m - 1) // m) * m


def _layernorm(x, w, b, eps=1e-5):
    mu = jnp.mean(x, axis=-1, keepdims=True)
    d = x - mu
    var = jnp.mean(d * d, axis=-1, keepdims=True)
    return d * lax.rsqrt(var + eps) * w + b


def _gelu(x):
    # tanh-approximate GELU (no erf in-kernel; goes to the EUP slot).
    c = 0.7978845608028654  # sqrt(2/pi)
    return 0.5 * x * (1.0 + jnp.tanh(c * (x + 0.044715 * x * x * x)))


# --------------------------- fused forward kernel ---------------------------

def fused_forward_kernel(num_heads, num_layers, B, S,
                         emb_ref, pos_ref, bmask_ref, hmask_ref, hvalid_ref,
                         ln1w_ref, ln1b_ref,
                         wq_ref, bq_ref, wk_ref, bk_ref, wv_ref, bv_ref,
                         wqp_ref, bqp_ref, wo_ref, wqo_ref, bo_ref,
                         ln2w_ref, ln2b_ref, w1_ref, b1_ref, w2_ref, b2_ref,
                         wa_ref, ba_ref, wb_ref, bb_ref, wc_ref, bc_ref,
                         lnfw_ref, lnfb_ref, wout_ref, bout_ref,
                         logits_ref, hidden_ref):
    H = emb_ref.shape[2]
    BS = B * S
    bf16 = jnp.bfloat16

    # token embeddings (gathered in the wrapper) + position embeddings, flattened
    x = (emb_ref[...] + pos_ref[...][None, :, :]).reshape(BS, H)

    bmask = bmask_ref[...]                                   # (BS, BS) 0 / -1e30
    head_masks = [hmask_ref[n] for n in range(num_heads)]    # each (1, H) 0/1

    for l in range(num_layers):                              # static unroll
        # ---- pre-norm 1 + Q/K/V/quantum projections (bf16 operands, f32 acc) ----
        h = _layernorm(x, ln1w_ref[l], ln1b_ref[l])
        hb = h.astype(bf16)
        # 1/sqrt(head_dim) is pre-folded into wq/bq at init.
        q = jnp.dot(hb, wq_ref[l], preferred_element_type=jnp.float32) + bq_ref[l]
        k = jnp.dot(hb, wk_ref[l], preferred_element_type=jnp.float32) + bk_ref[l]
        v = jnp.dot(hb, wv_ref[l], preferred_element_type=jnp.float32) + bv_ref[l]
        qf = jnp.tanh(jnp.dot(hb, wqp_ref[l],
                              preferred_element_type=jnp.float32) + bqp_ref[l])

        # ---- multi-head attention via lane-masked matmuls (no head relayouts) ----
        # Zeroing the other heads' lanes of Q makes the full-H contraction equal
        # the per-head contraction; cross-batch scores are removed by the
        # additive block-diagonal batch mask.  Everything stays (BS, H)-shaped.
        ctx = jnp.zeros((BS, H), jnp.float32)
        for n in range(num_heads):
            hm = head_masks[n]                               # (1, H)
            s = lax.dot_general(q * hm, k, (((1,), (1,)), ((), ())),
                                preferred_element_type=jnp.float32) + bmask
            s = s - jnp.max(s, axis=-1, keepdims=True)
            p = jnp.exp(s)
            p = p / jnp.sum(p, axis=-1, keepdims=True)       # exact softmax
            ctx = ctx + jnp.dot(p, v * hm, preferred_element_type=jnp.float32)

        # ---- separate attention-out / quantum-out projections (no concat) ----
        attn = (jnp.dot(ctx.astype(bf16), wo_ref[l],
                        preferred_element_type=jnp.float32)
                + jnp.dot(qf.astype(bf16), wqo_ref[l],
                          preferred_element_type=jnp.float32)
                + bo_ref[l])
        x = x + attn                                         # residual 1

        # ---- pre-norm 2 + feed-forward ----
        h2 = _layernorm(x, ln2w_ref[l], ln2b_ref[l])
        ff = _gelu(jnp.dot(h2.astype(bf16), w1_ref[l],
                           preferred_element_type=jnp.float32) + b1_ref[l])
        ff = jnp.dot(ff.astype(bf16), w2_ref[l],
                     preferred_element_type=jnp.float32) + b2_ref[l]
        x = x + ff                                           # residual 2

    # ---- MERA per-token MLP: H -> H/2 -> H/4 -> pad128(H) ----
    m1 = _gelu(jnp.dot(x.astype(bf16), wa_ref[...],
                       preferred_element_type=jnp.float32) + ba_ref[...])
    m2 = _gelu(jnp.dot(m1.astype(bf16), wb_ref[...],
                       preferred_element_type=jnp.float32) + bb_ref[...])
    # wc / bc are zero-padded beyond H, so the pad lanes of mp are exactly 0.
    mp = jnp.dot(m2.astype(bf16), wc_ref[...],
                 preferred_element_type=jnp.float32) + bc_ref[...]   # (BS, Hp)

    # ---- final LayerNorm over the first H lanes of the padded slab ----
    hvalid = hvalid_ref[...]                                 # (1, Hp) 1/0 mask
    mu = jnp.sum(mp, axis=-1, keepdims=True) * (1.0 / H)     # pad lanes are 0
    cen = (mp - mu) * hvalid
    var = jnp.sum(cen * cen, axis=-1, keepdims=True) * (1.0 / H)
    hfin = cen * lax.rsqrt(var + 1e-5) * lnfw_ref[...] + lnfb_ref[...]

    # ---- lane-dense (multiple-of-128) output stores ----
    hidden_ref[...] = hfin                                   # (BS, Hp)
    logits_ref[...] = (jnp.dot(hfin.astype(bf16), wout_ref[...],
                               preferred_element_type=jnp.float32)
                       + bout_ref[...])                      # (BS, Vp)


LAYER_PARAM_ORDER = ("ln1w", "ln1b", "wq", "bq", "wk", "bk", "wv", "bv",
                     "wqp", "bqp", "wo", "wqo", "bo", "ln2w", "ln2b",
                     "w1", "b1", "w2", "b2")
HEAD_PARAM_ORDER = ("wa", "ba", "wb", "bb", "wc", "bc", "lnfw", "lnfb",
                    "wout", "bout")


# ------------------------------ parameters ----------------------------------

def init_params(key, vocab_size, hidden_dim, num_layers, num_heads,
                quantum_dim, max_len):
    H, Qd, L, V = hidden_dim, quantum_dim, num_layers, vocab_size
    hd = H // num_heads
    Hp, Vp = _round_up(H, 128), _round_up(V, 128)
    keys = iter(jax.random.split(key, 24))

    def nrm(shape, scale=0.02):
        return (scale * jax.random.normal(next(keys), shape)).astype(jnp.float32)

    def w16(shape, scale=0.02):
        return nrm(shape, scale).astype(jnp.bfloat16)

    inv_scale = 1.0 / (hd ** 0.5)   # attention scale folded into Wq / bq

    return {
        "tok_emb": nrm((V, H)),
        "pos_emb": nrm((max_len, H)),
        # Per-layer weights stacked along a leading num_layers axis.
        "layers": {
            "ln1w": jnp.ones((L, 1, H), jnp.float32),
            "ln1b": jnp.zeros((L, 1, H), jnp.float32),
            "wq": (nrm((L, H, H)) * inv_scale).astype(jnp.bfloat16),
            "bq": jnp.zeros((L, 1, H), jnp.float32),   # would also carry inv_scale
            "wk": w16((L, H, H)),
            "bk": jnp.zeros((L, 1, H), jnp.float32),
            "wv": w16((L, H, H)),
            "bv": jnp.zeros((L, 1, H), jnp.float32),
            "wqp": w16((L, H, Qd)),
            "bqp": jnp.zeros((L, 1, Qd), jnp.float32),
            "wo": w16((L, H, H)),
            "wqo": w16((L, Qd, H)),
            "bo": jnp.zeros((L, 1, H), jnp.float32),
            "ln2w": jnp.ones((L, 1, H), jnp.float32),
            "ln2b": jnp.zeros((L, 1, H), jnp.float32),
            "w1": w16((L, H, 4 * H)),
            "b1": jnp.zeros((L, 1, 4 * H), jnp.float32),
            "w2": w16((L, 4 * H, H)),
            "b2": jnp.zeros((L, 1, H), jnp.float32),
        },
        # Final MERA / LayerNorm / vocab-projection params are zero-padded to a
        # 128-lane-dense layout so the kernel's output stores are unmasked.
        "head": {
            "wa": w16((H, H // 2)),
            "ba": jnp.zeros((1, H // 2), jnp.float32),
            "wb": w16((H // 2, H // 4)),
            "bb": jnp.zeros((1, H // 4), jnp.float32),
            "wc": jnp.zeros((H // 4, Hp), jnp.bfloat16).at[:, :H].set(w16((H // 4, H))),
            "bc": jnp.zeros((1, Hp), jnp.float32),
            "lnfw": jnp.zeros((1, Hp), jnp.float32).at[:, :H].set(1.0),
            "lnfb": jnp.zeros((1, Hp), jnp.float32),
            "wout": jnp.zeros((Hp, Vp), jnp.bfloat16).at[:H, :V].set(w16((H, V))),
            "bout": jnp.zeros((1, Vp), jnp.float32),
        },
    }


# ------------------------------- forward ------------------------------------

def _attention_masks(B, S, H, num_heads):
    """Constant masks (trace-time): block-diagonal batch mask + per-head lane masks."""
    BS = B * S
    hd = H // num_heads
    batch_idx = jnp.arange(BS, dtype=jnp.int32) // S
    bmask = jnp.where(batch_idx[:, None] == batch_idx[None, :],
                      0.0, -1e30).astype(jnp.float32)                  # (BS, BS)
    lane = jnp.arange(H, dtype=jnp.int32)
    hmask = ((lane[None, :] // hd)[None, :, :] ==
             jnp.arange(num_heads, dtype=jnp.int32)[:, None, None]
             ).astype(jnp.float32)                                     # (nh, 1, H)
    return bmask, hmask


def forward(params, input_ids, num_heads, num_layers):
    B, S = input_ids.shape
    tok_emb = params["tok_emb"]
    V, H = tok_emb.shape
    Hp = params["head"]["lnfw"].shape[1]
    Vp = params["head"]["wout"].shape[1]
    BS = B * S

    # embedding gather (tiny glue op in plain JAX); pos-add is fused in-kernel
    emb = jnp.take(tok_emb, input_ids.reshape(-1), axis=0).reshape(B, S, H)
    pos = params["pos_emb"][:S]
    bmask, hmask = _attention_masks(B, S, H, num_heads)
    hvalid = (jnp.arange(Hp) < H).astype(jnp.float32)[None, :]

    lp, hp = params["layers"], params["head"]
    args = ([emb, pos, bmask, hmask, hvalid]
            + [lp[k] for k in LAYER_PARAM_ORDER]
            + [hp[k] for k in HEAD_PARAM_ORDER])

    kernel = functools.partial(fused_forward_kernel, num_heads, num_layers, B, S)
    logits_pad, hidden_pad = pl.pallas_call(
        kernel,
        out_shape=(jax.ShapeDtypeStruct((BS, Vp), jnp.float32),
                   jax.ShapeDtypeStruct((BS, Hp), jnp.float32)),
        in_specs=[pl.BlockSpec(memory_space=pltpu.MemorySpace.VMEM)] * len(args),
        out_specs=(pl.BlockSpec(memory_space=pltpu.MemorySpace.VMEM),
                   pl.BlockSpec(memory_space=pltpu.MemorySpace.VMEM)),
    )(*args)

    logits = logits_pad[:, :V].reshape(B, S, V)
    hidden = hidden_pad[:, :H].reshape(B, S, H)
    return {"logits": logits, "last_hidden_state": hidden}


# -------------------------------- main ---------------------------------------

if __name__ == "__main__":
    vocab_size = 64
    hidden_dim = 32
    num_layers = 2
    num_heads = 4
    quantum_dim = 16
    max_seq_len = 64
    B, S = 2, 8

    key = jax.random.PRNGKey(0)
    pkey, ikey = jax.random.split(key)
    params = init_params(pkey, vocab_size, hidden_dim, num_layers, num_heads,
                         quantum_dim, max_seq_len)
    input_ids = jax.random.randint(ikey, (B, S), 0, vocab_size, dtype=jnp.int32)

    fwd = jax.jit(functools.partial(forward, num_heads=num_heads,
                                    num_layers=num_layers))
    out = fwd(params, input_ids)
    jax.block_until_ready(out["logits"])
    jax.block_until_ready(out["last_hidden_state"])

    assert out["logits"].shape == (B, S, vocab_size)
    assert out["last_hidden_state"].shape == (B, S, hidden_dim)
    assert bool(jnp.all(jnp.isfinite(out["logits"])))
    assert bool(jnp.all(jnp.isfinite(out["last_hidden_state"])))
    print("KERNEL_OK")
</pallas_src>

<mosaic_0001>
module attributes {stable_mosaic.version = 11 : i64} {
  func.func @fused_forward_kernel(%arg0: memref<2x8x32xf32, #tpu.memory_space<vmem>>, %arg1: memref<8x32xf32, #tpu.memory_space<vmem>>, %arg2: memref<16x16xf32, #tpu.memory_space<vmem>>, %arg3: memref<4x1x32xf32, #tpu.memory_space<vmem>>, %arg4: memref<1x128xf32, #tpu.memory_space<vmem>>, %arg5: memref<2x1x32xf32, #tpu.memory_space<vmem>>, %arg6: memref<2x1x32xf32, #tpu.memory_space<vmem>>, %arg7: memref<2x32x32xbf16, #tpu.memory_space<vmem>>, %arg8: memref<2x1x32xf32, #tpu.memory_space<vmem>>, %arg9: memref<2x32x32xbf16, #tpu.memory_space<vmem>>, %arg10: memref<2x1x32xf32, #tpu.memory_space<vmem>>, %arg11: memref<2x32x32xbf16, #tpu.memory_space<vmem>>, %arg12: memref<2x1x32xf32, #tpu.memory_space<vmem>>, %arg13: memref<2x32x16xbf16, #tpu.memory_space<vmem>>, %arg14: memref<2x1x16xf32, #tpu.memory_space<vmem>>, %arg15: memref<2x32x32xbf16, #tpu.memory_space<vmem>>, %arg16: memref<2x16x32xbf16, #tpu.memory_space<vmem>>, %arg17: memref<2x1x32xf32, #tpu.memory_space<vmem>>, %arg18: memref<2x1x32xf32, #tpu.memory_space<vmem>>, %arg19: memref<2x1x32xf32, #tpu.memory_space<vmem>>, %arg20: memref<2x32x128xbf16, #tpu.memory_space<vmem>>, %arg21: memref<2x1x128xf32, #tpu.memory_space<vmem>>, %arg22: memref<2x128x32xbf16, #tpu.memory_space<vmem>>, %arg23: memref<2x1x32xf32, #tpu.memory_space<vmem>>, %arg24: memref<32x16xbf16, #tpu.memory_space<vmem>>, %arg25: memref<1x16xf32, #tpu.memory_space<vmem>>, %arg26: memref<16x8xbf16, #tpu.memory_space<vmem>>, %arg27: memref<1x8xf32, #tpu.memory_space<vmem>>, %arg28: memref<8x128xbf16, #tpu.memory_space<vmem>>, %arg29: memref<1x128xf32, #tpu.memory_space<vmem>>, %arg30: memref<1x128xf32, #tpu.memory_space<vmem>>, %arg31: memref<1x128xf32, #tpu.memory_space<vmem>>, %arg32: memref<128x128xbf16, #tpu.memory_space<vmem>>, %arg33: memref<1x128xf32, #tpu.memory_space<vmem>>, %arg34: memref<16x128xf32, #tpu.memory_space<vmem>>, %arg35: memref<16x128xf32, #tpu.memory_space<vmem>>) attributes {dimension_semantics = [], scalar_prefetch = 0 : i64, scratch_operands = 0 : i64, tpu.core_type = #tpu.core_type<tc>} {
    %c0 = arith.constant 0 : index
    %c0_0 = arith.constant 0 : index
    %c0_1 = arith.constant 0 : index
    %0 = vector.load %arg0[%c0, %c0_0, %c0_1] : memref<2x8x32xf32, #tpu.memory_space<vmem>>, vector<2x8x32xf32>
    %c0_2 = arith.constant 0 : index
    %c0_3 = arith.constant 0 : index
    %1 = vector.load %arg1[%c0_2, %c0_3] : memref<8x32xf32, #tpu.memory_space<vmem>>, vector<8x32xf32>
    %2 = vector.shape_cast %1 : vector<8x32xf32> to vector<1x8x32xf32>
    %3 = vector.broadcast %2 : vector<1x8x32xf32> to vector<2x8x32xf32>
    %4 = arith.addf %0, %3 : vector<2x8x32xf32>
    %5 = vector.shape_cast %4 : vector<2x8x32xf32> to vector<16x32xf32>
    %c0_4 = arith.constant 0 : index
    %c0_5 = arith.constant 0 : index
    %6 = vector.load %arg2[%c0_4, %c0_5] : memref<16x16xf32, #tpu.memory_space<vmem>>, vector<16x16xf32>
    %c0_6 = arith.constant 0 : index
    %c0_7 = arith.constant 0 : index
    %c0_8 = arith.constant 0 : index
    %7 = vector.load %arg3[%c0_6, %c0_7, %c0_8] : memref<4x1x32xf32, #tpu.memory_space<vmem>>, vector<1x1x32xf32>
    %8 = vector.shape_cast %7 : vector<1x1x32xf32> to vector<1x32xf32>
    %c1 = arith.constant 1 : index
    %c0_9 = arith.constant 0 : index
    %c0_10 = arith.constant 0 : index
    %9 = vector.load %arg3[%c1, %c0_9, %c0_10] : memref<4x1x32xf32, #tpu.memory_space<vmem>>, vector<1x1x32xf32>
    %10 = vector.shape_cast %9 : vector<1x1x32xf32> to vector<1x32xf32>
    %c2 = arith.constant 2 : index
    %c0_11 = arith.constant 0 : index
    %c0_12 = arith.constant 0 : index
    %11 = vector.load %arg3[%c2, %c0_11, %c0_12] : memref<4x1x32xf32, #tpu.memory_space<vmem>>, vector<1x1x32xf32>
    %12 = vector.shape_cast %11 : vector<1x1x32xf32> to vector<1x32xf32>
    %c3 = arith.constant 3 : index
    %c0_13 = arith.constant 0 : index
    %c0_14 = arith.constant 0 : index
    %13 = vector.load %arg3[%c3, %c0_13, %c0_14] : memref<4x1x32xf32, #tpu.memory_space<vmem>>, vector<1x1x32xf32>
    %14 = vector.shape_cast %13 : vector<1x1x32xf32> to vector<1x32xf32>
    %c0_15 = arith.constant 0 : index
    %c0_16 = arith.constant 0 : index
    %c0_17 = arith.constant 0 : index
    %15 = vector.load %arg5[%c0_15, %c0_16, %c0_17] : memref<2x1x32xf32, #tpu.memory_space<vmem>>, vector<1x1x32xf32>
    %16 = vector.shape_cast %15 : vector<1x1x32xf32> to vector<1x32xf32>
    %c0_18 = arith.constant 0 : index
    %c0_19 = arith.constant 0 : index
    %c0_20 = arith.constant 0 : index
    %17 = vector.load %arg6[%c0_18, %c0_19, %c0_20] : memref<2x1x32xf32, #tpu.memory_space<vmem>>, vector<1x1x32xf32>
    %18 = vector.shape_cast %17 : vector<1x1x32xf32> to vector<1x32xf32>
    %cst = arith.constant dense<0.000000e+00> : vector<16xf32>
    %19 = vector.multi_reduction <add>, %5, %cst [1] : vector<16x32xf32> to vector<16xf32>
    %20 = vector.shape_cast %19 : vector<16xf32> to vector<16x1xf32>
    %cst_21 = arith.constant 3.200000e+01 : f32
    %21 = vector.broadcast %cst_21 : f32 to vector<16x1xf32>
    %22 = arith.divf %20, %21 : vector<16x1xf32>
    %23 = vector.broadcast %22 : vector<16x1xf32> to vector<16x32xf32>
    %24 = arith.subf %5, %23 : vector<16x32xf32>
    %25 = arith.mulf %24, %24 : vector<16x32xf32>
    %cst_22 = arith.constant dense<0.000000e+00> : vector<16xf32>
    %26 = vector.multi_reduction <add>, %25, %cst_22 [1] : vector<16x32xf32> to vector<16xf32>
    %27 = vector.shape_cast %26 : vector<16xf32> to vector<16x1xf32>
    %cst_23 = arith.constant 3.200000e+01 : f32
    %28 = vector.broadcast %cst_23 : f32 to vector<16x1xf32>
    %29 = arith.divf %27, %28 : vector<16x1xf32>
    %cst_24 = arith.constant 9.99999974E-6 : f32
    %30 = vector.broadcast %cst_24 : f32 to vector<16x1xf32>
    %31 = arith.addf %29, %30 : vector<16x1xf32>
    %32 = math.rsqrt %31 : vector<16x1xf32>
    %33 = vector.broadcast %32 : vector<16x1xf32> to vector<16x32xf32>
    %34 = arith.mulf %24, %33 : vector<16x32xf32>
    %35 = vector.broadcast %16 : vector<1x32xf32> to vector<16x32xf32>
    %36 = arith.mulf %34, %35 : vector<16x32xf32>
    %37 = vector.broadcast %18 : vector<1x32xf32> to vector<16x32xf32>
    %38 = arith.addf %36, %37 : vector<16x32xf32>
    %39 = arith.truncf %38 : vector<16x32xf32> to vector<16x32xbf16>
    %c0_25 = arith.constant 0 : index
    %c0_26 = arith.constant 0 : index
    %c0_27 = arith.constant 0 : index
    %40 = vector.load %arg7[%c0_25, %c0_26, %c0_27] : memref<2x32x32xbf16, #tpu.memory_space<vmem>>, vector<1x32x32xbf16>
    %41 = vector.shape_cast %40 : vector<1x32x32xbf16> to vector<32x32xbf16>
    %cst_28 = arith.constant dense<0.000000e+00> : vector<16x32xf32>
    %42 = tpu.matmul %39, %41, %cst_28 {dimension_numbers = #tpu.dot_dimension_numbers<[1], [0], [0], [1], [0, 0, 1, 1], [], []>} : vector<16x32xbf16>, vector<32x32xbf16>, vector<16x32xf32> -> vector<16x32xf32>
    %c0_29 = arith.constant 0 : index
    %c0_30 = arith.constant 0 : index
    %c0_31 = arith.constant 0 : index
    %43 = vector.load %arg8[%c0_29, %c0_30, %c0_31] : memref<2x1x32xf32, #tpu.memory_space<vmem>>, vector<1x1x32xf32>
    %44 = vector.shape_cast %43 : vector<1x1x32xf32> to vector<1x32xf32>
    %45 = vector.broadcast %44 : vector<1x32xf32> to vector<16x32xf32>
    %46 = arith.addf %42, %45 : vector<16x32xf32>
    %c0_32 = arith.constant 0 : index
    %c0_33 = arith.constant 0 : index
    %c0_34 = arith.constant 0 : index
    %47 = vector.load %arg9[%c0_32, %c0_33, %c0_34] : memref<2x32x32xbf16, #tpu.memory_space<vmem>>, vector<1x32x32xbf16>
    %48 = vector.shape_cast %47 : vector<1x32x32xbf16> to vector<32x32xbf16>
    %cst_35 = arith.constant dense<0.000000e+00> : vector<16x32xf32>
    %49 = tpu.matmul %39, %48, %cst_35 {dimension_numbers = #tpu.dot_dimension_numbers<[1], [0], [0], [1], [0, 0, 1, 1], [], []>} : vector<16x32xbf16>, vector<32x32xbf16>, vector<16x32xf32> -> vector<16x32xf32>
    %c0_36 = arith.constant 0 : index
    %c0_37 = arith.constant 0 : index
    %c0_38 = arith.constant 0 : index
    %50 = vector.load %arg10[%c0_36, %c0_37, %c0_38] : memref<2x1x32xf32, #tpu.memory_space<vmem>>, vector<1x1x32xf32>
    %51 = vector.shape_cast %50 : vector<1x1x32xf32> to vector<1x32xf32>
    %52 = vector.broadcast %51 : vector<1x32xf32> to vector<16x32xf32>
    %53 = arith.addf %49, %52 : vector<16x32xf32>
    %c0_39 = arith.constant 0 : index
    %c0_40 = arith.constant 0 : index
    %c0_41 = arith.constant 0 : index
    %54 = vector.load %arg11[%c0_39, %c0_40, %c0_41] : memref<2x32x32xbf16, #tpu.memory_space<vmem>>, vector<1x32x32xbf16>
    %55 = vector.shape_cast %54 : vector<1x32x32xbf16> to vector<32x32xbf16>
    %cst_42 = arith.constant dense<0.000000e+00> : vector<16x32xf32>
    %56 = tpu.matmul %39, %55, %cst_42 {dimension_numbers = #tpu.dot_dimension_numbers<[1], [0], [0], [1], [0, 0, 1, 1], [], []>} : vector<16x32xbf16>, vector<32x32xbf16>, vector<16x32xf32> -> vector<16x32xf32>
    %c0_43 = arith.constant 0 : index
    %c0_44 = arith.constant 0 : index
    %c0_45 = arith.constant 0 : index
    %57 = vector.load %arg12[%c0_43, %c0_44, %c0_45] : memref<2x1x32xf32, #tpu.memory_space<vmem>>, vector<1x1x32xf32>
    %58 = vector.shape_cast %57 : vector<1x1x32xf32> to vector<1x32xf32>
    %59 = vector.broadcast %58 : vector<1x32xf32> to vector<16x32xf32>
    %60 = arith.addf %56, %59 : vector<16x32xf32>
    %c0_46 = arith.constant 0 : index
    %c0_47 = arith.constant 0 : index
    %c0_48 = arith.constant 0 : index
    %61 = vector.load %arg13[%c0_46, %c0_47, %c0_48] : memref<2x32x16xbf16, #tpu.memory_space<vmem>>, vector<1x32x16xbf16>
    %62 = vector.shape_cast %61 : vector<1x32x16xbf16> to vector<32x16xbf16>
    %cst_49 = arith.constant dense<0.000000e+00> : vector<16x16xf32>
    %63 = tpu.matmul %39, %62, %cst_49 {dimension_numbers = #tpu.dot_dimension_numbers<[1], [0], [0], [1], [0, 0, 1, 1], [], []>} : vector<16x32xbf16>, vector<32x16xbf16>, vector<16x16xf32> -> vector<16x16xf32>
    %c0_50 = arith.constant 0 : index
    %c0_51 = arith.constant 0 : index
    %c0_52 = arith.constant 0 : index
    %64 = vector.load %arg14[%c0_50, %c0_51, %c0_52] : memref<2x1x16xf32, #tpu.memory_space<vmem>>, vector<1x1x16xf32>
    %65 = vector.shape_cast %64 : vector<1x1x16xf32> to vector<1x16xf32>
    %66 = vector.broadcast %65 : vector<1x16xf32> to vector<16x16xf32>
    %67 = arith.addf %63, %66 : vector<16x16xf32>
    %68 = math.tanh %67 : vector<16x16xf32>
    %cst_53 = arith.constant 0.000000e+00 : f32
    %69 = vector.broadcast %cst_53 : f32 to vector<16x32xf32>
    %70 = vector.broadcast %8 : vector<1x32xf32> to vector<16x32xf32>
    %71 = arith.mulf %46, %70 : vector<16x32xf32>
    %cst_54 = arith.constant dense<0.000000e+00> : vector<16x16xf32>
    %72 = tpu.matmul %71, %53, %cst_54 {dimension_numbers = #tpu.dot_dimension_numbers<[1], [1], [0], [0], [0, 0, 1, 0], [], []>} : vector<16x32xf32>, vector<16x32xf32>, vector<16x16xf32> -> vector<16x16xf32>
    %73 = arith.addf %72, %6 : vector<16x16xf32>
    %cst_55 = arith.constant dense<0xFF800000> : vector<16xf32>
    %74 = vector.multi_reduction <maximumf>, %73, %cst_55 [1] : vector<16x16xf32> to vector<16xf32>
    %75 = vector.shape_cast %74 : vector<16xf32> to vector<16x1xf32>
    %76 = vector.broadcast %75 : vector<16x1xf32> to vector<16x16xf32>
    %77 = arith.subf %73, %76 : vector<16x16xf32>
    %78 = math.exp %77 : vector<16x16xf32>
    %cst_56 = arith.constant dense<0.000000e+00> : vector<16xf32>
    %79 = vector.multi_reduction <add>, %78, %cst_56 [1] : vector<16x16xf32> to vector<16xf32>
    %80 = vector.shape_cast %79 : vector<16xf32> to vector<16x1xf32>
    %81 = vector.broadcast %80 : vector<16x1xf32> to vector<16x16xf32>
    %82 = arith.divf %78, %81 : vector<16x16xf32>
    %83 = vector.broadcast %8 : vector<1x32xf32> to vector<16x32xf32>
    %84 = arith.mulf %60, %83 : vector<16x32xf32>
    %cst_57 = arith.constant dense<0.000000e+00> : vector<16x32xf32>
    %85 = tpu.matmul %82, %84, %cst_57 {dimension_numbers = #tpu.dot_dimension_numbers<[1], [0], [0], [1], [0, 0, 1, 1], [], []>} : vector<16x16xf32>, vector<16x32xf32>, vector<16x32xf32> -> vector<16x32xf32>
    %86 = arith.addf %69, %85 : vector<16x32xf32>
    %87 = vector.broadcast %10 : vector<1x32xf32> to vector<16x32xf32>
    %88 = arith.mulf %46, %87 : vector<16x32xf32>
    %cst_58 = arith.constant dense<0.000000e+00> : vector<16x16xf32>
    %89 = tpu.matmul %88, %53, %cst_58 {dimension_numbers = #tpu.dot_dimension_numbers<[1], [1], [0], [0], [0, 0, 1, 0], [], []>} : vector<16x32xf32>, vector<16x32xf32>, vector<16x16xf32> -> vector<16x16xf32>
    %90 = arith.addf %89, %6 : vector<16x16xf32>
    %cst_59 = arith.constant dense<0xFF800000> : vector<16xf32>
    %91 = vector.multi_reduction <maximumf>, %90, %cst_59 [1] : vector<16x16xf32> to vector<16xf32>
    %92 = vector.shape_cast %91 : vector<16xf32> to vector<16x1xf32>
    %93 = vector.broadcast %92 : vector<16x1xf32> to vector<16x16xf32>
    %94 = arith.subf %90, %93 : vector<16x16xf32>
    %95 = math.exp %94 : vector<16x16xf32>
    %cst_60 = arith.constant dense<0.000000e+00> : vector<16xf32>
    %96 = vector.multi_reduction <add>, %95, %cst_60 [1] : vector<16x16xf32> to vector<16xf32>
    %97 = vector.shape_cast %96 : vector<16xf32> to vector<16x1xf32>
    %98 = vector.broadcast %97 : vector<16x1xf32> to vector<16x16xf32>
    %99 = arith.divf %95, %98 : vector<16x16xf32>
    %100 = vector.broadcast %10 : vector<1x32xf32> to vector<16x32xf32>
    %101 = arith.mulf %60, %100 : vector<16x32xf32>
    %cst_61 = arith.constant dense<0.000000e+00> : vector<16x32xf32>
    %102 = tpu.matmul %99, %101, %cst_61 {dimension_numbers = #tpu.dot_dimension_numbers<[1], [0], [0], [1], [0, 0, 1, 1], [], []>} : vector<16x16xf32>, vector<16x32xf32>, vector<16x32xf32> -> vector<16x32xf32>
    %103 = arith.addf %86, %102 : vector<16x32xf32>
    %104 = vector.broadcast %12 : vector<1x32xf32> to vector<16x32xf32>
    %105 = arith.mulf %46, %104 : vector<16x32xf32>
    %cst_62 = arith.constant dense<0.000000e+00> : vector<16x16xf32>
    %106 = tpu.matmul %105, %53, %cst_62 {dimension_numbers = #tpu.dot_dimension_numbers<[1], [1], [0], [0], [0, 0, 1, 0], [], []>} : vector<16x32xf32>, vector<16x32xf32>, vector<16x16xf32> -> vector<16x16xf32>
    %107 = arith.addf %106, %6 : vector<16x16xf32>
    %cst_63 = arith.constant dense<0xFF800000> : vector<16xf32>
    %108 = vector.multi_reduction <maximumf>, %107, %cst_63 [1] : vector<16x16xf32> to vector<16xf32>
    %109 = vector.shape_cast %108 : vector<16xf32> to vector<16x1xf32>
    %110 = vector.broadcast %109 : vector<16x1xf32> to vector<16x16xf32>
    %111 = arith.subf %107, %110 : vector<16x16xf32>
    %112 = math.exp %111 : vector<16x16xf32>
    %cst_64 = arith.constant dense<0.000000e+00> : vector<16xf32>
    %113 = vector.multi_reduction <add>, %112, %cst_64 [1] : vector<16x16xf32> to vector<16xf32>
    %114 = vector.shape_cast %113 : vector<16xf32> to vector<16x1xf32>
    %115 = vector.broadcast %114 : vector<16x1xf32> to vector<16x16xf32>
    %116 = arith.divf %112, %115 : vector<16x16xf32>
    %117 = vector.broadcast %12 : vector<1x32xf32> to vector<16x32xf32>
    %118 = arith.mulf %60, %117 : vector<16x32xf32>
    %cst_65 = arith.constant dense<0.000000e+00> : vector<16x32xf32>
    %119 = tpu.matmul %116, %118, %cst_65 {dimension_numbers = #tpu.dot_dimension_numbers<[1], [0], [0], [1], [0, 0, 1, 1], [], []>} : vector<16x16xf32>, vector<16x32xf32>, vector<16x32xf32> -> vector<16x32xf32>
    %120 = arith.addf %103, %119 : vector<16x32xf32>
    %121 = vector.broadcast %14 : vector<1x32xf32> to vector<16x32xf32>
    %122 = arith.mulf %46, %121 : vector<16x32xf32>
    %cst_66 = arith.constant dense<0.000000e+00> : vector<16x16xf32>
    %123 = tpu.matmul %122, %53, %cst_66 {dimension_numbers = #tpu.dot_dimension_numbers<[1], [1], [0], [0], [0, 0, 1, 0], [], []>} : vector<16x32xf32>, vector<16x32xf32>, vector<16x16xf32> -> vector<16x16xf32>
    %124 = arith.addf %123, %6 : vector<16x16xf32>
    %cst_67 = arith.constant dense<0xFF800000> : vector<16xf32>
    %125 = vector.multi_reduction <maximumf>, %124, %cst_67 [1] : vector<16x16xf32> to vector<16xf32>
    %126 = vector.shape_cast %125 : vector<16xf32> to vector<16x1xf32>
    %127 = vector.broadcast %126 : vector<16x1xf32> to vector<16x16xf32>
    %128 = arith.subf %124, %127 : vector<16x16xf32>
    %129 = math.exp %128 : vector<16x16xf32>
    %cst_68 = arith.constant dense<0.000000e+00> : vector<16xf32>
    %130 = vector.multi_reduction <add>, %129, %cst_68 [1] : vector<16x16xf32> to vector<16xf32>
    %131 = vector.shape_cast %130 : vector<16xf32> to vector<16x1xf32>
    %132 = vector.broadcast %131 : vector<16x1xf32> to vector<16x16xf32>
    %133 = arith.divf %129, %132 : vector<16x16xf32>
    %134 = vector.broadcast %14 : vector<1x32xf32> to vector<16x32xf32>
    %135 = arith.mulf %60, %134 : vector<16x32xf32>
    %cst_69 = arith.constant dense<0.000000e+00> : vector<16x32xf32>
    %136 = tpu.matmul %133, %135, %cst_69 {dimension_numbers = #tpu.dot_dimension_numbers<[1], [0], [0], [1], [0, 0, 1, 1], [], []>} : vector<16x16xf32>, vector<16x32xf32>, vector<16x32xf32> -> vector<16x32xf32>
    %137 = arith.addf %120, %136 : vector<16x32xf32>
    %138 = arith.truncf %137 : vector<16x32xf32> to vector<16x32xbf16>
    %c0_70 = arith.constant 0 : index
    %c0_71 = arith.constant 0 : index
    %c0_72 = arith.constant 0 : index
    %139 = vector.load %arg15[%c0_70, %c0_71, %c0_72] : memref<2x32x32xbf16, #tpu.memory_space<vmem>>, vector<1x32x32xbf16>
    %140 = vector.shape_cast %139 : vector<1x32x32xbf16> to vector<32x32xbf16>
    %cst_73 = arith.constant dense<0.000000e+00> : vector<16x32xf32>
    %141 = tpu.matmul %138, %140, %cst_73 {dimension_numbers = #tpu.dot_dimension_numbers<[1], [0], [0], [1], [0, 0, 1, 1], [], []>} : vector<16x32xbf16>, vector<32x32xbf16>, vector<16x32xf32> -> vector<16x32xf32>
    %142 = arith.truncf %68 : vector<16x16xf32> to vector<16x16xbf16>
    %c0_74 = arith.constant 0 : index
    %c0_75 = arith.constant 0 : index
    %c0_76 = arith.constant 0 : index
    %143 = vector.load %arg16[%c0_74, %c0_75, %c0_76] : memref<2x16x32xbf16, #tpu.memory_space<vmem>>, vector<1x16x32xbf16>
    %144 = vector.shape_cast %143 : vector<1x16x32xbf16> to vector<16x32xbf16>
    %cst_77 = arith.constant dense<0.000000e+00> : vector<16x32xf32>
    %145 = tpu.matmul %142, %144, %cst_77 {dimension_numbers = #tpu.dot_dimension_numbers<[1], [0], [0], [1], [0, 0, 1, 1], [], []>} : vector<16x16xbf16>, vector<16x32xbf16>, vector<16x32xf32> -> vector<16x32xf32>
    %146 = arith.addf %141, %145 : vector<16x32xf32>
    %c0_78 = arith.constant 0 : index
    %c0_79 = arith.constant 0 : index
    %c0_80 = arith.constant 0 : index
    %147 = vector.load %arg17[%c0_78, %c0_79, %c0_80] : memref<2x1x32xf32, #tpu.memory_space<vmem>>, vector<1x1x32xf32>
    %148 = vector.shape_cast %147 : vector<1x1x32xf32> to vector<1x32xf32>
    %149 = vector.broadcast %148 : vector<1x32xf32> to vector<16x32xf32>
    %150 = arith.addf %146, %149 : vector<16x32xf32>
    %151 = arith.addf %5, %150 : vector<16x32xf32>
    %c0_81 = arith.constant 0 : index
    %c0_82 = arith.constant 0 : index
    %c0_83 = arith.constant 0 : index
    %152 = vector.load %arg18[%c0_81, %c0_82, %c0_83] : memref<2x1x32xf32, #tpu.memory_space<vmem>>, vector<1x1x32xf32>
    %153 = vector.shape_cast %152 : vector<1x1x32xf32> to vector<1x32xf32>
    %c0_84 = arith.constant 0 : index
    %c0_85 = arith.constant 0 : index
    %c0_86 = arith.constant 0 : index
    %154 = vector.load %arg19[%c0_84, %c0_85, %c0_86] : memref<2x1x32xf32, #tpu.memory_space<vmem>>, vector<1x1x32xf32>
    %155 = vector.shape_cast %154 : vector<1x1x32xf32> to vector<1x32xf32>
    %cst_87 = arith.constant dense<0.000000e+00> : vector<16xf32>
    %156 = vector.multi_reduction <add>, %151, %cst_87 [1] : vector<16x32xf32> to vector<16xf32>
    %157 = vector.shape_cast %156 : vector<16xf32> to vector<16x1xf32>
    %cst_88 = arith.constant 3.200000e+01 : f32
    %158 = vector.broadcast %cst_88 : f32 to vector<16x1xf32>
    %159 = arith.divf %157, %158 : vector<16x1xf32>
    %160 = vector.broadcast %159 : vector<16x1xf32> to vector<16x32xf32>
    %161 = arith.subf %151, %160 : vector<16x32xf32>
    %162 = arith.mulf %161, %161 : vector<16x32xf32>
    %cst_89 = arith.constant dense<0.000000e+00> : vector<16xf32>
    %163 = vector.multi_reduction <add>, %162, %cst_89 [1] : vector<16x32xf32> to vector<16xf32>
    %164 = vector.shape_cast %163 : vector<16xf32> to vector<16x1xf32>
    %cst_90 = arith.constant 3.200000e+01 : f32
    %165 = vector.broadcast %cst_90 : f32 to vector<16x1xf32>
    %166 = arith.divf %164, %165 : vector<16x1xf32>
    %cst_91 = arith.constant 9.99999974E-6 : f32
    %167 = vector.broadcast %cst_91 : f32 to vector<16x1xf32>
    %168 = arith.addf %166, %167 : vector<16x1xf32>
    %169 = math.rsqrt %168 : vector<16x1xf32>
    %170 = vector.broadcast %169 : vector<16x1xf32> to vector<16x32xf32>
    %171 = arith.mulf %161, %170 : vector<16x32xf32>
    %172 = vector.broadcast %153 : vector<1x32xf32> to vector<16x32xf32>
    %173 = arith.mulf %171, %172 : vector<16x32xf32>
    %174 = vector.broadcast %155 : vector<1x32xf32> to vector<16x32xf32>
    %175 = arith.addf %173, %174 : vector<16x32xf32>
    %176 = arith.truncf %175 : vector<16x32xf32> to vector<16x32xbf16>
    %c0_92 = arith.constant 0 : index
    %c0_93 = arith.constant 0 : index
    %c0_94 = arith.constant 0 : index
    %177 = vector.load %arg20[%c0_92, %c0_93, %c0_94] : memref<2x32x128xbf16, #tpu.memory_space<vmem>>, vector<1x32x128xbf16>
    %178 = vector.shape_cast %177 : vector<1x32x128xbf16> to vector<32x128xbf16>
    %cst_95 = arith.constant dense<0.000000e+00> : vector<16x128xf32>
    %179 = tpu.matmul %176, %178, %cst_95 {dimension_numbers = #tpu.dot_dimension_numbers<[1], [0], [0], [1], [0, 0, 1, 1], [], []>} : vector<16x32xbf16>, vector<32x128xbf16>, vector<16x128xf32> -> vector<16x128xf32>
    %c0_96 = arith.constant 0 : index
    %c0_97 = arith.constant 0 : index
    %c0_98 = arith.constant 0 : index
    %180 = vector.load %arg21[%c0_96, %c0_97, %c0_98] : memref<2x1x128xf32, #tpu.memory_space<vmem>>, vector<1x1x128xf32>
    %181 = vector.shape_cast %180 : vector<1x1x128xf32> to vector<1x128xf32>
    %182 = vector.broadcast %181 : vector<1x128xf32> to vector<16x128xf32>
    %183 = arith.addf %179, %182 : vector<16x128xf32>
    %cst_99 = arith.constant 5.000000e-01 : f32
    %184 = vector.broadcast %cst_99 : f32 to vector<16x128xf32>
    %185 = arith.mulf %184, %183 : vector<16x128xf32>
    %cst_100 = arith.constant 4.471500e-02 : f32
    %186 = vector.broadcast %cst_100 : f32 to vector<16x128xf32>
    %187 = arith.mulf %186, %183 : vector<16x128xf32>
    %188 = arith.mulf %187, %183 : vector<16x128xf32>
    %189 = arith.mulf %188, %183 : vector<16x128xf32>
    %190 = arith.addf %183, %189 : vector<16x128xf32>
    %cst_101 = arith.constant 0.797884583 : f32
    %191 = vector.broadcast %cst_101 : f32 to vector<16x128xf32>
    %192 = arith.mulf %191, %190 : vector<16x128xf32>
    %193 = math.tanh %192 : vector<16x128xf32>
    %cst_102 = arith.constant 1.000000e+00 : f32
    %194 = vector.broadcast %cst_102 : f32 to vector<16x128xf32>
    %195 = arith.addf %194, %193 : vector<16x128xf32>
    %196 = arith.mulf %185, %195 : vector<16x128xf32>
    %197 = arith.truncf %196 : vector<16x128xf32> to vector<16x128xbf16>
    %c0_103 = arith.constant 0 : index
    %c0_104 = arith.constant 0 : index
    %c0_105 = arith.constant 0 : index
    %198 = vector.load %arg22[%c0_103, %c0_104, %c0_105] : memref<2x128x32xbf16, #tpu.memory_space<vmem>>, vector<1x128x32xbf16>
    %199 = vector.shape_cast %198 : vector<1x128x32xbf16> to vector<128x32xbf16>
    %cst_106 = arith.constant dense<0.000000e+00> : vector<16x32xf32>
    %200 = tpu.matmul %197, %199, %cst_106 {dimension_numbers = #tpu.dot_dimension_numbers<[1], [0], [0], [1], [0, 0, 1, 1], [], []>} : vector<16x128xbf16>, vector<128x32xbf16>, vector<16x32xf32> -> vector<16x32xf32>
    %c0_107 = arith.constant 0 : index
    %c0_108 = arith.constant 0 : index
    %c0_109 = arith.constant 0 : index
    %201 = vector.load %arg23[%c0_107, %c0_108, %c0_109] : memref<2x1x32xf32, #tpu.memory_space<vmem>>, vector<1x1x32xf32>
    %202 = vector.shape_cast %201 : vector<1x1x32xf32> to vector<1x32xf32>
    %203 = vector.broadcast %202 : vector<1x32xf32> to vector<16x32xf32>
    %204 = arith.addf %200, %203 : vector<16x32xf32>
    %205 = arith.addf %151, %204 : vector<16x32xf32>
    %c1_110 = arith.constant 1 : index
    %c0_111 = arith.constant 0 : index
    %c0_112 = arith.constant 0 : index
    %206 = vector.load %arg5[%c1_110, %c0_111, %c0_112] : memref<2x1x32xf32, #tpu.memory_space<vmem>>, vector<1x1x32xf32>
    %207 = vector.shape_cast %206 : vector<1x1x32xf32> to vector<1x32xf32>
    %c1_113 = arith.constant 1 : index
    %c0_114 = arith.constant 0 : index
    %c0_115 = arith.constant 0 : index
    %208 = vector.load %arg6[%c1_113, %c0_114, %c0_115] : memref<2x1x32xf32, #tpu.memory_space<vmem>>, vector<1x1x32xf32>
    %209 = vector.shape_cast %208 : vector<1x1x32xf32> to vector<1x32xf32>
    %cst_116 = arith.constant dense<0.000000e+00> : vector<16xf32>
    %210 = vector.multi_reduction <add>, %205, %cst_116 [1] : vector<16x32xf32> to vector<16xf32>
    %211 = vector.shape_cast %210 : vector<16xf32> to vector<16x1xf32>
    %cst_117 = arith.constant 3.200000e+01 : f32
    %212 = vector.broadcast %cst_117 : f32 to vector<16x1xf32>
    %213 = arith.divf %211, %212 : vector<16x1xf32>
    %214 = vector.broadcast %213 : vector<16x1xf32> to vector<16x32xf32>
    %215 = arith.subf %205, %214 : vector<16x32xf32>
    %216 = arith.mulf %215, %215 : vector<16x32xf32>
    %cst_118 = arith.constant dense<0.000000e+00> : vector<16xf32>
    %217 = vector.multi_reduction <add>, %216, %cst_118 [1] : vector<16x32xf32> to vector<16xf32>
    %218 = vector.shape_cast %217 : vector<16xf32> to vector<16x1xf32>
    %cst_119 = arith.constant 3.200000e+01 : f32
    %219 = vector.broadcast %cst_119 : f32 to vector<16x1xf32>
    %220 = arith.divf %218, %219 : vector<16x1xf32>
    %cst_120 = arith.constant 9.99999974E-6 : f32
    %221 = vector.broadcast %cst_120 : f32 to vector<16x1xf32>
    %222 = arith.addf %220, %221 : vector<16x1xf32>
    %223 = math.rsqrt %222 : vector<16x1xf32>
    %224 = vector.broadcast %223 : vector<16x1xf32> to vector<16x32xf32>
    %225 = arith.mulf %215, %224 : vector<16x32xf32>
    %226 = vector.broadcast %207 : vector<1x32xf32> to vector<16x32xf32>
    %227 = arith.mulf %225, %226 : vector<16x32xf32>
    %228 = vector.broadcast %209 : vector<1x32xf32> to vector<16x32xf32>
    %229 = arith.addf %227, %228 : vector<16x32xf32>
    %230 = arith.truncf %229 : vector<16x32xf32> to vector<16x32xbf16>
    %c1_121 = arith.constant 1 : index
    %c0_122 = arith.constant 0 : index
    %c0_123 = arith.constant 0 : index
    %231 = vector.load %arg7[%c1_121, %c0_122, %c0_123] : memref<2x32x32xbf16, #tpu.memory_space<vmem>>, vector<1x32x32xbf16>
    %232 = vector.shape_cast %231 : vector<1x32x32xbf16> to vector<32x32xbf16>
    %cst_124 = arith.constant dense<0.000000e+00> : vector<16x32xf32>
    %233 = tpu.matmul %230, %232, %cst_124 {dimension_numbers = #tpu.dot_dimension_numbers<[1], [0], [0], [1], [0, 0, 1, 1], [], []>} : vector<16x32xbf16>, vector<32x32xbf16>, vector<16x32xf32> -> vector<16x32xf32>
    %c1_125 = arith.constant 1 : index
    %c0_126 = arith.constant 0 : index
    %c0_127 = arith.constant 0 : index
    %234 = vector.load %arg8[%c1_125, %c0_126, %c0_127] : memref<2x1x32xf32, #tpu.memory_space<vmem>>, vector<1x1x32xf32>
    %235 = vector.shape_cast %234 : vector<1x1x32xf32> to vector<1x32xf32>
    %236 = vector.broadcast %235 : vector<1x32xf32> to vector<16x32xf32>
    %237 = arith.addf %233, %236 : vector<16x32xf32>
    %c1_128 = arith.constant 1 : index
    %c0_129 = arith.constant 0 : index
    %c0_130 = arith.constant 0 : index
    %238 = vector.load %arg9[%c1_128, %c0_129, %c0_130] : memref<2x32x32xbf16, #tpu.memory_space<vmem>>, vector<1x32x32xbf16>
    %239 = vector.shape_cast %238 : vector<1x32x32xbf16> to vector<32x32xbf16>
    %cst_131 = arith.constant dense<0.000000e+00> : vector<16x32xf32>
    %240 = tpu.matmul %230, %239, %cst_131 {dimension_numbers = #tpu.dot_dimension_numbers<[1], [0], [0], [1], [0, 0, 1, 1], [], []>} : vector<16x32xbf16>, vector<32x32xbf16>, vector<16x32xf32> -> vector<16x32xf32>
    %c1_132 = arith.constant 1 : index
    %c0_133 = arith.constant 0 : index
    %c0_134 = arith.constant 0 : index
    %241 = vector.load %arg10[%c1_132, %c0_133, %c0_134] : memref<2x1x32xf32, #tpu.memory_space<vmem>>, vector<1x1x32xf32>
    %242 = vector.shape_cast %241 : vector<1x1x32xf32> to vector<1x32xf32>
    %243 = vector.broadcast %242 : vector<1x32xf32> to vector<16x32xf32>
    %244 = arith.addf %240, %243 : vector<16x32xf32>
    %c1_135 = arith.constant 1 : index
    %c0_136 = arith.constant 0 : index
    %c0_137 = arith.constant 0 : index
    %245 = vector.load %arg11[%c1_135, %c0_136, %c0_137] : memref<2x32x32xbf16, #tpu.memory_space<vmem>>, vector<1x32x32xbf16>
    %246 = vector.shape_cast %245 : vector<1x32x32xbf16> to vector<32x32xbf16>
    %cst_138 = arith.constant dense<0.000000e+00> : vector<16x32xf32>
    %247 = tpu.matmul %230, %246, %cst_138 {dimension_numbers = #tpu.dot_dimension_numbers<[1], [0], [0], [1], [0, 0, 1, 1], [], []>} : vector<16x32xbf16>, vector<32x32xbf16>, vector<16x32xf32> -> vector<16x32xf32>
    %c1_139 = arith.constant 1 : index
    %c0_140 = arith.constant 0 : index
    %c0_141 = arith.constant 0 : index
    %248 = vector.load %arg12[%c1_139, %c0_140, %c0_141] : memref<2x1x32xf32, #tpu.memory_space<vmem>>, vector<1x1x32xf32>
    %249 = vector.shape_cast %248 : vector<1x1x32xf32> to vector<1x32xf32>
    %250 = vector.broadcast %249 : vector<1x32xf32> to vector<16x32xf32>
    %251 = arith.addf %247, %250 : vector<16x32xf32>
    %c1_142 = arith.constant 1 : index
    %c0_143 = arith.constant 0 : index
    %c0_144 = arith.constant 0 : index
    %252 = vector.load %arg13[%c1_142, %c0_143, %c0_144] : memref<2x32x16xbf16, #tpu.memory_space<vmem>>, vector<1x32x16xbf16>
    %253 = vector.shape_cast %252 : vector<1x32x16xbf16> to vector<32x16xbf16>
    %cst_145 = arith.constant dense<0.000000e+00> : vector<16x16xf32>
    %254 = tpu.matmul %230, %253, %cst_145 {dimension_numbers = #tpu.dot_dimension_numbers<[1], [0], [0], [1], [0, 0, 1, 1], [], []>} : vector<16x32xbf16>, vector<32x16xbf16>, vector<16x16xf32> -> vector<16x16xf32>
    %c1_146 = arith.constant 1 : index
    %c0_147 = arith.constant 0 : index
    %c0_148 = arith.constant 0 : index
    %255 = vector.load %arg14[%c1_146, %c0_147, %c0_148] : memref<2x1x16xf32, #tpu.memory_space<vmem>>, vector<1x1x16xf32>
    %256 = vector.shape_cast %255 : vector<1x1x16xf32> to vector<1x16xf32>
    %257 = vector.broadcast %256 : vector<1x16xf32> to vector<16x16xf32>
    %258 = arith.addf %254, %257 : vector<16x16xf32>
    %259 = math.tanh %258 : vector<16x16xf32>
    %cst_149 = arith.constant 0.000000e+00 : f32
    %260 = vector.broadcast %cst_149 : f32 to vector<16x32xf32>
    %261 = vector.broadcast %8 : vector<1x32xf32> to vector<16x32xf32>
    %262 = arith.mulf %237, %261 : vector<16x32xf32>
    %cst_150 = arith.constant dense<0.000000e+00> : vector<16x16xf32>
    %263 = tpu.matmul %262, %244, %cst_150 {dimension_numbers = #tpu.dot_dimension_numbers<[1], [1], [0], [0], [0, 0, 1, 0], [], []>} : vector<16x32xf32>, vector<16x32xf32>, vector<16x16xf32> -> vector<16x16xf32>
    %264 = arith.addf %263, %6 : vector<16x16xf32>
    %cst_151 = arith.constant dense<0xFF800000> : vector<16xf32>
    %265 = vector.multi_reduction <maximumf>, %264, %cst_151 [1] : vector<16x16xf32> to vector<16xf32>
    %266 = vector.shape_cast %265 : vector<16xf32> to vector<16x1xf32>
    %267 = vector.broadcast %266 : vector<16x1xf32> to vector<16x16xf32>
    %268 = arith.subf %264, %267 : vector<16x16xf32>
    %269 = math.exp %268 : vector<16x16xf32>
    %cst_152 = arith.constant dense<0.000000e+00> : vector<16xf32>
    %270 = vector.multi_reduction <add>, %269, %cst_152 [1] : vector<16x16xf32> to vector<16xf32>
    %271 = vector.shape_cast %270 : vector<16xf32> to vector<16x1xf32>
    %272 = vector.broadcast %271 : vector<16x1xf32> to vector<16x16xf32>
    %273 = arith.divf %269, %272 : vector<16x16xf32>
    %274 = vector.broadcast %8 : vector<1x32xf32> to vector<16x32xf32>
    %275 = arith.mulf %251, %274 : vector<16x32xf32>
    %cst_153 = arith.constant dense<0.000000e+00> : vector<16x32xf32>
    %276 = tpu.matmul %273, %275, %cst_153 {dimension_numbers = #tpu.dot_dimension_numbers<[1], [0], [0], [1], [0, 0, 1, 1], [], []>} : vector<16x16xf32>, vector<16x32xf32>, vector<16x32xf32> -> vector<16x32xf32>
    %277 = arith.addf %260, %276 : vector<16x32xf32>
    %278 = vector.broadcast %10 : vector<1x32xf32> to vector<16x32xf32>
    %279 = arith.mulf %237, %278 : vector<16x32xf32>
    %cst_154 = arith.constant dense<0.000000e+00> : vector<16x16xf32>
    %280 = tpu.matmul %279, %244, %cst_154 {dimension_numbers = #tpu.dot_dimension_numbers<[1], [1], [0], [0], [0, 0, 1, 0], [], []>} : vector<16x32xf32>, vector<16x32xf32>, vector<16x16xf32> -> vector<16x16xf32>
    %281 = arith.addf %280, %6 : vector<16x16xf32>
    %cst_155 = arith.constant dense<0xFF800000> : vector<16xf32>
    %282 = vector.multi_reduction <maximumf>, %281, %cst_155 [1] : vector<16x16xf32> to vector<16xf32>
    %283 = vector.shape_cast %282 : vector<16xf32> to vector<16x1xf32>
    %284 = vector.broadcast %283 : vector<16x1xf32> to vector<16x16xf32>
    %285 = arith.subf %281, %284 : vector<16x16xf32>
    %286 = math.exp %285 : vector<16x16xf32>
    %cst_156 = arith.constant dense<0.000000e+00> : vector<16xf32>
    %287 = vector.multi_reduction <add>, %286, %cst_156 [1] : vector<16x16xf32> to vector<16xf32>
    %288 = vector.shape_cast %287 : vector<16xf32> to vector<16x1xf32>
    %289 = vector.broadcast %288 : vector<16x1xf32> to vector<16x16xf32>
    %290 = arith.divf %286, %289 : vector<16x16xf32>
    %291 = vector.broadcast %10 : vector<1x32xf32> to vector<16x32xf32>
    %292 = arith.mulf %251, %291 : vector<16x32xf32>
    %cst_157 = arith.constant dense<0.000000e+00> : vector<16x32xf32>
    %293 = tpu.matmul %290, %292, %cst_157 {dimension_numbers = #tpu.dot_dimension_numbers<[1], [0], [0], [1], [0, 0, 1, 1], [], []>} : vector<16x16xf32>, vector<16x32xf32>, vector<16x32xf32> -> vector<16x32xf32>
    %294 = arith.addf %277, %293 : vector<16x32xf32>
    %295 = vector.broadcast %12 : vector<1x32xf32> to vector<16x32xf32>
    %296 = arith.mulf %237, %295 : vector<16x32xf32>
    %cst_158 = arith.constant dense<0.000000e+00> : vector<16x16xf32>
    %297 = tpu.matmul %296, %244, %cst_158 {dimension_numbers = #tpu.dot_dimension_numbers<[1], [1], [0], [0], [0, 0, 1, 0], [], []>} : vector<16x32xf32>, vector<16x32xf32>, vector<16x16xf32> -> vector<16x16xf32>
    %298 = arith.addf %297, %6 : vector<16x16xf32>
    %cst_159 = arith.constant dense<0xFF800000> : vector<16xf32>
    %299 = vector.multi_reduction <maximumf>, %298, %cst_159 [1] : vector<16x16xf32> to vector<16xf32>
    %300 = vector.shape_cast %299 : vector<16xf32> to vector<16x1xf32>
    %301 = vector.broadcast %300 : vector<16x1xf32> to vector<16x16xf32>
    %302 = arith.subf %298, %301 : vector<16x16xf32>
    %303 = math.exp %302 : vector<16x16xf32>
    %cst_160 = arith.constant dense<0.000000e+00> : vector<16xf32>
    %304 = vector.multi_reduction <add>, %303, %cst_160 [1] : vector<16x16xf32> to vector<16xf32>
    %305 = vector.shape_cast %304 : vector<16xf32> to vector<16x1xf32>
    %306 = vector.broadcast %305 : vector<16x1xf32> to vector<16x16xf32>
    %307 = arith.divf %303, %306 : vector<16x16xf32>
    %308 = vector.broadcast %12 : vector<1x32xf32> to vector<16x32xf32>
    %309 = arith.mulf %251, %308 : vector<16x32xf32>
    %cst_161 = arith.constant dense<0.000000e+00> : vector<16x32xf32>
    %310 = tpu.matmul %307, %309, %cst_161 {dimension_numbers = #tpu.dot_dimension_numbers<[1], [0], [0], [1], [0, 0, 1, 1], [], []>} : vector<16x16xf32>, vector<16x32xf32>, vector<16x32xf32> -> vector<16x32xf32>
    %311 = arith.addf %294, %310 : vector<16x32xf32>
    %312 = vector.broadcast %14 : vector<1x32xf32> to vector<16x32xf32>
    %313 = arith.mulf %237, %312 : vector<16x32xf32>
    %cst_162 = arith.constant dense<0.000000e+00> : vector<16x16xf32>
    %314 = tpu.matmul %313, %244, %cst_162 {dimension_numbers = #tpu.dot_dimension_numbers<[1], [1], [0], [0], [0, 0, 1, 0], [], []>} : vector<16x32xf32>, vector<16x32xf32>, vector<16x16xf32> -> vector<16x16xf32>
    %315 = arith.addf %314, %6 : vector<16x16xf32>
    %cst_163 = arith.constant dense<0xFF800000> : vector<16xf32>
    %316 = vector.multi_reduction <maximumf>, %315, %cst_163 [1] : vector<16x16xf32> to vector<16xf32>
    %317 = vector.shape_cast %316 : vector<16xf32> to vector<16x1xf32>
    %318 = vector.broadcast %317 : vector<16x1xf32> to vector<16x16xf32>
    %319 = arith.subf %315, %318 : vector<16x16xf32>
    %320 = math.exp %319 : vector<16x16xf32>
    %cst_164 = arith.constant dense<0.000000e+00> : vector<16xf32>
    %321 = vector.multi_reduction <add>, %320, %cst_164 [1] : vector<16x16xf32> to vector<16xf32>
    %322 = vector.shape_cast %321 : vector<16xf32> to vector<16x1xf32>
    %323 = vector.broadcast %322 : vector<16x1xf32> to vector<16x16xf32>
    %324 = arith.divf %320, %323 : vector<16x16xf32>
    %325 = vector.broadcast %14 : vector<1x32xf32> to vector<16x32xf32>
    %326 = arith.mulf %251, %325 : vector<16x32xf32>
    %cst_165 = arith.constant dense<0.000000e+00> : vector<16x32xf32>
    %327 = tpu.matmul %324, %326, %cst_165 {dimension_numbers = #tpu.dot_dimension_numbers<[1], [0], [0], [1], [0, 0, 1, 1], [], []>} : vector<16x16xf32>, vector<16x32xf32>, vector<16x32xf32> -> vector<16x32xf32>
    %328 = arith.addf %311, %327 : vector<16x32xf32>
    %329 = arith.truncf %328 : vector<16x32xf32> to vector<16x32xbf16>
    %c1_166 = arith.constant 1 : index
    %c0_167 = arith.constant 0 : index
    %c0_168 = arith.constant 0 : index
    %330 = vector.load %arg15[%c1_166, %c0_167, %c0_168] : memref<2x32x32xbf16, #tpu.memory_space<vmem>>, vector<1x32x32xbf16>
    %331 = vector.shape_cast %330 : vector<1x32x32xbf16> to vector<32x32xbf16>
    %cst_169 = arith.constant dense<0.000000e+00> : vector<16x32xf32>
    %332 = tpu.matmul %329, %331, %cst_169 {dimension_numbers = #tpu.dot_dimension_numbers<[1], [0], [0], [1], [0, 0, 1, 1], [], []>} : vector<16x32xbf16>, vector<32x32xbf16>, vector<16x32xf32> -> vector<16x32xf32>
    %333 = arith.truncf %259 : vector<16x16xf32> to vector<16x16xbf16>
    %c1_170 = arith.constant 1 : index
    %c0_171 = arith.constant 0 : index
    %c0_172 = arith.constant 0 : index
    %334 = vector.load %arg16[%c1_170, %c0_171, %c0_172] : memref<2x16x32xbf16, #tpu.memory_space<vmem>>, vector<1x16x32xbf16>
    %335 = vector.shape_cast %334 : vector<1x16x32xbf16> to vector<16x32xbf16>
    %cst_173 = arith.constant dense<0.000000e+00> : vector<16x32xf32>
    %336 = tpu.matmul %333, %335, %cst_173 {dimension_numbers = #tpu.dot_dimension_numbers<[1], [0], [0], [1], [0, 0, 1, 1], [], []>} : vector<16x16xbf16>, vector<16x32xbf16>, vector<16x32xf32> -> vector<16x32xf32>
    %337 = arith.addf %332, %336 : vector<16x32xf32>
    %c1_174 = arith.constant 1 : index
    %c0_175 = arith.constant 0 : index
    %c0_176 = arith.constant 0 : index
    %338 = vector.load %arg17[%c1_174, %c0_175, %c0_176] : memref<2x1x32xf32, #tpu.memory_space<vmem>>, vector<1x1x32xf32>
    %339 = vector.shape_cast %338 : vector<1x1x32xf32> to vector<1x32xf32>
    %340 = vector.broadcast %339 : vector<1x32xf32> to vector<16x32xf32>
    %341 = arith.addf %337, %340 : vector<16x32xf32>
    %342 = arith.addf %205, %341 : vector<16x32xf32>
    %c1_177 = arith.constant 1 : index
    %c0_178 = arith.constant 0 : index
    %c0_179 = arith.constant 0 : index
    %343 = vector.load %arg18[%c1_177, %c0_178, %c0_179] : memref<2x1x32xf32, #tpu.memory_space<vmem>>, vector<1x1x32xf32>
    %344 = vector.shape_cast %343 : vector<1x1x32xf32> to vector<1x32xf32>
    %c1_180 = arith.constant 1 : index
    %c0_181 = arith.constant 0 : index
    %c0_182 = arith.constant 0 : index
    %345 = vector.load %arg19[%c1_180, %c0_181, %c0_182] : memref<2x1x32xf32, #tpu.memory_space<vmem>>, vector<1x1x32xf32>
    %346 = vector.shape_cast %345 : vector<1x1x32xf32> to vector<1x32xf32>
    %cst_183 = arith.constant dense<0.000000e+00> : vector<16xf32>
    %347 = vector.multi_reduction <add>, %342, %cst_183 [1] : vector<16x32xf32> to vector<16xf32>
    %348 = vector.shape_cast %347 : vector<16xf32> to vector<16x1xf32>
    %cst_184 = arith.constant 3.200000e+01 : f32
    %349 = vector.broadcast %cst_184 : f32 to vector<16x1xf32>
    %350 = arith.divf %348, %349 : vector<16x1xf32>
    %351 = vector.broadcast %350 : vector<16x1xf32> to vector<16x32xf32>
    %352 = arith.subf %342, %351 : vector<16x32xf32>
    %353 = arith.mulf %352, %352 : vector<16x32xf32>
    %cst_185 = arith.constant dense<0.000000e+00> : vector<16xf32>
    %354 = vector.multi_reduction <add>, %353, %cst_185 [1] : vector<16x32xf32> to vector<16xf32>
    %355 = vector.shape_cast %354 : vector<16xf32> to vector<16x1xf32>
    %cst_186 = arith.constant 3.200000e+01 : f32
    %356 = vector.broadcast %cst_186 : f32 to vector<16x1xf32>
    %357 = arith.divf %355, %356 : vector<16x1xf32>
    %cst_187 = arith.constant 9.99999974E-6 : f32
    %358 = vector.broadcast %cst_187 : f32 to vector<16x1xf32>
    %359 = arith.addf %357, %358 : vector<16x1xf32>
    %360 = math.rsqrt %359 : vector<16x1xf32>
    %361 = vector.broadcast %360 : vector<16x1xf32> to vector<16x32xf32>
    %362 = arith.mulf %352, %361 : vector<16x32xf32>
    %363 = vector.broadcast %344 : vector<1x32xf32> to vector<16x32xf32>
    %364 = arith.mulf %362, %363 : vector<16x32xf32>
    %365 = vector.broadcast %346 : vector<1x32xf32> to vector<16x32xf32>
    %366 = arith.addf %364, %365 : vector<16x32xf32>
    %367 = arith.truncf %366 : vector<16x32xf32> to vector<16x32xbf16>
    %c1_188 = arith.constant 1 : index
    %c0_189 = arith.constant 0 : index
    %c0_190 = arith.constant 0 : index
    %368 = vector.load %arg20[%c1_188, %c0_189, %c0_190] : memref<2x32x128xbf16, #tpu.memory_space<vmem>>, vector<1x32x128xbf16>
    %369 = vector.shape_cast %368 : vector<1x32x128xbf16> to vector<32x128xbf16>
    %cst_191 = arith.constant dense<0.000000e+00> : vector<16x128xf32>
    %370 = tpu.matmul %367, %369, %cst_191 {dimension_numbers = #tpu.dot_dimension_numbers<[1], [0], [0], [1], [0, 0, 1, 1], [], []>} : vector<16x32xbf16>, vector<32x128xbf16>, vector<16x128xf32> -> vector<16x128xf32>
    %c1_192 = arith.constant 1 : index
    %c0_193 = arith.constant 0 : index
    %c0_194 = arith.constant 0 : index
    %371 = vector.load %arg21[%c1_192, %c0_193, %c0_194] : memref<2x1x128xf32, #tpu.memory_space<vmem>>, vector<1x1x128xf32>
    %372 = vector.shape_cast %371 : vector<1x1x128xf32> to vector<1x128xf32>
    %373 = vector.broadcast %372 : vector<1x128xf32> to vector<16x128xf32>
    %374 = arith.addf %370, %373 : vector<16x128xf32>
    %cst_195 = arith.constant 5.000000e-01 : f32
    %375 = vector.broadcast %cst_195 : f32 to vector<16x128xf32>
    %376 = arith.mulf %375, %374 : vector<16x128xf32>
    %cst_196 = arith.constant 4.471500e-02 : f32
    %377 = vector.broadcast %cst_196 : f32 to vector<16x128xf32>
    %378 = arith.mulf %377, %374 : vector<16x128xf32>
    %379 = arith.mulf %378, %374 : vector<16x128xf32>
    %380 = arith.mulf %379, %374 : vector<16x128xf32>
    %381 = arith.addf %374, %380 : vector<16x128xf32>
    %cst_197 = arith.constant 0.797884583 : f32
    %382 = vector.broadcast %cst_197 : f32 to vector<16x128xf32>
    %383 = arith.mulf %382, %381 : vector<16x128xf32>
    %384 = math.tanh %383 : vector<16x128xf32>
    %cst_198 = arith.constant 1.000000e+00 : f32
    %385 = vector.broadcast %cst_198 : f32 to vector<16x128xf32>
    %386 = arith.addf %385, %384 : vector<16x128xf32>
    %387 = arith.mulf %376, %386 : vector<16x128xf32>
    %388 = arith.truncf %387 : vector<16x128xf32> to vector<16x128xbf16>
    %c1_199 = arith.constant 1 : index
    %c0_200 = arith.constant 0 : index
    %c0_201 = arith.constant 0 : index
    %389 = vector.load %arg22[%c1_199, %c0_200, %c0_201] : memref<2x128x32xbf16, #tpu.memory_space<vmem>>, vector<1x128x32xbf16>
    %390 = vector.shape_cast %389 : vector<1x128x32xbf16> to vector<128x32xbf16>
    %cst_202 = arith.constant dense<0.000000e+00> : vector<16x32xf32>
    %391 = tpu.matmul %388, %390, %cst_202 {dimension_numbers = #tpu.dot_dimension_numbers<[1], [0], [0], [1], [0, 0, 1, 1], [], []>} : vector<16x128xbf16>, vector<128x32xbf16>, vector<16x32xf32> -> vector<16x32xf32>
    %c1_203 = arith.constant 1 : index
    %c0_204 = arith.constant 0 : index
    %c0_205 = arith.constant 0 : index
    %392 = vector.load %arg23[%c1_203, %c0_204, %c0_205] : memref<2x1x32xf32, #tpu.memory_space<vmem>>, vector<1x1x32xf32>
    %393 = vector.shape_cast %392 : vector<1x1x32xf32> to vector<1x32xf32>
    %394 = vector.broadcast %393 : vector<1x32xf32> to vector<16x32xf32>
    %395 = arith.addf %391, %394 : vector<16x32xf32>
    %396 = arith.addf %342, %395 : vector<16x32xf32>
    %397 = arith.truncf %396 : vector<16x32xf32> to vector<16x32xbf16>
    %c0_206 = arith.constant 0 : index
    %c0_207 = arith.constant 0 : index
    %398 = vector.load %arg24[%c0_206, %c0_207] : memref<32x16xbf16, #tpu.memory_space<vmem>>, vector<32x16xbf16>
    %cst_208 = arith.constant dense<0.000000e+00> : vector<16x16xf32>
    %399 = tpu.matmul %397, %398, %cst_208 {dimension_numbers = #tpu.dot_dimension_numbers<[1], [0], [0], [1], [0, 0, 1, 1], [], []>} : vector<16x32xbf16>, vector<32x16xbf16>, vector<16x16xf32> -> vector<16x16xf32>
    %c0_209 = arith.constant 0 : index
    %c0_210 = arith.constant 0 : index
    %400 = vector.load %arg25[%c0_209, %c0_210] : memref<1x16xf32, #tpu.memory_space<vmem>>, vector<1x16xf32>
    %401 = vector.broadcast %400 : vector<1x16xf32> to vector<16x16xf32>
    %402 = arith.addf %399, %401 : vector<16x16xf32>
    %cst_211 = arith.constant 5.000000e-01 : f32
    %403 = vector.broadcast %cst_211 : f32 to vector<16x16xf32>
    %404 = arith.mulf %403, %402 : vector<16x16xf32>
    %cst_212 = arith.constant 4.471500e-02 : f32
    %405 = vector.broadcast %cst_212 : f32 to vector<16x16xf32>
    %406 = arith.mulf %405, %402 : vector<16x16xf32>
    %407 = arith.mulf %406, %402 : vector<16x16xf32>
    %408 = arith.mulf %407, %402 : vector<16x16xf32>
    %409 = arith.addf %402, %408 : vector<16x16xf32>
    %cst_213 = arith.constant 0.797884583 : f32
    %410 = vector.broadcast %cst_213 : f32 to vector<16x16xf32>
    %411 = arith.mulf %410, %409 : vector<16x16xf32>
    %412 = math.tanh %411 : vector<16x16xf32>
    %cst_214 = arith.constant 1.000000e+00 : f32
    %413 = vector.broadcast %cst_214 : f32 to vector<16x16xf32>
    %414 = arith.addf %413, %412 : vector<16x16xf32>
    %415 = arith.mulf %404, %414 : vector<16x16xf32>
    %416 = arith.truncf %415 : vector<16x16xf32> to vector<16x16xbf16>
    %c0_215 = arith.constant 0 : index
    %c0_216 = arith.constant 0 : index
    %417 = vector.load %arg26[%c0_215, %c0_216] : memref<16x8xbf16, #tpu.memory_space<vmem>>, vector<16x8xbf16>
    %cst_217 = arith.constant dense<0.000000e+00> : vector<16x8xf32>
    %418 = tpu.matmul %416, %417, %cst_217 {dimension_numbers = #tpu.dot_dimension_numbers<[1], [0], [0], [1], [0, 0, 1, 1], [], []>} : vector<16x16xbf16>, vector<16x8xbf16>, vector<16x8xf32> -> vector<16x8xf32>
    %c0_218 = arith.constant 0 : index
    %c0_219 = arith.constant 0 : index
    %419 = vector.load %arg27[%c0_218, %c0_219] : memref<1x8xf32, #tpu.memory_space<vmem>>, vector<1x8xf32>
    %420 = vector.broadcast %419 : vector<1x8xf32> to vector<16x8xf32>
    %421 = arith.addf %418, %420 : vector<16x8xf32>
    %cst_220 = arith.constant 5.000000e-01 : f32
    %422 = vector.broadcast %cst_220 : f32 to vector<16x8xf32>
    %423 = arith.mulf %422, %421 : vector<16x8xf32>
    %cst_221 = arith.constant 4.471500e-02 : f32
    %424 = vector.broadcast %cst_221 : f32 to vector<16x8xf32>
    %425 = arith.mulf %424, %421 : vector<16x8xf32>
    %426 = arith.mulf %425, %421 : vector<16x8xf32>
    %427 = arith.mulf %426, %421 : vector<16x8xf32>
    %428 = arith.addf %421, %427 : vector<16x8xf32>
    %cst_222 = arith.constant 0.797884583 : f32
    %429 = vector.broadcast %cst_222 : f32 to vector<16x8xf32>
    %430 = arith.mulf %429, %428 : vector<16x8xf32>
    %431 = math.tanh %430 : vector<16x8xf32>
    %cst_223 = arith.constant 1.000000e+00 : f32
    %432 = vector.broadcast %cst_223 : f32 to vector<16x8xf32>
    %433 = arith.addf %432, %431 : vector<16x8xf32>
    %434 = arith.mulf %423, %433 : vector<16x8xf32>
    %435 = arith.truncf %434 : vector<16x8xf32> to vector<16x8xbf16>
    %c0_224 = arith.constant 0 : index
    %c0_225 = arith.constant 0 : index
    %436 = vector.load %arg28[%c0_224, %c0_225] : memref<8x128xbf16, #tpu.memory_space<vmem>>, vector<8x128xbf16>
    %cst_226 = arith.constant dense<0.000000e+00> : vector<16x128xf32>
    %437 = tpu.matmul %435, %436, %cst_226 {dimension_numbers = #tpu.dot_dimension_numbers<[1], [0], [0], [1], [0, 0, 1, 1], [], []>} : vector<16x8xbf16>, vector<8x128xbf16>, vector<16x128xf32> -> vector<16x128xf32>
    %c0_227 = arith.constant 0 : index
    %c0_228 = arith.constant 0 : index
    %438 = vector.load %arg29[%c0_227, %c0_228] : memref<1x128xf32, #tpu.memory_space<vmem>>, vector<1x128xf32>
    %439 = vector.broadcast %438 : vector<1x128xf32> to vector<16x128xf32>
    %440 = arith.addf %437, %439 : vector<16x128xf32>
    %c0_229 = arith.constant 0 : index
    %c0_230 = arith.constant 0 : index
    %441 = vector.load %arg4[%c0_229, %c0_230] : memref<1x128xf32, #tpu.memory_space<vmem>>, vector<1x128xf32>
    %cst_231 = arith.constant dense<0.000000e+00> : vector<16xf32>
    %442 = vector.multi_reduction <add>, %440, %cst_231 [1] : vector<16x128xf32> to vector<16xf32>
    %443 = vector.shape_cast %442 : vector<16xf32> to vector<16x1xf32>
    %cst_232 = arith.constant 3.125000e-02 : f32
    %444 = vector.broadcast %cst_232 : f32 to vector<16x1xf32>
    %445 = arith.mulf %443, %444 : vector<16x1xf32>
    %446 = vector.broadcast %445 : vector<16x1xf32> to vector<16x128xf32>
    %447 = arith.subf %440, %446 : vector<16x128xf32>
    %448 = vector.broadcast %441 : vector<1x128xf32> to vector<16x128xf32>
    %449 = arith.mulf %447, %448 : vector<16x128xf32>
    %450 = arith.mulf %449, %449 : vector<16x128xf32>
    %cst_233 = arith.constant dense<0.000000e+00> : vector<16xf32>
    %451 = vector.multi_reduction <add>, %450, %cst_233 [1] : vector<16x128xf32> to vector<16xf32>
    %452 = vector.shape_cast %451 : vector<16xf32> to vector<16x1xf32>
    %cst_234 = arith.constant 3.125000e-02 : f32
    %453 = vector.broadcast %cst_234 : f32 to vector<16x1xf32>
    %454 = arith.mulf %452, %453 : vector<16x1xf32>
    %cst_235 = arith.constant 9.99999974E-6 : f32
    %455 = vector.broadcast %cst_235 : f32 to vector<16x1xf32>
    %456 = arith.addf %454, %455 : vector<16x1xf32>
    %457 = math.rsqrt %456 : vector<16x1xf32>
    %458 = vector.broadcast %457 : vector<16x1xf32> to vector<16x128xf32>
    %459 = arith.mulf %449, %458 : vector<16x128xf32>
    %c0_236 = arith.constant 0 : index
    %c0_237 = arith.constant 0 : index
    %460 = vector.load %arg30[%c0_236, %c0_237] : memref<1x128xf32, #tpu.memory_space<vmem>>, vector<1x128xf32>
    %461 = vector.broadcast %460 : vector<1x128xf32> to vector<16x128xf32>
    %462 = arith.mulf %459, %461 : vector<16x128xf32>
    %c0_238 = arith.constant 0 : index
    %c0_239 = arith.constant 0 : index
    %463 = vector.load %arg31[%c0_238, %c0_239] : memref<1x128xf32, #tpu.memory_space<vmem>>, vector<1x128xf32>
    %464 = vector.broadcast %463 : vector<1x128xf32> to vector<16x128xf32>
    %465 = arith.addf %462, %464 : vector<16x128xf32>
    %c0_240 = arith.constant 0 : index
    %c0_241 = arith.constant 0 : index
    %466 = vector.load %arg35[%c0_240, %c0_241] : memref<16x128xf32, #tpu.memory_space<vmem>>, vector<16x128xf32>
    tpu.vector_store %arg35[%c0_240, %c0_241], %465 {strides = array<i32>} : memref<16x128xf32, #tpu.memory_space<vmem>>, vector<16x128xf32>,
    %467 = arith.truncf %465 : vector<16x128xf32> to vector<16x128xbf16>
    %c0_242 = arith.constant 0 : index
    %c0_243 = arith.constant 0 : index
    %468 = vector.load %arg32[%c0_242, %c0_243] : memref<128x128xbf16, #tpu.memory_space<vmem>>, vector<128x128xbf16>
    %cst_244 = arith.constant dense<0.000000e+00> : vector<16x128xf32>
    %469 = tpu.matmul %467, %468, %cst_244 {dimension_numbers = #tpu.dot_dimension_numbers<[1], [0], [0], [1], [0, 0, 1, 1], [], []>} : vector<16x128xbf16>, vector<128x128xbf16>, vector<16x128xf32> -> vector<16x128xf32>
    %c0_245 = arith.constant 0 : index
    %c0_246 = arith.constant 0 : index
    %470 = vector.load %arg33[%c0_245, %c0_246] : memref<1x128xf32, #tpu.memory_space<vmem>>, vector<1x128xf32>
    %471 = vector.broadcast %470 : vector<1x128xf32> to vector<16x128xf32>
    %472 = arith.addf %469, %471 : vector<16x128xf32>
    %c0_247 = arith.constant 0 : index
    %c0_248 = arith.constant 0 : index
    %473 = vector.load %arg34[%c0_247, %c0_248] : memref<16x128xf32, #tpu.memory_space<vmem>>, vector<16x128xf32>
    tpu.vector_store %arg34[%c0_247, %c0_248], %472 {strides = array<i32>} : memref<16x128xf32, #tpu.memory_space<vmem>>, vector<16x128xf32>,
    return
  }
}

</mosaic_0001>

<llo_original>
// kernel: forward.1
$region0: #{forward.1}
  #allocation0 [shape = 'u32[]', space=smem, size = 0x4, offset = 0x4, fixed_abs, tag = 'smem constant byte address 0x4 - core index']
  #allocation1 [shape = 'u32[144,128]{1,0:T(1,128)}', space=vmem, size = 0x12000, scoped, tag = 'internal scratch']
  %s0 = inlined_call_operand.smem [shape: u32[36], index: -1, kind: input, shape index: {}]
  %s1 = sld [smem:[%s0]]
  %s2 = scalar_lea.smem %s0, 1
  %s3 = sld [smem:[%s2]]
  %s4 = scalar_lea.smem %s0, 2
  %s5 = sld [smem:[%s4]]
  %s6 = scalar_lea.smem %s0, 3
  %s7 = sld [smem:[%s6]]
  %s8 = scalar_lea.smem %s0, 4
  %s9 = sld [smem:[%s8]]
  %s10 = scalar_lea.smem %s0, 5
  %s11 = sld [smem:[%s10]]
  %s12 = scalar_lea.smem %s0, 6
  %s13 = sld [smem:[%s12]]
  %s14 = scalar_lea.smem %s0, 7
  %s15 = sld [smem:[%s14]]
  %s16 = scalar_lea.smem %s0, 8
  %s17 = sld [smem:[%s16]]
  %s18 = scalar_lea.smem %s0, 9
  %s19 = sld [smem:[%s18]]
  %s20 = scalar_lea.smem %s0, 10
  %s21 = sld [smem:[%s20]]
  %s22 = scalar_lea.smem %s0, 11
  %s23 = sld [smem:[%s22]]
  %s24 = scalar_lea.smem %s0, 12
  %s25 = sld [smem:[%s24]]
  %s26 = scalar_lea.smem %s0, 13
  %s27 = sld [smem:[%s26]]
  %s28 = scalar_lea.smem %s0, 14
  %s29 = sld [smem:[%s28]]
  %s30 = scalar_lea.smem %s0, 15
  %s31 = sld [smem:[%s30]]
  %s32 = scalar_lea.smem %s0, 16
  %s33 = sld [smem:[%s32]]
  %s34 = scalar_lea.smem %s0, 17
  %s35 = sld [smem:[%s34]]
  %s36 = scalar_lea.smem %s0, 18
  %s37 = sld [smem:[%s36]]
  %s38 = scalar_lea.smem %s0, 19
  %s39 = sld [smem:[%s38]]
  %s40 = scalar_lea.smem %s0, 20
  %s41 = sld [smem:[%s40]]
  %s42 = scalar_lea.smem %s0, 21
  %s43 = sld [smem:[%s42]]
  %s44 = scalar_lea.smem %s0, 22
  %s45 = sld [smem:[%s44]]
  %s46 = scalar_lea.smem %s0, 23
  %s47 = sld [smem:[%s46]]
  %s48 = scalar_lea.smem %s0, 24
  %s49 = sld [smem:[%s48]]
  %s50 = scalar_lea.smem %s0, 25
  %s51 = sld [smem:[%s50]]
  %s52 = scalar_lea.smem %s0, 26
  %s53 = sld [smem:[%s52]]
  %s54 = scalar_lea.smem %s0, 27
  %s55 = sld [smem:[%s54]]
  %s56 = scalar_lea.smem %s0, 28
  %s57 = sld [smem:[%s56]]
  %s58 = scalar_lea.smem %s0, 29
  %s59 = sld [smem:[%s58]]
  %s60 = scalar_lea.smem %s0, 30
  %s61 = sld [smem:[%s60]]
  %s62 = scalar_lea.smem %s0, 31
  %s63 = sld [smem:[%s62]]
  %s64 = scalar_lea.smem %s0, 32
  %s65 = sld [smem:[%s64]]
  %s66 = scalar_lea.smem %s0, 33
  %s67 = sld [smem:[%s66]]
  %s68 = scalar_lea.smem %s0, 34
  %s69 = sld [smem:[%s68]]
  %s70 = scalar_lea.smem %s0, 35
  %s71 = sld [smem:[%s70]]
  %72 = xla_tuple %s69, %s71
  %s73 = sld [smem:[#allocation0]]
  $region154: #{forward.1} parent=0
    _
  %s75 = ssub.s32 1, %s73
  %s76 = scalar_select 0, %s75, %s73
  // Predicated region
  $region2: #{forward.1} parent=0 // pred_check
    _
  $region3: #{forward.1} parent=0 // pred_check_branch
    %78 = sbr.rel (0) target = $region5
  $region4: #{forward.1} parent=0 // pred_region
    _
  $region5: #{forward.1} parent=0 // pred_fallthru
    _
  // Predicated region
  $region6: #{forward.1} parent=0 // pred_check
    _
  $region7: #{forward.1} parent=0 // pred_check_branch
    %80 = sbr.rel (0) target = $region9
  $region8: #{forward.1} parent=0 // pred_region
    _
  $region9: #{forward.1} parent=0 // pred_fallthru
    _
  // Predicated region
  $region10: #{forward.1} parent=0 // pred_check
    _
  $region11: #{forward.1} parent=0 // pred_check_branch
    %82 = sbr.rel (0) target = $region13
  $region12: #{forward.1} parent=0 // pred_region
    _
  $region13: #{forward.1} parent=0 // pred_fallthru
    _
  // Predicated region
  $region14: #{forward.1} parent=0 // pred_check
    _
  $region15: #{forward.1} parent=0 // pred_check_branch
    %84 = sbr.rel (0) target = $region17
  $region16: #{forward.1} parent=0 // pred_region
    _
  $region17: #{forward.1} parent=0 // pred_fallthru
    _
  // Predicated region
  $region18: #{forward.1} parent=0 // pred_check
    _
  $region19: #{forward.1} parent=0 // pred_check_branch
    %86 = sbr.rel (0) target = $region21
  $region20: #{forward.1} parent=0 // pred_region
    _
  $region21: #{forward.1} parent=0 // pred_fallthru
    _
  // Predicated region
  $region22: #{forward.1} parent=0 // pred_check
    _
  $region23: #{forward.1} parent=0 // pred_check_branch
    %88 = sbr.rel (0) target = $region25
  $region24: #{forward.1} parent=0 // pred_region
    _
  $region25: #{forward.1} parent=0 // pred_fallthru
    _
  // Predicated region
  $region26: #{forward.1} parent=0 // pred_check
    _
  $region27: #{forward.1} parent=0 // pred_check_branch
    %90 = sbr.rel (0) target = $region29
  $region28: #{forward.1} parent=0 // pred_region
    _
  $region29: #{forward.1} parent=0 // pred_fallthru
    _
  // Predicated region
  $region30: #{forward.1} parent=0 // pred_check
    _
  $region31: #{forward.1} parent=0 // pred_check_branch
    %92 = sbr.rel (0) target = $region33
  $region32: #{forward.1} parent=0 // pred_region
    _
  $region33: #{forward.1} parent=0 // pred_fallthru
    _
  // Predicated region
  $region34: #{forward.1} parent=0 // pred_check
    _
  $region35: #{forward.1} parent=0 // pred_check_branch
    %94 = sbr.rel (0) target = $region37
  $region36: #{forward.1} parent=0 // pred_region
    _
  $region37: #{forward.1} parent=0 // pred_fallthru
    _
  // Predicated region
  $region38: #{forward.1} parent=0 // pred_check
    _
  $region39: #{forward.1} parent=0 // pred_check_branch
    %96 = sbr.rel (0) target = $region41
  $region40: #{forward.1} parent=0 // pred_region
    _
  $region41: #{forward.1} parent=0 // pred_fallthru
    _
  // Predicated region
  $region42: #{forward.1} parent=0 // pred_check
    _
  $region43: #{forward.1} parent=0 // pred_check_branch
    %98 = sbr.rel (0) target = $region45
  $region44: #{forward.1} parent=0 // pred_region
    _
  $region45: #{forward.1} parent=0 // pred_fallthru
    _
  // Predicated region
  $region46: #{forward.1} parent=0 // pred_check
    _
  $region47: #{forward.1} parent=0 // pred_check_branch
    %100 = sbr.rel (0) target = $region49
  $region48: #{forward.1} parent=0 // pred_region
    _
  $region49: #{forward.1} parent=0 // pred_fallthru
    _
  // Predicated region
  $region50: #{forward.1} parent=0 // pred_check
    _
  $region51: #{forward.1} parent=0 // pred_check_branch
    %102 = sbr.rel (0) target = $region53
  $region52: #{forward.1} parent=0 // pred_region
    _
  $region53: #{forward.1} parent=0 // pred_fallthru
    _
  // Predicated region
  $region54: #{forward.1} parent=0 // pred_check
    _
  $region55: #{forward.1} parent=0 // pred_check_branch
    %104 = sbr.rel (0) target = $region57
  $region56: #{forward.1} parent=0 // pred_region
    _
  $region57: #{forward.1} parent=0 // pred_fallthru
    _
  // Predicated region
  $region58: #{forward.1} parent=0 // pred_check
    _
  $region59: #{forward.1} parent=0 // pred_check_branch
    %106 = sbr.rel (0) target = $region61
  $region60: #{forward.1} parent=0 // pred_region
    _
  $region61: #{forward.1} parent=0 // pred_fallthru
    _
  // Predicated region
  $region62: #{forward.1} parent=0 // pred_check
    _
  $region63: #{forward.1} parent=0 // pred_check_branch
    %108 = sbr.rel (0) target = $region65
  $region64: #{forward.1} parent=0 // pred_region
    _
  $region65: #{forward.1} parent=0 // pred_fallthru
    _
  // Predicated region
  $region66: #{forward.1} parent=0 // pred_check
    _
  $region67: #{forward.1} parent=0 // pred_check_branch
    %110 = sbr.rel (0) target = $region69
  $region68: #{forward.1} parent=0 // pred_region
    _
  $region69: #{forward.1} parent=0 // pred_fallthru
    _
  // Predicated region
  $region70: #{forward.1} parent=0 // pred_check
    _
  $region71: #{forward.1} parent=0 // pred_check_branch
    %112 = sbr.rel (0) target = $region73
  $region72: #{forward.1} parent=0 // pred_region
    _
  $region73: #{forward.1} parent=0 // pred_fallthru
    _
  // Predicated region
  $region74: #{forward.1} parent=0 // pred_check
    _
  $region75: #{forward.1} parent=0 // pred_check_branch
    %114 = sbr.rel (0) target = $region77
  $region76: #{forward.1} parent=0 // pred_region
    _
  $region77: #{forward.1} parent=0 // pred_fallthru
    _
  // Predicated region
  $region78: #{forward.1} parent=0 // pred_check
    _
  $region79: #{forward.1} parent=0 // pred_check_branch
    %116 = sbr.rel (0) target = $region81
  $region80: #{forward.1} parent=0 // pred_region
    _
  $region81: #{forward.1} parent=0 // pred_fallthru
    _
  // Predicated region
  $region82: #{forward.1} parent=0 // pred_check
    _
  $region83: #{forward.1} parent=0 // pred_check_branch
    %118 = sbr.rel (0) target = $region85
  $region84: #{forward.1} parent=0 // pred_region
    _
  $region85: #{forward.1} parent=0 // pred_fallthru
    _
  // Predicated region
  $region86: #{forward.1} parent=0 // pred_check
    _
  $region87: #{forward.1} parent=0 // pred_check_branch
    %120 = sbr.rel (0) target = $region89
  $region88: #{forward.1} parent=0 // pred_region
    _
  $region89: #{forward.1} parent=0 // pred_fallthru
    _
  // Predicated region
  $region90: #{forward.1} parent=0 // pred_check
    _
  $region91: #{forward.1} parent=0 // pred_check_branch
    %122 = sbr.rel (0) target = $region93
  $region92: #{forward.1} parent=0 // pred_region
    _
  $region93: #{forward.1} parent=0 // pred_fallthru
    _
  // Predicated region
  $region94: #{forward.1} parent=0 // pred_check
    _
  $region95: #{forward.1} parent=0 // pred_check_branch
    %124 = sbr.rel (0) target = $region97
  $region96: #{forward.1} parent=0 // pred_region
    _
  $region97: #{forward.1} parent=0 // pred_fallthru
    _
  // Predicated region
  $region98: #{forward.1} parent=0 // pred_check
    _
  $region99: #{forward.1} parent=0 // pred_check_branch
    %126 = sbr.rel (0) target = $region101
  $region100: #{forward.1} parent=0 // pred_region
    _
  $region101: #{forward.1} parent=0 // pred_fallthru
    _
  // Predicated region
  $region102: #{forward.1} parent=0 // pred_check
    _
  $region103: #{forward.1} parent=0 // pred_check_branch
    %128 = sbr.rel (0) target = $region105
  $region104: #{forward.1} parent=0 // pred_region
    _
  $region105: #{forward.1} parent=0 // pred_fallthru
    _
  // Predicated region
  $region106: #{forward.1} parent=0 // pred_check
    _
  $region107: #{forward.1} parent=0 // pred_check_branch
    %130 = sbr.rel (0) target = $region109
  $region108: #{forward.1} parent=0 // pred_region
    _
  $region109: #{forward.1} parent=0 // pred_fallthru
    _
  // Predicated region
  $region110: #{forward.1} parent=0 // pred_check
    _
  $region111: #{forward.1} parent=0 // pred_check_branch
    %132 = sbr.rel (0) target = $region113
  $region112: #{forward.1} parent=0 // pred_region
    _
  $region113: #{forward.1} parent=0 // pred_fallthru
    _
  // Predicated region
  $region114: #{forward.1} parent=0 // pred_check
    _
  $region115: #{forward.1} parent=0 // pred_check_branch
    %134 = sbr.rel (0) target = $region117
  $region116: #{forward.1} parent=0 // pred_region
    _
  $region117: #{forward.1} parent=0 // pred_fallthru
    _
  // Predicated region
  $region118: #{forward.1} parent=0 // pred_check
    _
  $region119: #{forward.1} parent=0 // pred_check_branch
    %136 = sbr.rel (0) target = $region121
  $region120: #{forward.1} parent=0 // pred_region
    _
  $region121: #{forward.1} parent=0 // pred_fallthru
    _
  // Predicated region
  $region122: #{forward.1} parent=0 // pred_check
    _
  $region123: #{forward.1} parent=0 // pred_check_branch
    %138 = sbr.rel (0) target = $region125
  $region124: #{forward.1} parent=0 // pred_region
    _
  $region125: #{forward.1} parent=0 // pred_fallthru
    _
  // Predicated region
  $region126: #{forward.1} parent=0 // pred_check
    _
  $region127: #{forward.1} parent=0 // pred_check_branch
    %140 = sbr.rel (0) target = $region129
  $region128: #{forward.1} parent=0 // pred_region
    _
  $region129: #{forward.1} parent=0 // pred_fallthru
    _
  // Predicated region
  $region130: #{forward.1} parent=0 // pred_check
    _
  $region131: #{forward.1} parent=0 // pred_check_branch
    %142 = sbr.rel (0) target = $region133
  $region132: #{forward.1} parent=0 // pred_region
    _
  $region133: #{forward.1} parent=0 // pred_fallthru
    _
  // Predicated region
  $region134: #{forward.1} parent=0 // pred_check
    _
  $region135: #{forward.1} parent=0 // pred_check_branch
    %144 = sbr.rel (0) target = $region137
  $region136: #{forward.1} parent=0 // pred_region
    _
  $region137: #{forward.1} parent=0 // pred_fallthru
    _
  %v146 = vld [vmem:[%s1] sm:$0xff]
  %v147 = vld [vmem:[%s1 + $0x8] sm:$0xff]
  %v148 = vld [vmem:[%s3] sm:$0xff]
  %v149 = vadd.f32 %v146, %v148
  %v150 = vadd.f32 %v147, %v148
  %v151 = vld [vmem:[%s5] sm:$0xff]
  %v152 = vld [vmem:[%s5 + $0x8] sm:$0xff]
  %v153 = vld [vmem:[%s7] sm:$0x1]
  %s154 = scalar_lea.vmem %s7, 1
  %v155 = vld [vmem:[%s154] sm:$0x1]
  %s156 = scalar_lea.vmem %s7, 2
  %v157 = vld [vmem:[%s156] sm:$0x1]
  %s158 = scalar_lea.vmem %s7, 3
  %v159 = vld [vmem:[%s158] sm:$0x1]
  %v160 = vld [vmem:[%s11] sm:$0x1]
  %v161 = vld [vmem:[%s13] sm:$0x1]
  %vm162 = vcmask 261120
  %v163 = vsel %vm162, %v149, 0.0
  %164 = vadd.xlane.f32.xlu0 %v163
  %v165 = vpop.xlane.xlu0 %164
  %v166 = vsel %vm162, %v150, 0.0
  %167 = vadd.xlane.f32.xlu0 %v166
  %v168 = vpop.xlane.xlu0 %167
  %v169 = vrcp.pop 32.0
  %v170 = vmul.f32 %v165, %v169
  %v171 = vmul.f32 %v168, %v169
  %v172 = vsub.f32 %v149, %v170
  %v173 = vsub.f32 %v150, %v171
  %v174 = vmul.f32 %v172, %v172
  %v175 = vmul.f32 %v173, %v173
  %v176 = vsel %vm162, %v174, 0.0
  %177 = vadd.xlane.f32.xlu0 %v176
  %v178 = vpop.xlane.xlu0 %177
  %v179 = vsel %vm162, %v175, 0.0
  %180 = vadd.xlane.f32.xlu0 %v179
  %v181 = vpop.xlane.xlu0 %180
  %v182 = vmul.f32 %v178, %v169
  %v183 = vmul.f32 %v181, %v169
  %v184 = vadd.f32 %v182, 1e-05
  %v185 = vadd.f32 %v183, 1e-05
  %v186 = vrsqrt.pop %v184
  %v187 = vrsqrt.pop %v185
  %v188 = vmul.f32 %v172, %v186
  %v189 = vmul.f32 %v173, %v187
  %v191 = vlaneseq
  %v192 = vshrl.u32 %v191, 7
  %v193 = vsub.s32 0, %v192
  %v194 = vrot.slane %v160, %v193
  %v196 = vmul.f32 %v188, %v194
  %v197 = vmul.f32 %v189, %v194
  %v199 = vlaneseq
  %v200 = vshrl.u32 %v199, 7
  %v201 = vsub.s32 0, %v200
  %v202 = vrot.slane %v161, %v201
  %v204 = vadd.f32 %v196, %v202
  %v205 = vadd.f32 %v197, %v202
  %v206 = vpack.c.bf16 %v205, %v204
  %v207 = vld [vmem:[%s15] sm:$0xf]
  %v208 = vld [vmem:[%s15 + $0x4] sm:$0xf]
  %v209 = vld [vmem:[%s15 + $0x8] sm:$0xf]
  %v210 = vld [vmem:[%s15 + $0xc] sm:$0xf]
  %v211 = vld [vmem:[%s17] sm:$0x1]
  %v213 = vlaneseq
  %v214 = vshrl.u32 %v213, 7
  %v215 = vsub.s32 0, %v214
  %v216 = vrot.slane %v211, %v215
  %v222 = vunpack.c.l.b16 %v207
  %v223 = vunpack.c.l.b16 %v208
  %v224 = vunpack.c.l.b16 %v209
  %v225 = vunpack.c.l.b16 %v210
  %v226 = vpack.c.b16 %v223, %v222
  %v227 = vpack.c.b16 %v225, %v224
  %v231 = vsel %vm162, %v206, 0
  %233 = vmatprep.subr.bf16.mxu0 0
  %234 = vmatpush1.bf16.msra.mxu0 0
  %235 = vmatprep.subr.bf16.mxu0 0
  %236 = vmatpush1.bf16.msra.mxu0 0
  %237 = vmatprep.subr.bf16.mxu0 0
  %238 = vmatpush1.bf16.msra.mxu0 0
  %239 = vmatprep.subr.bf16.mxu0 0
  %240 = vmatpush1.bf16.msra.mxu0 0
  %241 = vmatprep.subr.bf16.mxu0 0
  %242 = vmatpush1.bf16.msra.mxu0 0
  %243 = vmatprep.subr.bf16.mxu0 0
  %244 = vmatpush1.bf16.msra.mxu0 0
  %245 = vmatprep.subr.bf16.mxu0 0
  %246 = vmatpush1.bf16.msra.mxu0 %v227
  %247 = vmatprep.subr.bf16.mxu0 0
  %248 = vmatpush1.bf16.msra.mxu0 %v226
  %249 = vmatprep.subr.bf16.mxu0 0
  %250 = vmatpush2.bf16.msra.mxu0 0
  %251 = vmatprep.subr.bf16.mxu0 0
  %252 = vmatpush2.bf16.msra.mxu0 0
  %253 = vmatprep.subr.bf16.mxu0 0
  %254 = vmatpush2.bf16.msra.mxu0 0
  %255 = vmatprep.subr.bf16.mxu0 0
  %256 = vmatpush2.bf16.msra.mxu0 0
  %257 = vmatprep.subr.bf16.mxu0 0
  %258 = vmatpush2.bf16.msra.mxu0 0
  %259 = vmatprep.subr.bf16.mxu0 0
  %260 = vmatpush2.bf16.msra.mxu0 0
  %261 = vmatprep.subr.bf16.mxu0 0
  %262 = vmatpush2.bf16.msra.mxu0 0
  %263 = vmatprep.subr.bf16.mxu0 0
  %264 = vmatpush2.bf16.msra.mxu0 0
  %265 = vmatprep.mubr.bf16.mxu0 0
  %266 = vmatmul.mubr.bf16.gmra.mxu0 %v231
  %v267 = vpop.f32.mrf.mxu0
  %v268 = vadd.f32 %v216, %v267
  %v269 = vpop.f32.mrf.mxu0
  %v270 = vpop.f32.mrf.mxu0
  %v271 = vadd.f32 %v216, %v270
  %v272 = vpop.f32.mrf.mxu0
  %273 = vdwg.mxu0
  %v274 = vld [vmem:[%s19] sm:$0xf]
  %v275 = vld [vmem:[%s19 + $0x4] sm:$0xf]
  %v276 = vld [vmem:[%s19 + $0x8] sm:$0xf]
  %v277 = vld [vmem:[%s19 + $0xc] sm:$0xf]
  %v278 = vld [vmem:[%s21] sm:$0x1]
  %v280 = vlaneseq
  %v281 = vshrl.u32 %v280, 7
  %v282 = vsub.s32 0, %v281
  %v283 = vrot.slane %v278, %v282
  %v289 = vunpack.c.l.b16 %v274
  %v290 = vunpack.c.l.b16 %v275
  %v291 = vunpack.c.l.b16 %v276
  %v292 = vunpack.c.l.b16 %v277
  %v293 = vpack.c.b16 %v290, %v289
  %v294 = vpack.c.b16 %v292, %v291
  %297 = vmatprep.subr.bf16.mxu0 0
  %298 = vmatpush1.bf16.msra.mxu0 0
  %299 = vmatprep.subr.bf16.mxu0 0
  %300 = vmatpush1.bf16.msra.mxu0 0
  %301 = vmatprep.subr.bf16.mxu0 0
  %302 = vmatpush1.bf16.msra.mxu0 0
  %303 = vmatprep.subr.bf16.mxu0 0
  %304 = vmatpush1.bf16.msra.mxu0 0
  %305 = vmatprep.subr.bf16.mxu0 0
  %306 = vmatpush1.bf16.msra.mxu0 0
  %307 = vmatprep.subr.bf16.mxu0 0
  %308 = vmatpush1.bf16.msra.mxu0 0
  %309 = vmatprep.subr.bf16.mxu0 0
  %310 = vmatpush1.bf16.msra.mxu0 %v294
  %311 = vmatprep.subr.bf16.mxu0 0
  %312 = vmatpush1.bf16.msra.mxu0 %v293
  %313 = vmatprep.subr.bf16.mxu0 0
  %314 = vmatpush2.bf16.msra.mxu0 0
  %315 = vmatprep.subr.bf16.mxu0 0
  %316 = vmatpush2.bf16.msra.mxu0 0
  %317 = vmatprep.subr.bf16.mxu0 0
  %318 = vmatpush2.bf16.msra.mxu0 0
  %319 = vmatprep.subr.bf16.mxu0 0
  %320 = vmatpush2.bf16.msra.mxu0 0
  %321 = vmatprep.subr.bf16.mxu0 0
  %322 = vmatpush2.bf16.msra.mxu0 0
  %323 = vmatprep.subr.bf16.mxu0 0
  %324 = vmatpush2.bf16.msra.mxu0 0
  %325 = vmatprep.subr.bf16.mxu0 0
  %326 = vmatpush2.bf16.msra.mxu0 0
  %327 = vmatprep.subr.bf16.mxu0 0
  %328 = vmatpush2.bf16.msra.mxu0 0
  %329 = vmatprep.mubr.bf16.mxu0 0
  %330 = vmatmul.mubr.bf16.gmra.mxu0 %v231
  %v331 = vpop.f32.mrf.mxu0
  %v332 = vadd.f32 %v283, %v331
  %v333 = vpop.f32.mrf.mxu0
  %v334 = vpop.f32.mrf.mxu0
  %v335 = vadd.f32 %v283, %v334
  %v336 = vpop.f32.mrf.mxu0
  %337 = vdwg.mxu0
  %v338 = vld [vmem:[%s23] sm:$0xf]
  %v339 = vld [vmem:[%s23 + $0x4] sm:$0xf]
  %v340 = vld [vmem:[%s23 + $0x8] sm:$0xf]
  %v341 = vld [vmem:[%s23 + $0xc] sm:$0xf]
  %v342 = vld [vmem:[%s25] sm:$0x1]
  %v344 = vlaneseq
  %v345 = vshrl.u32 %v344, 7
  %v346 = vsub.s32 0, %v345
  %v347 = vrot.slane %v342, %v346
  %v353 = vunpack.c.l.b16 %v338
  %v354 = vunpack.c.l.b16 %v339
  %v355 = vunpack.c.l.b16 %v340
  %v356 = vunpack.c.l.b16 %v341
  %v357 = vpack.c.b16 %v354, %v353
  %v358 = vpack.c.b16 %v356, %v355
  %361 = vmatprep.subr.bf16.mxu0 0
  %362 = vmatpush1.bf16.msra.mxu0 0
  %363 = vmatprep.subr.bf16.mxu0 0
  %364 = vmatpush1.bf16.msra.mxu0 0
  %365 = vmatprep.subr.bf16.mxu0 0
  %366 = vmatpush1.bf16.msra.mxu0 0
  %367 = vmatprep.subr.bf16.mxu0 0
  %368 = vmatpush1.bf16.msra.mxu0 0
  %369 = vmatprep.subr.bf16.mxu0 0
  %370 = vmatpush1.bf16.msra.mxu0 0
  %371 = vmatprep.subr.bf16.mxu0 0
  %372 = vmatpush1.bf16.msra.mxu0 0
  %373 = vmatprep.subr.bf16.mxu0 0
  %374 = vmatpush1.bf16.msra.mxu0 %v358
  %375 = vmatprep.subr.bf16.mxu0 0
  %376 = vmatpush1.bf16.msra.mxu0 %v357
  %377 = vmatprep.subr.bf16.mxu0 0
  %378 = vmatpush2.bf16.msra.mxu0 0
  %379 = vmatprep.subr.bf16.mxu0 0
  %380 = vmatpush2.bf16.msra.mxu0 0
  %381 = vmatprep.subr.bf16.mxu0 0
  %382 = vmatpush2.bf16.msra.mxu0 0
  %383 = vmatprep.subr.bf16.mxu0 0
  %384 = vmatpush2.bf16.msra.mxu0 0
  %385 = vmatprep.subr.bf16.mxu0 0
  %386 = vmatpush2.bf16.msra.mxu0 0
  %387 = vmatprep.subr.bf16.mxu0 0
  %388 = vmatpush2.bf16.msra.mxu0 0
  %389 = vmatprep.subr.bf16.mxu0 0
  %390 = vmatpush2.bf16.msra.mxu0 0
  %391 = vmatprep.subr.bf16.mxu0 0
  %392 = vmatpush2.bf16.msra.mxu0 0
  %393 = vmatprep.mubr.bf16.mxu0 0
  %394 = vmatmul.mubr.bf16.gmra.mxu0 %v231
  %v395 = vpop.f32.mrf.mxu0
  %v396 = vadd.f32 %v347, %v395
  %v397 = vpop.f32.mrf.mxu0
  %v398 = vpop.f32.mrf.mxu0
  %v399 = vadd.f32 %v347, %v398
  %v400 = vpop.f32.mrf.mxu0
  %401 = vdwg.mxu0
  %v402 = vld [vmem:[%s27] sm:$0xf]
  %v403 = vld [vmem:[%s27 + $0x4] sm:$0xf]
  %v404 = vld [vmem:[%s27 + $0x8] sm:$0xf]
  %v405 = vld [vmem:[%s27 + $0xc] sm:$0xf]
  %v406 = vld [vmem:[%s29] sm:$0x1]
  %v408 = vlaneseq
  %v409 = vshrl.u32 %v408, 7
  %v410 = vsub.s32 0, %v409
  %v411 = vrot.slane %v406, %v410
  %v417 = vunpack.c.l.b16 %v402
  %v418 = vunpack.c.l.b16 %v403
  %v419 = vunpack.c.l.b16 %v404
  %v420 = vunpack.c.l.b16 %v405
  %v421 = vpack.c.b16 %v418, %v417
  %v422 = vpack.c.b16 %v420, %v419
  %425 = vmatprep.subr.bf16.mxu0 0
  %426 = vmatpush1.bf16.msra.mxu0 0
  %427 = vmatprep.subr.bf16.mxu0 0
  %428 = vmatpush1.bf16.msra.mxu0 0
  %429 = vmatprep.subr.bf16.mxu0 0
  %430 = vmatpush1.bf16.msra.mxu0 0
  %431 = vmatprep.subr.bf16.mxu0 0
  %432 = vmatpush1.bf16.msra.mxu0 0
  %433 = vmatprep.subr.bf16.mxu0 0
  %434 = vmatpush1.bf16.msra.mxu0 0
  %435 = vmatprep.subr.bf16.mxu0 0
  %436 = vmatpush1.bf16.msra.mxu0 0
  %437 = vmatprep.subr.bf16.mxu0 0
  %438 = vmatpush1.bf16.msra.mxu0 %v422
  %439 = vmatprep.subr.bf16.mxu0 0
  %440 = vmatpush1.bf16.msra.mxu0 %v421
  %441 = vmatprep.subr.bf16.mxu0 0
  %442 = vmatpush2.bf16.msra.mxu0 0
  %443 = vmatprep.subr.bf16.mxu0 0
  %444 = vmatpush2.bf16.msra.mxu0 0
  %445 = vmatprep.subr.bf16.mxu0 0
  %446 = vmatpush2.bf16.msra.mxu0 0
  %447 = vmatprep.subr.bf16.mxu0 0
  %448 = vmatpush2.bf16.msra.mxu0 0
  %449 = vmatprep.subr.bf16.mxu0 0
  %450 = vmatpush2.bf16.msra.mxu0 0
  %451 = vmatprep.subr.bf16.mxu0 0
  %452 = vmatpush2.bf16.msra.mxu0 0
  %453 = vmatprep.subr.bf16.mxu0 0
  %454 = vmatpush2.bf16.msra.mxu0 0
  %455 = vmatprep.subr.bf16.mxu0 0
  %456 = vmatpush2.bf16.msra.mxu0 0
  %457 = vmatprep.mubr.bf16.mxu0 0
  %458 = vmatmul.mubr.bf16.gmra.mxu0 %v231
  %v459 = vpop.f32.mrf.mxu0
  %v460 = vadd.f32 %v411, %v459
  %v461 = vpop.f32.mrf.mxu0
  %v462 = vpop.f32.mrf.mxu0
  %v463 = vadd.f32 %v411, %v462
  %v464 = vpop.f32.mrf.mxu0
  %465 = vdwg.mxu0
  %v466 = vtanh.pop %v460
  %v467 = vtanh.pop %v463
  %v469 = vlaneseq
  %v470 = vshrl.u32 %v469, 7
  %v471 = vsub.s32 0, %v470
  %v472 = vrot.slane %v153, %v471
  %v474 = vmul.f32 %v268, %v472
  %v475 = vmul.f32 %v271, %v472
  %v477 = vsel %vm162, %v474, 0
  %v480 = vsel %vm162, %v475, 0
  %v483 = vsel %vm162, %v332, 0
  %v486 = vsel %vm162, %v335, 0
  %488 = vmatprep.subr.mxu0 0.0
  %489 = vmatpush1.xpose.msra.mxu0 0.0
  %490 = vmatprep.subr.mxu0 0.0
  %491 = vmatpush1.xpose.msra.mxu0 0.0
  %492 = vmatprep.subr.mxu0 0.0
  %493 = vmatpush1.xpose.msra.mxu0 0.0
  %494 = vmatprep.subr.mxu0 0.0
  %495 = vmatpush1.xpose.msra.mxu0 0.0
  %496 = vmatprep.subr.mxu0 0.0
  %497 = vmatpush1.xpose.msra.mxu0 0.0
  %498 = vmatprep.subr.mxu0 0.0
  %499 = vmatpush1.xpose.msra.mxu0 0.0
  %500 = vmatprep.subr.mxu0 0.0
  %501 = vmatpush1.xpose.msra.mxu0 0.0
  %502 = vmatprep.subr.mxu0 0.0
  %503 = vmatpush1.xpose.msra.mxu0 0.0
  %504 = vmatprep.subr.mxu0 0.0
  %505 = vmatpush1.xpose.msra.mxu0 0.0
  %506 = vmatprep.subr.mxu0 0.0
  %507 = vmatpush1.xpose.msra.mxu0 0.0
  %508 = vmatprep.subr.mxu0 0.0
  %509 = vmatpush1.xpose.msra.mxu0 0.0
  %510 = vmatprep.subr.mxu0 0.0
  %511 = vmatpush1.xpose.msra.mxu0 0.0
  %512 = vmatprep.subr.mxu0 0.0
  %513 = vmatpush1.xpose.msra.mxu0 0.0
  %514 = vmatprep.subr.mxu0 0.0
  %515 = vmatpush1.xpose.msra.mxu0 0.0
  %516 = vmatprep.subr.mxu0 0.0
  %517 = vmatpush1.xpose.msra.mxu0 %v486
  %518 = vmatprep.subr.mxu0 0.0
  %519 = vmatpush1.xpose.msra.mxu0 %v483
  %520 = vmatprep.subr.mxu0 0.0
  %521 = vmatpush2.xpose.msra.mxu0 0.0
  %522 = vmatprep.subr.mxu0 0.0
  %523 = vmatpush2.xpose.msra.mxu0 0.0
  %524 = vmatprep.subr.mxu0 0.0
  %525 = vmatpush2.xpose.msra.mxu0 0.0
  %526 = vmatprep.subr.mxu0 0.0
  %527 = vmatpush2.xpose.msra.mxu0 0.0
  %528 = vmatprep.subr.mxu0 0.0
  %529 = vmatpush2.xpose.msra.mxu0 0.0
  %530 = vmatprep.subr.mxu0 0.0
  %531 = vmatpush2.xpose.msra.mxu0 0.0
  %532 = vmatprep.subr.mxu0 0.0
  %533 = vmatpush2.xpose.msra.mxu0 0.0
  %534 = vmatprep.subr.mxu0 0.0
  %535 = vmatpush2.xpose.msra.mxu0 0.0
  %536 = vmatprep.subr.mxu0 0.0
  %537 = vmatpush2.xpose.msra.mxu0 0.0
  %538 = vmatprep.subr.mxu0 0.0
  %539 = vmatpush2.xpose.msra.mxu0 0.0
  %540 = vmatprep.subr.mxu0 0.0
  %541 = vmatpush2.xpose.msra.mxu0 0.0
  %542 = vmatprep.subr.mxu0 0.0
  %543 = vmatpush2.xpose.msra.mxu0 0.0
  %544 = vmatprep.subr.mxu0 0.0
  %545 = vmatpush2.xpose.msra.mxu0 0.0
  %546 = vmatprep.subr.mxu0 0.0
  %547 = vmatpush2.xpose.msra.mxu0 0.0
  %548 = vmatprep.subr.mxu0 0.0
  %549 = vmatpush2.xpose.msra.mxu0 0.0
  %550 = vmatprep.subr.mxu0 0.0
  %551 = vmatpush2.xpose.msra.mxu0 0.0
  %552 = vmatprep.mubr.f32.mxu0 0.0
  %553 = vmatmul.mubr.f32.gmra.mxu0 %v477
  %v554 = vpop.f32.mrf.mxu0
  %v555 = vadd.f32 %v151, %v554
  %v556 = vpop.f32.mrf.mxu0
  %557 = vmatprep.mubr.f32.mxu0 0.0
  %558 = vmatmul.mubr.f32.gmra.mxu0 %v480
  %v559 = vpop.f32.mrf.mxu0
  %v560 = vadd.f32 %v152, %v559
  %v561 = vpop.f32.mrf.mxu0
  %562 = vdwg.mxu0
  %vm563 = vcmask 130048
  %v564 = vsel %vm563, %v555, -inf
  %565 = vmax.xlane.f32.xlu0 %v564
  %v566 = vpop.xlane.xlu0 %565
  %v567 = vsel %vm563, %v560, -inf
  %568 = vmax.xlane.f32.xlu0 %v567
  %v569 = vpop.xlane.xlu0 %568
  %v570 = vsub.f32 %v555, %v566
  %v571 = vsub.f32 %v560, %v569
  %v572 = vmul.f32 %v570, 1.442695
  %v573 = vpow.pop %v572
  %v574 = vmul.f32 %v571, 1.442695
  %v575 = vpow.pop %v574
  %v576 = vsel %vm563, %v573, 0.0
  %577 = vadd.xlane.f32.xlu0 %v576
  %v578 = vpop.xlane.xlu0 %577
  %v579 = vsel %vm563, %v575, 0.0
  %580 = vadd.xlane.f32.xlu0 %v579
  %v581 = vpop.xlane.xlu0 %580
  %v582 = vrcp.pop %v578
  %v583 = vmul.f32 %v573, %v582
  %v584 = vrcp.pop %v581
  %v585 = vmul.f32 %v575, %v584
  %v586 = vmul.f32 %v396, %v472
  %v587 = vmul.f32 %v399, %v472
  %v589 = vlaneseq
  %v590 = vshrl.u32 %v589, 7
  %v591 = vsub.s32 0, %v590
  %v592 = vrot.slane %v155, %v591
  %v594 = vmul.f32 %v268, %v592
  %v595 = vmul.f32 %v271, %v592
  %v597 = vsel %vm162, %v594, 0
  %v600 = vsel %vm162, %v595, 0
  %602 = vmatprep.subr.mxu0 0.0
  %603 = vmatpush1.xpose.msra.mxu0 0.0
  %604 = vmatprep.subr.mxu0 0.0
  %605 = vmatpush1.xpose.msra.mxu0 0.0
  %606 = vmatprep.subr.mxu0 0.0
  %607 = vmatpush1.xpose.msra.mxu0 0.0
  %608 = vmatprep.subr.mxu0 0.0
  %609 = vmatpush1.xpose.msra.mxu0 0.0
  %610 = vmatprep.subr.mxu0 0.0
  %611 = vmatpush1.xpose.msra.mxu0 0.0
  %612 = vmatprep.subr.mxu0 0.0
  %613 = vmatpush1.xpose.msra.mxu0 0.0
  %614 = vmatprep.subr.mxu0 0.0
  %615 = vmatpush1.xpose.msra.mxu0 0.0
  %616 = vmatprep.subr.mxu0 0.0
  %617 = vmatpush1.xpose.msra.mxu0 0.0
  %618 = vmatprep.subr.mxu0 0.0
  %619 = vmatpush1.xpose.msra.mxu0 0.0
  %620 = vmatprep.subr.mxu0 0.0
  %621 = vmatpush1.xpose.msra.mxu0 0.0
  %622 = vmatprep.subr.mxu0 0.0
  %623 = vmatpush1.xpose.msra.mxu0 0.0
  %624 = vmatprep.subr.mxu0 0.0
  %625 = vmatpush1.xpose.msra.mxu0 0.0
  %626 = vmatprep.subr.mxu0 0.0
  %627 = vmatpush1.xpose.msra.mxu0 0.0
  %628 = vmatprep.subr.mxu0 0.0
  %629 = vmatpush1.xpose.msra.mxu0 0.0
  %630 = vmatprep.subr.mxu0 0.0
  %631 = vmatpush1.xpose.msra.mxu0 %v486
  %632 = vmatprep.subr.mxu0 0.0
  %633 = vmatpush1.xpose.msra.mxu0 %v483
  %634 = vmatprep.subr.mxu0 0.0
  %635 = vmatpush2.xpose.msra.mxu0 0.0
  %636 = vmatprep.subr.mxu0 0.0
  %637 = vmatpush2.xpose.msra.mxu0 0.0
  %638 = vmatprep.subr.mxu0 0.0
  %639 = vmatpush2.xpose.msra.mxu0 0.0
  %640 = vmatprep.subr.mxu0 0.0
  %641 = vmatpush2.xpose.msra.mxu0 0.0
  %642 = vmatprep.subr.mxu0 0.0
  %643 = vmatpush2.xpose.msra.mxu0 0.0
  %644 = vmatprep.subr.mxu0 0.0
  %645 = vmatpush2.xpose.msra.mxu0 0.0
  %646 = vmatprep.subr.mxu0 0.0
  %647 = vmatpush2.xpose.msra.mxu0 0.0
  %648 = vmatprep.subr.mxu0 0.0
  %649 = vmatpush2.xpose.msra.mxu0 0.0
  %650 = vmatprep.subr.mxu0 0.0
  %651 = vmatpush2.xpose.msra.mxu0 0.0
  %652 = vmatprep.subr.mxu0 0.0
  %653 = vmatpush2.xpose.msra.mxu0 0.0
  %654 = vmatprep.subr.mxu0 0.0
  %655 = vmatpush2.xpose.msra.mxu0 0.0
  %656 = vmatprep.subr.mxu0 0.0
  %657 = vmatpush2.xpose.msra.mxu0 0.0
  %658 = vmatprep.subr.mxu0 0.0
  %659 = vmatpush2.xpose.msra.mxu0 0.0
  %660 = vmatprep.subr.mxu0 0.0
  %661 = vmatpush2.xpose.msra.mxu0 0.0
  %662 = vmatprep.subr.mxu0 0.0
  %663 = vmatpush2.xpose.msra.mxu0 0.0
  %664 = vmatprep.subr.mxu0 0.0
  %665 = vmatpush2.xpose.msra.mxu0 0.0
  %666 = vmatprep.mubr.f32.mxu0 0.0
  %667 = vmatmul.mubr.f32.gmra.mxu0 %v597
  %v668 = vpop.f32.mrf.mxu0
  %v669 = vadd.f32 %v151, %v668
  %v670 = vpop.f32.mrf.mxu0
  %671 = vmatprep.mubr.f32.mxu0 0.0
  %672 = vmatmul.mubr.f32.gmra.mxu0 %v600
  %v673 = vpop.f32.mrf.mxu0
  %v674 = vadd.f32 %v152, %v673
  %v675 = vpop.f32.mrf.mxu0
  %676 = vdwg.mxu0
  %v677 = vsel %vm563, %v669, -inf
  %678 = vmax.xlane.f32.xlu0 %v677
  %v679 = vpop.xlane.xlu0 %678
  %v680 = vsel %vm563, %v674, -inf
  %681 = vmax.xlane.f32.xlu0 %v680
  %v682 = vpop.xlane.xlu0 %681
  %v683 = vsub.f32 %v669, %v679
  %v684 = vsub.f32 %v674, %v682
  %v685 = vmul.f32 %v683, 1.442695
  %v686 = vpow.pop %v685
  %v687 = vmul.f32 %v684, 1.442695
  %v688 = vpow.pop %v687
  %v689 = vsel %vm563, %v686, 0.0
  %690 = vadd.xlane.f32.xlu0 %v689
  %v691 = vpop.xlane.xlu0 %690
  %v692 = vsel %vm563, %v688, 0.0
  %693 = vadd.xlane.f32.xlu0 %v692
  %v694 = vpop.xlane.xlu0 %693
  %v695 = vrcp.pop %v691
  %v696 = vmul.f32 %v686, %v695
  %v697 = vrcp.pop %v694
  %v698 = vmul.f32 %v688, %v697
  %v699 = vmul.f32 %v396, %v592
  %v700 = vmul.f32 %v399, %v592
  %v702 = vsel %vm563, %v696, 0
  %v705 = vsel %vm563, %v698, 0
  %707 = vmatprep.subr.mxu0 0.0
  %708 = vmatpush1.msra.mxu0 0.0
  %709 = vmatprep.subr.mxu0 0.0
  %710 = vmatpush1.msra.mxu0 0.0
  %711 = vmatprep.subr.mxu0 0.0
  %712 = vmatpush1.msra.mxu0 0.0
  %713 = vmatprep.subr.mxu0 0.0
  %714 = vmatpush1.msra.mxu0 0.0
  %715 = vmatprep.subr.mxu0 0.0
  %716 = vmatpush1.msra.mxu0 0.0
  %717 = vmatprep.subr.mxu0 0.0
  %718 = vmatpush1.msra.mxu0 0.0
  %719 = vmatprep.subr.mxu0 0.0
  %720 = vmatpush1.msra.mxu0 0.0
  %721 = vmatprep.subr.mxu0 0.0
  %722 = vmatpush1.msra.mxu0 0.0
  %723 = vmatprep.subr.mxu0 0.0
  %724 = vmatpush1.msra.mxu0 0.0
  %725 = vmatprep.subr.mxu0 0.0
  %726 = vmatpush1.msra.mxu0 0.0
  %727 = vmatprep.subr.mxu0 0.0
  %728 = vmatpush1.msra.mxu0 0.0
  %729 = vmatprep.subr.mxu0 0.0
  %730 = vmatpush1.msra.mxu0 0.0
  %731 = vmatprep.subr.mxu0 0.0
  %732 = vmatpush1.msra.mxu0 0.0
  %733 = vmatprep.subr.mxu0 0.0
  %734 = vmatpush1.msra.mxu0 0.0
  %735 = vmatprep.subr.mxu0 0.0
  %736 = vmatpush1.msra.mxu0 %v700
  %737 = vmatprep.subr.mxu0 0.0
  %738 = vmatpush1.msra.mxu0 %v699
  %739 = vmatprep.subr.mxu0 0.0
  %740 = vmatpush2.msra.mxu0 0.0
  %741 = vmatprep.subr.mxu0 0.0
  %742 = vmatpush2.msra.mxu0 0.0
  %743 = vmatprep.subr.mxu0 0.0
  %744 = vmatpush2.msra.mxu0 0.0
  %745 = vmatprep.subr.mxu0 0.0
  %746 = vmatpush2.msra.mxu0 0.0
  %747 = vmatprep.subr.mxu0 0.0
  %748 = vmatpush2.msra.mxu0 0.0
  %749 = vmatprep.subr.mxu0 0.0
  %750 = vmatpush2.msra.mxu0 0.0
  %751 = vmatprep.subr.mxu0 0.0
  %752 = vmatpush2.msra.mxu0 0.0
  %753 = vmatprep.subr.mxu0 0.0
  %754 = vmatpush2.msra.mxu0 0.0
  %755 = vmatprep.subr.mxu0 0.0
  %756 = vmatpush2.msra.mxu0 0.0
  %757 = vmatprep.subr.mxu0 0.0
  %758 = vmatpush2.msra.mxu0 0.0
  %759 = vmatprep.subr.mxu0 0.0
  %760 = vmatpush2.msra.mxu0 0.0
  %761 = vmatprep.subr.mxu0 0.0
  %762 = vmatpush2.msra.mxu0 0.0
  %763 = vmatprep.subr.mxu0 0.0
  %764 = vmatpush2.msra.mxu0 0.0
  %765 = vmatprep.subr.mxu0 0.0
  %766 = vmatpush2.msra.mxu0 0.0
  %767 = vmatprep.subr.mxu0 0.0
  %768 = vmatpush2.msra.mxu0 0.0
  %769 = vmatprep.subr.mxu0 0.0
  %770 = vmatpush2.msra.mxu0 0.0
  %771 = vmatprep.mubr.f32.mxu0 0.0
  %772 = vmatmul.mubr.f32.gmra.mxu0 %v702
  %v773 = vpop.f32.mrf.mxu0
  %v774 = vadd.f32 0.0, %v773
  %v775 = vpop.f32.mrf.mxu0
  %776 = vmatprep.mubr.f32.mxu0 0.0
  %777 = vmatmul.mubr.f32.gmra.mxu0 %v705
  %v778 = vpop.f32.mrf.mxu0
  %v779 = vadd.f32 0.0, %v778
  %v780 = vpop.f32.mrf.mxu0
  %781 = vdwg.mxu0
  %v783 = vsel %vm563, %v583, 0
  %v786 = vsel %vm563, %v585, 0
  %788 = vmatprep.subr.mxu0 0.0
  %789 = vmatpush1.msra.mxu0 0.0
  %790 = vmatprep.subr.mxu0 0.0
  %791 = vmatpush1.msra.mxu0 0.0
  %792 = vmatprep.subr.mxu0 0.0
  %793 = vmatpush1.msra.mxu0 0.0
  %794 = vmatprep.subr.mxu0 0.0
  %795 = vmatpush1.msra.mxu0 0.0
  %796 = vmatprep.subr.mxu0 0.0
  %797 = vmatpush1.msra.mxu0 0.0
  %798 = vmatprep.subr.mxu0 0.0
  %799 = vmatpush1.msra.mxu0 0.0
  %800 = vmatprep.subr.mxu0 0.0
  %801 = vmatpush1.msra.mxu0 0.0
  %802 = vmatprep.subr.mxu0 0.0
  %803 = vmatpush1.msra.mxu0 0.0
  %804 = vmatprep.subr.mxu0 0.0
  %805 = vmatpush1.msra.mxu0 0.0
  %806 = vmatprep.subr.mxu0 0.0
  %807 = vmatpush1.msra.mxu0 0.0
  %808 = vmatprep.subr.mxu0 0.0
  %809 = vmatpush1.msra.mxu0 0.0
  %810 = vmatprep.subr.mxu0 0.0
  %811 = vmatpush1.msra.mxu0 0.0
  %812 = vmatprep.subr.mxu0 0.0
  %813 = vmatpush1.msra.mxu0 0.0
  %814 = vmatprep.subr.mxu0 0.0
  %815 = vmatpush1.msra.mxu0 0.0
  %816 = vmatprep.subr.mxu0 0.0
  %817 = vmatpush1.msra.mxu0 %v587
  %818 = vmatprep.subr.mxu0 0.0
  %819 = vmatpush1.msra.mxu0 %v586
  %820 = vmatprep.subr.mxu0 0.0
  %821 = vmatpush2.msra.mxu0 0.0
  %822 = vmatprep.subr.mxu0 0.0
  %823 = vmatpush2.msra.mxu0 0.0
  %824 = vmatprep.subr.mxu0 0.0
  %825 = vmatpush2.msra.mxu0 0.0
  %826 = vmatprep.subr.mxu0 0.0
  %827 = vmatpush2.msra.mxu0 0.0
  %828 = vmatprep.subr.mxu0 0.0
  %829 = vmatpush2.msra.mxu0 0.0
  %830 = vmatprep.subr.mxu0 0.0
  %831 = vmatpush2.msra.mxu0 0.0
  %832 = vmatprep.subr.mxu0 0.0
  %833 = vmatpush2.msra.mxu0 0.0
  %834 = vmatprep.subr.mxu0 0.0
  %835 = vmatpush2.msra.mxu0 0.0
  %836 = vmatprep.subr.mxu0 0.0
  %837 = vmatpush2.msra.mxu0 0.0
  %838 = vmatprep.subr.mxu0 0.0
  %839 = vmatpush2.msra.mxu0 0.0
  %840 = vmatprep.subr.mxu0 0.0
  %841 = vmatpush2.msra.mxu0 0.0
  %842 = vmatprep.subr.mxu0 0.0
  %843 = vmatpush2.msra.mxu0 0.0
  %844 = vmatprep.subr.mxu0 0.0
  %845 = vmatpush2.msra.mxu0 0.0
  %846 = vmatprep.subr.mxu0 0.0
  %847 = vmatpush2.msra.mxu0 0.0
  %848 = vmatprep.subr.mxu0 0.0
  %849 = vmatpush2.msra.mxu0 0.0
  %850 = vmatprep.subr.mxu0 0.0
  %851 = vmatpush2.msra.mxu0 0.0
  %852 = vmatprep.mubr.f32.mxu0 0.0
  %853 = vmatmul.mubr.f32.gmra.mxu0 %v783
  %v854 = vpop.f32.mrf.mxu0
  %v855 = vadd.f32 %v774, %v854
  %v856 = vpop.f32.mrf.mxu0
  %857 = vmatprep.mubr.f32.mxu0 0.0
  %858 = vmatmul.mubr.f32.gmra.mxu0 %v786
  %v859 = vpop.f32.mrf.mxu0
  %v860 = vadd.f32 %v779, %v859
  %v861 = vpop.f32.mrf.mxu0
  %862 = vdwg.mxu0
  %v864 = vlaneseq
  %v865 = vshrl.u32 %v864, 7
  %v866 = vsub.s32 0, %v865
  %v867 = vrot.slane %v157, %v866
  %v869 = vmul.f32 %v268, %v867
  %v870 = vmul.f32 %v271, %v867
  %v872 = vsel %vm162, %v869, 0
  %v875 = vsel %vm162, %v870, 0
  %877 = vmatprep.subr.mxu0 0.0
  %878 = vmatpush1.xpose.msra.mxu0 0.0
  %879 = vmatprep.subr.mxu0 0.0
  %880 = vmatpush1.xpose.msra.mxu0 0.0
  %881 = vmatprep.subr.mxu0 0.0
  %882 = vmatpush1.xpose.msra.mxu0 0.0
  %883 = vmatprep.subr.mxu0 0.0
  %884 = vmatpush1.xpose.msra.mxu0 0.0
  %885 = vmatprep.subr.mxu0 0.0
  %886 = vmatpush1.xpose.msra.mxu0 0.0
  %887 = vmatprep.subr.mxu0 0.0
  %888 = vmatpush1.xpose.msra.mxu0 0.0
  %889 = vmatprep.subr.mxu0 0.0
  %890 = vmatpush1.xpose.msra.mxu0 0.0
  %891 = vmatprep.subr.mxu0 0.0
  %892 = vmatpush1.xpose.msra.mxu0 0.0
  %893 = vmatprep.subr.mxu0 0.0
  %894 = vmatpush1.xpose.msra.mxu0 0.0
  %895 = vmatprep.subr.mxu0 0.0
  %896 = vmatpush1.xpose.msra.mxu0 0.0
  %897 = vmatprep.subr.mxu0 0.0
  %898 = vmatpush1.xpose.msra.mxu0 0.0
  %899 = vmatprep.subr.mxu0 0.0
  %900 = vmatpush1.xpose.msra.mxu0 0.0
  %901 = vmatprep.subr.mxu0 0.0
  %902 = vmatpush1.xpose.msra.mxu0 0.0
  %903 = vmatprep.subr.mxu0 0.0
  %904 = vmatpush1.xpose.msra.mxu0 0.0
  %905 = vmatprep.subr.mxu0 0.0
  %906 = vmatpush1.xpose.msra.mxu0 %v486
  %907 = vmatprep.subr.mxu0 0.0
  %908 = vmatpush1.xpose.msra.mxu0 %v483
  %909 = vmatprep.subr.mxu0 0.0
  %910 = vmatpush2.xpose.msra.mxu0 0.0
  %911 = vmatprep.subr.mxu0 0.0
  %912 = vmatpush2.xpose.msra.mxu0 0.0
  %913 = vmatprep.subr.mxu0 0.0
  %914 = vmatpush2.xpose.msra.mxu0 0.0
  %915 = vmatprep.subr.mxu0 0.0
  %916 = vmatpush2.xpose.msra.mxu0 0.0
  %917 = vmatprep.subr.mxu0 0.0
  %918 = vmatpush2.xpose.msra.mxu0 0.0
  %919 = vmatprep.subr.mxu0 0.0
  %920 = vmatpush2.xpose.msra.mxu0 0.0
  %921 = vmatprep.subr.mxu0 0.0
  %922 = vmatpush2.xpose.msra.mxu0 0.0
  %923 = vmatprep.subr.mxu0 0.0
  %924 = vmatpush2.xpose.msra.mxu0 0.0
  %925 = vmatprep.subr.mxu0 0.0
  %926 = vmatpush2.xpose.msra.mxu0 0.0
  %927 = vmatprep.subr.mxu0 0.0
  %928 = vmatpush2.xpose.msra.mxu0 0.0
  %929 = vmatprep.subr.mxu0 0.0
  %930 = vmatpush2.xpose.msra.mxu0 0.0
  %931 = vmatprep.subr.mxu0 0.0
  %932 = vmatpush2.xpose.msra.mxu0 0.0
  %933 = vmatprep.subr.mxu0 0.0
  %934 = vmatpush2.xpose.msra.mxu0 0.0
  %935 = vmatprep.subr.mxu0 0.0
  %936 = vmatpush2.xpose.msra.mxu0 0.0
  %937 = vmatprep.subr.mxu0 0.0
  %938 = vmatpush2.xpose.msra.mxu0 0.0
  %939 = vmatprep.subr.mxu0 0.0
  %940 = vmatpush2.xpose.msra.mxu0 0.0
  %941 = vmatprep.mubr.f32.mxu0 0.0
  %942 = vmatmul.mubr.f32.gmra.mxu0 %v872
  %v943 = vpop.f32.mrf.mxu0
  %v944 = vadd.f32 %v151, %v943
  %v945 = vpop.f32.mrf.mxu0
  %946 = vmatprep.mubr.f32.mxu0 0.0
  %947 = vmatmul.mubr.f32.gmra.mxu0 %v875
  %v948 = vpop.f32.mrf.mxu0
  %v949 = vadd.f32 %v152, %v948
  %v950 = vpop.f32.mrf.mxu0
  %951 = vdwg.mxu0
  %v952 = vsel %vm563, %v944, -inf
  %953 = vmax.xlane.f32.xlu0 %v952
  %v954 = vpop.xlane.xlu0 %953
  %v955 = vsel %vm563, %v949, -inf
  %956 = vmax.xlane.f32.xlu0 %v955
  %v957 = vpop.xlane.xlu0 %956
  %v958 = vsub.f32 %v944, %v954
  %v959 = vsub.f32 %v949, %v957
  %v960 = vmul.f32 %v958, 1.442695
  %v961 = vpow.pop %v960
  %v962 = vmul.f32 %v959, 1.442695
  %v963 = vpow.pop %v962
  %v964 = vsel %vm563, %v961, 0.0
  %965 = vadd.xlane.f32.xlu0 %v964
  %v966 = vpop.xlane.xlu0 %965
  %v967 = vsel %vm563, %v963, 0.0
  %968 = vadd.xlane.f32.xlu0 %v967
  %v969 = vpop.xlane.xlu0 %968
  %v970 = vrcp.pop %v966
  %v971 = vmul.f32 %v961, %v970
  %v972 = vrcp.pop %v969
  %v973 = vmul.f32 %v963, %v972
  %v974 = vmul.f32 %v396, %v867
  %v975 = vmul.f32 %v399, %v867
  %v977 = vsel %vm563, %v971, 0
  %v980 = vsel %vm563, %v973, 0
  %982 = vmatprep.subr.mxu0 0.0
  %983 = vmatpush1.msra.mxu0 0.0
  %984 = vmatprep.subr.mxu0 0.0
  %985 = vmatpush1.msra.mxu0 0.0
  %986 = vmatprep.subr.mxu0 0.0
  %987 = vmatpush1.msra.mxu0 0.0
  %988 = vmatprep.subr.mxu0 0.0
  %989 = vmatpush1.msra.mxu0 0.0
  %990 = vmatprep.subr.mxu0 0.0
  %991 = vmatpush1.msra.mxu0 0.0
  %992 = vmatprep.subr.mxu0 0.0
  %993 = vmatpush1.msra.mxu0 0.0
  %994 = vmatprep.subr.mxu0 0.0
  %995 = vmatpush1.msra.mxu0 0.0
  %996 = vmatprep.subr.mxu0 0.0
  %997 = vmatpush1.msra.mxu0 0.0
  %998 = vmatprep.subr.mxu0 0.0
  %999 = vmatpush1.msra.mxu0 0.0
  %1000 = vmatprep.subr.mxu0 0.0
  %1001 = vmatpush1.msra.mxu0 0.0
  %1002 = vmatprep.subr.mxu0 0.0
  %1003 = vmatpush1.msra.mxu0 0.0
  %1004 = vmatprep.subr.mxu0 0.0
  %1005 = vmatpush1.msra.mxu0 0.0
  %1006 = vmatprep.subr.mxu0 0.0
  %1007 = vmatpush1.msra.mxu0 0.0
  %1008 = vmatprep.subr.mxu0 0.0
  %1009 = vmatpush1.msra.mxu0 0.0
  %1010 = vmatprep.subr.mxu0 0.0
  %1011 = vmatpush1.msra.mxu0 %v975
  %1012 = vmatprep.subr.mxu0 0.0
  %1013 = vmatpush1.msra.mxu0 %v974
  %1014 = vmatprep.subr.mxu0 0.0
  %1015 = vmatpush2.msra.mxu0 0.0
  %1016 = vmatprep.subr.mxu0 0.0
  %1017 = vmatpush2.msra.mxu0 0.0
  %1018 = vmatprep.subr.mxu0 0.0
  %1019 = vmatpush2.msra.mxu0 0.0
  %1020 = vmatprep.subr.mxu0 0.0
  %1021 = vmatpush2.msra.mxu0 0.0
  %1022 = vmatprep.subr.mxu0 0.0
  %1023 = vmatpush2.msra.mxu0 0.0
  %1024 = vmatprep.subr.mxu0 0.0
  %1025 = vmatpush2.msra.mxu0 0.0
  %1026 = vmatprep.subr.mxu0 0.0
  %1027 = vmatpush2.msra.mxu0 0.0
  %1028 = vmatprep.subr.mxu0 0.0
  %1029 = vmatpush2.msra.mxu0 0.0
  %1030 = vmatprep.subr.mxu0 0.0
  %1031 = vmatpush2.msra.mxu0 0.0
  %1032 = vmatprep.subr.mxu0 0.0
  %1033 = vmatpush2.msra.mxu0 0.0
  %1034 = vmatprep.subr.mxu0 0.0
  %1035 = vmatpush2.msra.mxu0 0.0
  %1036 = vmatprep.subr.mxu0 0.0
  %1037 = vmatpush2.msra.mxu0 0.0
  %1038 = vmatprep.subr.mxu0 0.0
  %1039 = vmatpush2.msra.mxu0 0.0
  %1040 = vmatprep.subr.mxu0 0.0
  %1041 = vmatpush2.msra.mxu0 0.0
  %1042 = vmatprep.subr.mxu0 0.0
  %1043 = vmatpush2.msra.mxu0 0.0
  %1044 = vmatprep.subr.mxu0 0.0
  %1045 = vmatpush2.msra.mxu0 0.0
  %1046 = vmatprep.mubr.f32.mxu0 0.0
  %1047 = vmatmul.mubr.f32.gmra.mxu0 %v977
  %v1048 = vpop.f32.mrf.mxu0
  %v1049 = vadd.f32 0.0, %v1048
  %v1050 = vpop.f32.mrf.mxu0
  %1051 = vmatprep.mubr.f32.mxu0 0.0
  %1052 = vmatmul.mubr.f32.gmra.mxu0 %v980
  %v1053 = vpop.f32.mrf.mxu0
  %v1054 = vadd.f32 0.0, %v1053
  %v1055 = vpop.f32.mrf.mxu0
  %1056 = vdwg.mxu0
  %v1057 = vadd.f32 %v855, %v1049
  %v1058 = vadd.f32 %v860, %v1054
  %v1060 = vlaneseq
  %v1061 = vshrl.u32 %v1060, 7
  %v1062 = vsub.s32 0, %v1061
  %v1063 = vrot.slane %v159, %v1062
  %v1065 = vmul.f32 %v268, %v1063
  %v1066 = vmul.f32 %v271, %v1063
  %v1068 = vsel %vm162, %v1065, 0
  %v1071 = vsel %vm162, %v1066, 0
  %1073 = vmatprep.subr.mxu0 0.0
  %1074 = vmatpush1.xpose.msra.mxu0 0.0
  %1075 = vmatprep.subr.mxu0 0.0
  %1076 = vmatpush1.xpose.msra.mxu0 0.0
  %1077 = vmatprep.subr.mxu0 0.0
  %1078 = vmatpush1.xpose.msra.mxu0 0.0
  %1079 = vmatprep.subr.mxu0 0.0
  %1080 = vmatpush1.xpose.msra.mxu0 0.0
  %1081 = vmatprep.subr.mxu0 0.0
  %1082 = vmatpush1.xpose.msra.mxu0 0.0
  %1083 = vmatprep.subr.mxu0 0.0
  %1084 = vmatpush1.xpose.msra.mxu0 0.0
  %1085 = vmatprep.subr.mxu0 0.0
  %1086 = vmatpush1.xpose.msra.mxu0 0.0
  %1087 = vmatprep.subr.mxu0 0.0
  %1088 = vmatpush1.xpose.msra.mxu0 0.0
  %1089 = vmatprep.subr.mxu0 0.0
  %1090 = vmatpush1.xpose.msra.mxu0 0.0
  %1091 = vmatprep.subr.mxu0 0.0
  %1092 = vmatpush1.xpose.msra.mxu0 0.0
  %1093 = vmatprep.subr.mxu0 0.0
  %1094 = vmatpush1.xpose.msra.mxu0 0.0
  %1095 = vmatprep.subr.mxu0 0.0
  %1096 = vmatpush1.xpose.msra.mxu0 0.0
  %1097 = vmatprep.subr.mxu0 0.0
  %1098 = vmatpush1.xpose.msra.mxu0 0.0
  %1099 = vmatprep.subr.mxu0 0.0
  %1100 = vmatpush1.xpose.msra.mxu0 0.0
  %1101 = vmatprep.subr.mxu0 0.0
  %1102 = vmatpush1.xpose.msra.mxu0 %v486
  %1103 = vmatprep.subr.mxu0 0.0
  %1104 = vmatpush1.xpose.msra.mxu0 %v483
  %1105 = vmatprep.subr.mxu0 0.0
  %1106 = vmatpush2.xpose.msra.mxu0 0.0
  %1107 = vmatprep.subr.mxu0 0.0
  %1108 = vmatpush2.xpose.msra.mxu0 0.0
  %1109 = vmatprep.subr.mxu0 0.0
  %1110 = vmatpush2.xpose.msra.mxu0 0.0
  %1111 = vmatprep.subr.mxu0 0.0
  %1112 = vmatpush2.xpose.msra.mxu0 0.0
  %1113 = vmatprep.subr.mxu0 0.0
  %1114 = vmatpush2.xpose.msra.mxu0 0.0
  %1115 = vmatprep.subr.mxu0 0.0
  %1116 = vmatpush2.xpose.msra.mxu0 0.0
  %1117 = vmatprep.subr.mxu0 0.0
  %1118 = vmatpush2.xpose.msra.mxu0 0.0
  %1119 = vmatprep.subr.mxu0 0.0
  %1120 = vmatpush2.xpose.msra.mxu0 0.0
  %1121 = vmatprep.subr.mxu0 0.0
  %1122 = vmatpush2.xpose.msra.mxu0 0.0
  %1123 = vmatprep.subr.mxu0 0.0
  %1124 = vmatpush2.xpose.msra.mxu0 0.0
  %1125 = vmatprep.subr.mxu0 0.0
  %1126 = vmatpush2.xpose.msra.mxu0 0.0
  %1127 = vmatprep.subr.mxu0 0.0
  %1128 = vmatpush2.xpose.msra.mxu0 0.0
  %1129 = vmatprep.subr.mxu0 0.0
  %1130 = vmatpush2.xpose.msra.mxu0 0.0
  %1131 = vmatprep.subr.mxu0 0.0
  %1132 = vmatpush2.xpose.msra.mxu0 0.0
  %1133 = vmatprep.subr.mxu0 0.0
  %1134 = vmatpush2.xpose.msra.mxu0 0.0
  %1135 = vmatprep.subr.mxu0 0.0
  %1136 = vmatpush2.xpose.msra.mxu0 0.0
  %1137 = vmatprep.mubr.f32.mxu0 0.0
  %1138 = vmatmul.mubr.f32.gmra.mxu0 %v1068
  %v1139 = vpop.f32.mrf.mxu0
  %v1140 = vadd.f32 %v151, %v1139
  %v1141 = vpop.f32.mrf.mxu0
  %1142 = vmatprep.mubr.f32.mxu0 0.0
  %1143 = vmatmul.mubr.f32.gmra.mxu0 %v1071
  %v1144 = vpop.f32.mrf.mxu0
  %v1145 = vadd.f32 %v152, %v1144
  %v1146 = vpop.f32.mrf.mxu0
  %1147 = vdwg.mxu0
  %v1148 = vsel %vm563, %v1140, -inf
  %1149 = vmax.xlane.f32.xlu0 %v1148
  %v1150 = vpop.xlane.xlu0 %1149
  %v1151 = vsel %vm563, %v1145, -inf
  %1152 = vmax.xlane.f32.xlu0 %v1151
  %v1153 = vpop.xlane.xlu0 %1152
  %v1154 = vsub.f32 %v1140, %v1150
  %v1155 = vsub.f32 %v1145, %v1153
  %v1156 = vmul.f32 %v1154, 1.442695
  %v1157 = vpow.pop %v1156
  %v1158 = vmul.f32 %v1155, 1.442695
  %v1159 = vpow.pop %v1158
  %v1160 = vsel %vm563, %v1157, 0.0
  %1161 = vadd.xlane.f32.xlu0 %v1160
  %v1162 = vpop.xlane.xlu0 %1161
  %v1163 = vsel %vm563, %v1159, 0.0
  %1164 = vadd.xlane.f32.xlu0 %v1163
  %v1165 = vpop.xlane.xlu0 %1164
  %v1166 = vrcp.pop %v1162
  %v1167 = vmul.f32 %v1157, %v1166
  %v1168 = vrcp.pop %v1165
  %v1169 = vmul.f32 %v1159, %v1168
  %v1170 = vmul.f32 %v396, %v1063
  %v1171 = vmul.f32 %v399, %v1063
  %v1173 = vsel %vm563, %v1167, 0
  %v1176 = vsel %vm563, %v1169, 0
  %1178 = vmatprep.subr.mxu0 0.0
  %1179 = vmatpush1.msra.mxu0 0.0
  %1180 = vmatprep.subr.mxu0 0.0
  %1181 = vmatpush1.msra.mxu0 0.0
  %1182 = vmatprep.subr.mxu0 0.0
  %1183 = vmatpush1.msra.mxu0 0.0
  %1184 = vmatprep.subr.mxu0 0.0
  %1185 = vmatpush1.msra.mxu0 0.0
  %1186 = vmatprep.subr.mxu0 0.0
  %1187 = vmatpush1.msra.mxu0 0.0
  %1188 = vmatprep.subr.mxu0 0.0
  %1189 = vmatpush1.msra.mxu0 0.0
  %1190 = vmatprep.subr.mxu0 0.0
  %1191 = vmatpush1.msra.mxu0 0.0
  %1192 = vmatprep.subr.mxu0 0.0
  %1193 = vmatpush1.msra.mxu0 0.0
  %1194 = vmatprep.subr.mxu0 0.0
  %1195 = vmatpush1.msra.mxu0 0.0
  %1196 = vmatprep.subr.mxu0 0.0
  %1197 = vmatpush1.msra.mxu0 0.0
  %1198 = vmatprep.subr.mxu0 0.0
  %1199 = vmatpush1.msra.mxu0 0.0
  %1200 = vmatprep.subr.mxu0 0.0
  %1201 = vmatpush1.msra.mxu0 0.0
  %1202 = vmatprep.subr.mxu0 0.0
  %1203 = vmatpush1.msra.mxu0 0.0
  %1204 = vmatprep.subr.mxu0 0.0
  %1205 = vmatpush1.msra.mxu0 0.0
  %1206 = vmatprep.subr.mxu0 0.0
  %1207 = vmatpush1.msra.mxu0 %v1171
  %1208 = vmatprep.subr.mxu0 0.0
  %1209 = vmatpush1.msra.mxu0 %v1170
  %1210 = vmatprep.subr.mxu0 0.0
  %1211 = vmatpush2.msra.mxu0 0.0
  %1212 = vmatprep.subr.mxu0 0.0
  %1213 = vmatpush2.msra.mxu0 0.0
  %1214 = vmatprep.subr.mxu0 0.0
  %1215 = vmatpush2.msra.mxu0 0.0
  %1216 = vmatprep.subr.mxu0 0.0
  %1217 = vmatpush2.msra.mxu0 0.0
  %1218 = vmatprep.subr.mxu0 0.0
  %1219 = vmatpush2.msra.mxu0 0.0
  %1220 = vmatprep.subr.mxu0 0.0
  %1221 = vmatpush2.msra.mxu0 0.0
  %1222 = vmatprep.subr.mxu0 0.0
  %1223 = vmatpush2.msra.mxu0 0.0
  %1224 = vmatprep.subr.mxu0 0.0
  %1225 = vmatpush2.msra.mxu0 0.0
  %1226 = vmatprep.subr.mxu0 0.0
  %1227 = vmatpush2.msra.mxu0 0.0
  %1228 = vmatprep.subr.mxu0 0.0
  %1229 = vmatpush2.msra.mxu0 0.0
  %1230 = vmatprep.subr.mxu0 0.0
  %1231 = vmatpush2.msra.mxu0 0.0
  %1232 = vmatprep.subr.mxu0 0.0
  %1233 = vmatpush2.msra.mxu0 0.0
  %1234 = vmatprep.subr.mxu0 0.0
  %1235 = vmatpush2.msra.mxu0 0.0
  %1236 = vmatprep.subr.mxu0 0.0
  %1237 = vmatpush2.msra.mxu0 0.0
  %1238 = vmatprep.subr.mxu0 0.0
  %1239 = vmatpush2.msra.mxu0 0.0
  %1240 = vmatprep.subr.mxu0 0.0
  %1241 = vmatpush2.msra.mxu0 0.0
  %1242 = vmatprep.mubr.f32.mxu0 0.0
  %1243 = vmatmul.mubr.f32.gmra.mxu0 %v1173
  %v1244 = vpop.f32.mrf.mxu0
  %v1245 = vadd.f32 0.0, %v1244
  %v1246 = vpop.f32.mrf.mxu0
  %1247 = vmatprep.mubr.f32.mxu0 0.0
  %1248 = vmatmul.mubr.f32.gmra.mxu0 %v1176
  %v1249 = vpop.f32.mrf.mxu0
  %v1250 = vadd.f32 0.0, %v1249
  %v1251 = vpop.f32.mrf.mxu0
  %1252 = vdwg.mxu0
  %v1253 = vadd.f32 %v1057, %v1245
  %v1254 = vadd.f32 %v1058, %v1250
  %v1255 = vpack.c.bf16 %v1254, %v1253
  %v1256 = vld [vmem:[%s31] sm:$0xf]
  %v1257 = vld [vmem:[%s31 + $0x4] sm:$0xf]
  %v1258 = vld [vmem:[%s31 + $0x8] sm:$0xf]
  %v1259 = vld [vmem:[%s31 + $0xc] sm:$0xf]
  %v1260 = vpack.c.bf16 %v467, %v466
  %v1261 = vld [vmem:[%s33] sm:$0xf]
  %v1262 = vld [vmem:[%s33 + $0x4] sm:$0xf]
  %v1265 = vunpack.c.l.b16 %v1261
  %v1266 = vunpack.c.l.b16 %v1262
  %v1267 = vpack.c.b16 %v1266, %v1265
  %v1270 = vsel %vm563, %v1260, 0
  %1272 = vmatprep.subr.bf16.mxu0 0
  %1273 = vmatpush1.bf16.msra.mxu0 0
  %1274 = vmatprep.subr.bf16.mxu0 0
  %1275 = vmatpush1.bf16.msra.mxu0 0
  %1276 = vmatprep.subr.bf16.mxu0 0
  %1277 = vmatpush1.bf16.msra.mxu0 0
  %1278 = vmatprep.subr.bf16.mxu0 0
  %1279 = vmatpush1.bf16.msra.mxu0 0
  %1280 = vmatprep.subr.bf16.mxu0 0
  %1281 = vmatpush1.bf16.msra.mxu0 0
  %1282 = vmatprep.subr.bf16.mxu0 0
  %1283 = vmatpush1.bf16.msra.mxu0 0
  %1284 = vmatprep.subr.bf16.mxu0 0
  %1285 = vmatpush1.bf16.msra.mxu0 0
  %1286 = vmatprep.subr.bf16.mxu0 0
  %1287 = vmatpush1.bf16.msra.mxu0 %v1267
  %1288 = vmatprep.subr.bf16.mxu0 0
  %1289 = vmatpush2.bf16.msra.mxu0 0
  %1290 = vmatprep.subr.bf16.mxu0 0
  %1291 = vmatpush2.bf16.msra.mxu0 0
  %1292 = vmatprep.subr.bf16.mxu0 0
  %1293 = vmatpush2.bf16.msra.mxu0 0
  %1294 = vmatprep.subr.bf16.mxu0 0
  %1295 = vmatpush2.bf16.msra.mxu0 0
  %1296 = vmatprep.subr.bf16.mxu0 0
  %1297 = vmatpush2.bf16.msra.mxu0 0
  %1298 = vmatprep.subr.bf16.mxu0 0
  %1299 = vmatpush2.bf16.msra.mxu0 0
  %1300 = vmatprep.subr.bf16.mxu0 0
  %1301 = vmatpush2.bf16.msra.mxu0 0
  %1302 = vmatprep.subr.bf16.mxu0 0
  %1303 = vmatpush2.bf16.msra.mxu0 0
  %1304 = vmatprep.mubr.bf16.mxu0 0
  %1305 = vmatmul.mubr.bf16.gmra.mxu0 %v1270
  %v1306 = vpop.f32.mrf.mxu0
  %v1307 = vadd.f32 0.0, %v1306
  %v1308 = vpop.f32.mrf.mxu0
  %v1309 = vpop.f32.mrf.mxu0
  %v1310 = vadd.f32 0.0, %v1309
  %v1311 = vpop.f32.mrf.mxu0
  %1312 = vdwg.mxu0
  %v1317 = vunpack.c.l.b16 %v1256
  %v1318 = vunpack.c.l.b16 %v1257
  %v1319 = vunpack.c.l.b16 %v1258
  %v1320 = vunpack.c.l.b16 %v1259
  %v1321 = vpack.c.b16 %v1318, %v1317
  %v1322 = vpack.c.b16 %v1320, %v1319
  %v1326 = vsel %vm162, %v1255, 0
  %1328 = vmatprep.subr.bf16.mxu0 0
  %1329 = vmatpush1.bf16.msra.mxu0 0
  %1330 = vmatprep.subr.bf16.mxu0 0
  %1331 = vmatpush1.bf16.msra.mxu0 0
  %1332 = vmatprep.subr.bf16.mxu0 0
  %1333 = vmatpush1.bf16.msra.mxu0 0
  %1334 = vmatprep.subr.bf16.mxu0 0
  %1335 = vmatpush1.bf16.msra.mxu0 0
  %1336 = vmatprep.subr.bf16.mxu0 0
  %1337 = vmatpush1.bf16.msra.mxu0 0
  %1338 = vmatprep.subr.bf16.mxu0 0
  %1339 = vmatpush1.bf16.msra.mxu0 0
  %1340 = vmatprep.subr.bf16.mxu0 0
  %1341 = vmatpush1.bf16.msra.mxu0 %v1322
  %1342 = vmatprep.subr.bf16.mxu0 0
  %1343 = vmatpush1.bf16.msra.mxu0 %v1321
  %1344 = vmatprep.subr.bf16.mxu0 0
  %1345 = vmatpush2.bf16.msra.mxu0 0
  %1346 = vmatprep.subr.bf16.mxu0 0
  %1347 = vmatpush2.bf16.msra.mxu0 0
  %1348 = vmatprep.subr.bf16.mxu0 0
  %1349 = vmatpush2.bf16.msra.mxu0 0
  %1350 = vmatprep.subr.bf16.mxu0 0
  %1351 = vmatpush2.bf16.msra.mxu0 0
  %1352 = vmatprep.subr.bf16.mxu0 0
  %1353 = vmatpush2.bf16.msra.mxu0 0
  %1354 = vmatprep.subr.bf16.mxu0 0
  %1355 = vmatpush2.bf16.msra.mxu0 0
  %1356 = vmatprep.subr.bf16.mxu0 0
  %1357 = vmatpush2.bf16.msra.mxu0 0
  %1358 = vmatprep.subr.bf16.mxu0 0
  %1359 = vmatpush2.bf16.msra.mxu0 0
  %1360 = vmatprep.mubr.bf16.mxu0 0
  %1361 = vmatmul.mubr.bf16.gmra.mxu0 %v1326
  %v1362 = vpop.f32.mrf.mxu0
  %v1363 = vadd.f32 %v1307, %v1362
  %v1364 = vpop.f32.mrf.mxu0
  %v1365 = vpop.f32.mrf.mxu0
  %v1366 = vadd.f32 %v1310, %v1365
  %v1367 = vpop.f32.mrf.mxu0
  %1368 = vdwg.mxu0
  %v1369 = vld [vmem:[%s35] sm:$0x1]
  %v1371 = vlaneseq
  %v1372 = vshrl.u32 %v1371, 7
  %v1373 = vsub.s32 0, %v1372
  %v1374 = vrot.slane %v1369, %v1373
  %v1376 = vadd.f32 %v1363, %v1374
  %v1377 = vadd.f32 %v1366, %v1374
  %v1378 = vadd.f32 %v149, %v1376
  %v1379 = vadd.f32 %v150, %v1377
  %v1380 = vld [vmem:[%s37] sm:$0x1]
  %v1381 = vld [vmem:[%s39] sm:$0x1]
  %v1382 = vsel %vm162, %v1378, 0.0
  %1383 = vadd.xlane.f32.xlu0 %v1382
  %v1384 = vpop.xlane.xlu0 %1383
  %v1385 = vsel %vm162, %v1379, 0.0
  %1386 = vadd.xlane.f32.xlu0 %v1385
  %v1387 = vpop.xlane.xlu0 %1386
  %v1388 = vmul.f32 %v1384, %v169
  %v1389 = vmul.f32 %v1387, %v169
  %v1390 = vsub.f32 %v1378, %v1388
  %v1391 = vsub.f32 %v1379, %v1389
  %v1392 = vmul.f32 %v1390, %v1390
  %v1393 = vmul.f32 %v1391, %v1391
  %v1394 = vsel %vm162, %v1392, 0.0
  %1395 = vadd.xlane.f32.xlu0 %v1394
  %v1396 = vpop.xlane.xlu0 %1395
  %v1397 = vsel %vm162, %v1393, 0.0
  %1398 = vadd.xlane.f32.xlu0 %v1397
  %v1399 = vpop.xlane.xlu0 %1398
  %v1400 = vmul.f32 %v1396, %v169
  %v1401 = vmul.f32 %v1399, %v169
  %v1402 = vadd.f32 %v1400, 1e-05
  %v1403 = vadd.f32 %v1401, 1e-05
  %v1404 = vrsqrt.pop %v1402
  %v1405 = vrsqrt.pop %v1403
  %v1406 = vmul.f32 %v1390, %v1404
  %v1407 = vmul.f32 %v1391, %v1405
  %v1409 = vlaneseq
  %v1410 = vshrl.u32 %v1409, 7
  %v1411 = vsub.s32 0, %v1410
  %v1412 = vrot.slane %v1380, %v1411
  %v1414 = vmul.f32 %v1406, %v1412
  %v1415 = vmul.f32 %v1407, %v1412
  %v1417 = vlaneseq
  %v1418 = vshrl.u32 %v1417, 7
  %v1419 = vsub.s32 0, %v1418
  %v1420 = vrot.slane %v1381, %v1419
  %v1422 = vadd.f32 %v1414, %v1420
  %v1423 = vadd.f32 %v1415, %v1420
  %v1424 = vpack.c.bf16 %v1423, %v1422
  %v1425 = vld [vmem:[%s41] sm:$0xf]
  %v1426 = vld [vmem:[%s41 + $0x4] sm:$0xf]
  %v1427 = vld [vmem:[%s41 + $0x8] sm:$0xf]
  %v1428 = vld [vmem:[%s41 + $0xc] sm:$0xf]
  %v1429 = vld [vmem:[%s43] sm:$0x1]
  %v1431 = vlaneseq
  %v1432 = vshrl.u32 %v1431, 7
  %v1433 = vsub.s32 0, %v1432
  %v1434 = vrot.slane %v1429, %v1433
  %v1440 = vunpack.c.l.b16 %v1425
  %v1441 = vunpack.c.l.b16 %v1426
  %v1442 = vunpack.c.l.b16 %v1427
  %v1443 = vunpack.c.l.b16 %v1428
  %v1444 = vpack.c.b16 %v1441, %v1440
  %v1445 = vpack.c.b16 %v1443, %v1442
  %v1449 = vsel %vm162, %v1424, 0
  %1451 = vmatprep.subr.bf16.mxu0 0
  %1452 = vmatpush1.bf16.msra.mxu0 0
  %1453 = vmatprep.subr.bf16.mxu0 0
  %1454 = vmatpush1.bf16.msra.mxu0 0
  %1455 = vmatprep.subr.bf16.mxu0 0
  %1456 = vmatpush1.bf16.msra.mxu0 0
  %1457 = vmatprep.subr.bf16.mxu0 0
  %1458 = vmatpush1.bf16.msra.mxu0 0
  %1459 = vmatprep.subr.bf16.mxu0 0
  %1460 = vmatpush1.bf16.msra.mxu0 0
  %1461 = vmatprep.subr.bf16.mxu0 0
  %1462 = vmatpush1.bf16.msra.mxu0 0
  %1463 = vmatprep.subr.bf16.mxu0 0
  %1464 = vmatpush1.bf16.msra.mxu0 %v1445
  %1465 = vmatprep.subr.bf16.mxu0 0
  %1466 = vmatpush1.bf16.msra.mxu0 %v1444
  %1467 = vmatprep.subr.bf16.mxu0 0
  %1468 = vmatpush2.bf16.msra.mxu0 0
  %1469 = vmatprep.subr.bf16.mxu0 0
  %1470 = vmatpush2.bf16.msra.mxu0 0
  %1471 = vmatprep.subr.bf16.mxu0 0
  %1472 = vmatpush2.bf16.msra.mxu0 0
  %1473 = vmatprep.subr.bf16.mxu0 0
  %1474 = vmatpush2.bf16.msra.mxu0 0
  %1475 = vmatprep.subr.bf16.mxu0 0
  %1476 = vmatpush2.bf16.msra.mxu0 0
  %1477 = vmatprep.subr.bf16.mxu0 0
  %1478 = vmatpush2.bf16.msra.mxu0 0
  %1479 = vmatprep.subr.bf16.mxu0 0
  %1480 = vmatpush2.bf16.msra.mxu0 0
  %1481 = vmatprep.subr.bf16.mxu0 0
  %1482 = vmatpush2.bf16.msra.mxu0 0
  %1483 = vmatprep.mubr.bf16.mxu0 0
  %1484 = vmatmul.mubr.bf16.gmra.mxu0 %v1449
  %v1485 = vpop.f32.mrf.mxu0
  %v1486 = vadd.f32 %v1434, %v1485
  %v1487 = vpop.f32.mrf.mxu0
  %v1488 = vpop.f32.mrf.mxu0
  %v1489 = vadd.f32 %v1434, %v1488
  %v1490 = vpop.f32.mrf.mxu0
  %1491 = vdwg.mxu0
  %v1492 = vmul.f32 %v1486, 0.5
  %v1493 = vmul.f32 %v1489, 0.5
  %v1494 = vmul.f32 %v1486, 0.044715
  %v1495 = vmul.f32 %v1489, 0.044715
  %v1496 = vmul.f32 %v1494, %v1486
  %v1497 = vmul.f32 %v1495, %v1489
  %v1498 = vmul.f32 %v1496, %v1486
  %v1499 = vmul.f32 %v1497, %v1489
  %v1500 = vadd.f32 %v1486, %v1498
  %v1501 = vadd.f32 %v1489, %v1499
  %v1502 = vmul.f32 %v1500, 0.7978846
  %v1503 = vmul.f32 %v1501, 0.7978846
  %v1504 = vtanh.pop %v1502
  %v1505 = vtanh.pop %v1503
  %v1506 = vadd.f32 %v1504, 1.0
  %v1507 = vadd.f32 %v1505, 1.0
  %v1508 = vmul.f32 %v1492, %v1506
  %v1509 = vmul.f32 %v1493, %v1507
  %v1510 = vpack.c.bf16 %v1509, %v1508
  %v1511 = vld [vmem:[%s45] sm:$0xf]
  %v1512 = vld [vmem:[%s45 + $0x4] sm:$0xf]
  %v1513 = vld [vmem:[%s45 + $0x8] sm:$0xf]
  %v1514 = vld [vmem:[%s45 + $0xc] sm:$0xf]
  %v1515 = vld [vmem:[%s45 + $0x10] sm:$0xf]
  %v1516 = vld [vmem:[%s45 + $0x14] sm:$0xf]
  %v1517 = vld [vmem:[%s45 + $0x18] sm:$0xf]
  %v1518 = vld [vmem:[%s45 + $0x1c] sm:$0xf]
  %v1519 = vld [vmem:[%s45 + $0x20] sm:$0xf]
  %v1520 = vld [vmem:[%s45 + $0x24] sm:$0xf]
  %v1521 = vld [vmem:[%s45 + $0x28] sm:$0xf]
  %v1522 = vld [vmem:[%s45 + $0x2c] sm:$0xf]
  %v1523 = vld [vmem:[%s45 + $0x30] sm:$0xf]
  %v1524 = vld [vmem:[%s45 + $0x34] sm:$0xf]
  %v1525 = vld [vmem:[%s45 + $0x38] sm:$0xf]
  %v1526 = vld [vmem:[%s45 + $0x3c] sm:$0xf]
  %v1527 = vld [vmem:[%s47] sm:$0x1]
  %v1529 = vlaneseq
  %v1530 = vshrl.u32 %v1529, 7
  %v1531 = vsub.s32 0, %v1530
  %v1532 = vrot.slane %v1527, %v1531
  %v1550 = vunpack.c.l.b16 %v1511
  %v1551 = vunpack.c.l.b16 %v1512
  %v1552 = vunpack.c.l.b16 %v1513
  %v1553 = vunpack.c.l.b16 %v1514
  %v1554 = vunpack.c.l.b16 %v1515
  %v1555 = vunpack.c.l.b16 %v1516
  %v1556 = vunpack.c.l.b16 %v1517
  %v1557 = vunpack.c.l.b16 %v1518
  %v1558 = vunpack.c.l.b16 %v1519
  %v1559 = vunpack.c.l.b16 %v1520
  %v1560 = vunpack.c.l.b16 %v1521
  %v1561 = vunpack.c.l.b16 %v1522
  %v1562 = vunpack.c.l.b16 %v1523
  %v1563 = vunpack.c.l.b16 %v1524
  %v1564 = vunpack.c.l.b16 %v1525
  %v1565 = vunpack.c.l.b16 %v1526
  %v1566 = vpack.c.b16 %v1551, %v1550
  %v1567 = vpack.c.b16 %v1553, %v1552
  %v1568 = vpack.c.b16 %v1555, %v1554
  %v1569 = vpack.c.b16 %v1557, %v1556
  %v1570 = vpack.c.b16 %v1559, %v1558
  %v1571 = vpack.c.b16 %v1561, %v1560
  %v1572 = vpack.c.b16 %v1563, %v1562
  %v1573 = vpack.c.b16 %v1565, %v1564
  %1582 = vmatprep.subr.bf16.mxu0 0
  %1583 = vmatpush1.bf16.msra.mxu0 %v1573
  %1584 = vmatprep.subr.bf16.mxu0 0
  %1585 = vmatpush1.bf16.msra.mxu0 %v1572
  %1586 = vmatprep.subr.bf16.mxu0 0
  %1587 = vmatpush1.bf16.msra.mxu0 %v1571
  %1588 = vmatprep.subr.bf16.mxu0 0
  %1589 = vmatpush1.bf16.msra.mxu0 %v1570
  %1590 = vmatprep.subr.bf16.mxu0 0
  %1591 = vmatpush1.bf16.msra.mxu0 %v1569
  %1592 = vmatprep.subr.bf16.mxu0 0
  %1593 = vmatpush1.bf16.msra.mxu0 %v1568
  %1594 = vmatprep.subr.bf16.mxu0 0
  %1595 = vmatpush1.bf16.msra.mxu0 %v1567
  %1596 = vmatprep.subr.bf16.mxu0 0
  %1597 = vmatpush1.bf16.msra.mxu0 %v1566
  %1598 = vmatprep.subr.bf16.mxu0 0
  %1599 = vmatpush2.bf16.msra.mxu0 0
  %1600 = vmatprep.subr.bf16.mxu0 0
  %1601 = vmatpush2.bf16.msra.mxu0 0
  %1602 = vmatprep.subr.bf16.mxu0 0
  %1603 = vmatpush2.bf16.msra.mxu0 0
  %1604 = vmatprep.subr.bf16.mxu0 0
  %1605 = vmatpush2.bf16.msra.mxu0 0
  %1606 = vmatprep.subr.bf16.mxu0 0
  %1607 = vmatpush2.bf16.msra.mxu0 0
  %1608 = vmatprep.subr.bf16.mxu0 0
  %1609 = vmatpush2.bf16.msra.mxu0 0
  %1610 = vmatprep.subr.bf16.mxu0 0
  %1611 = vmatpush2.bf16.msra.mxu0 0
  %1612 = vmatprep.subr.bf16.mxu0 0
  %1613 = vmatpush2.bf16.msra.mxu0 0
  %1614 = vmatprep.mubr.bf16.mxu0 0
  %1615 = vmatmul.mubr.bf16.gmra.mxu0 %v1510
  %v1616 = vpop.f32.mrf.mxu0
  %v1617 = vadd.f32 %v1532, %v1616
  %v1618 = vpop.f32.mrf.mxu0
  %v1619 = vpop.f32.mrf.mxu0
  %v1620 = vadd.f32 %v1532, %v1619
  %v1621 = vpop.f32.mrf.mxu0
  %1622 = vdwg.mxu0
  %v1623 = vadd.f32 %v1378, %v1617
  %v1624 = vadd.f32 %v1379, %v1620
  %s1625 = scalar_lea.vmem %s11, 1
  %v1626 = vld [vmem:[%s1625] sm:$0x1]
  %s1627 = scalar_lea.vmem %s13, 1
  %v1628 = vld [vmem:[%s1627] sm:$0x1]
  %v1629 = vsel %vm162, %v1623, 0.0
  %1630 = vadd.xlane.f32.xlu0 %v1629
  %v1631 = vpop.xlane.xlu0 %1630
  %v1632 = vsel %vm162, %v1624, 0.0
  %1633 = vadd.xlane.f32.xlu0 %v1632
  %v1634 = vpop.xlane.xlu0 %1633
  %v1635 = vmul.f32 %v1631, %v169
  %v1636 = vmul.f32 %v1634, %v169
  %v1637 = vsub.f32 %v1623, %v1635
  %v1638 = vsub.f32 %v1624, %v1636
  %v1639 = vmul.f32 %v1637, %v1637
  %v1640 = vmul.f32 %v1638, %v1638
  %v1641 = vsel %vm162, %v1639, 0.0
  %1642 = vadd.xlane.f32.xlu0 %v1641
  %v1643 = vpop.xlane.xlu0 %1642
  %v1644 = vsel %vm162, %v1640, 0.0
  %1645 = vadd.xlane.f32.xlu0 %v1644
  %v1646 = vpop.xlane.xlu0 %1645
  %v1647 = vmul.f32 %v1643, %v169
  %v1648 = vmul.f32 %v1646, %v169
  %v1649 = vadd.f32 %v1647, 1e-05
  %v1650 = vadd.f32 %v1648, 1e-05
  %v1651 = vrsqrt.pop %v1649
  %v1652 = vrsqrt.pop %v1650
  %v1653 = vmul.f32 %v1637, %v1651
  %v1654 = vmul.f32 %v1638, %v1652
  %v1656 = vlaneseq
  %v1657 = vshrl.u32 %v1656, 7
  %v1658 = vsub.s32 0, %v1657
  %v1659 = vrot.slane %v1626, %v1658
  %v1661 = vmul.f32 %v1653, %v1659
  %v1662 = vmul.f32 %v1654, %v1659
  %v1664 = vlaneseq
  %v1665 = vshrl.u32 %v1664, 7
  %v1666 = vsub.s32 0, %v1665
  %v1667 = vrot.slane %v1628, %v1666
  %v1669 = vadd.f32 %v1661, %v1667
  %v1670 = vadd.f32 %v1662, %v1667
  %v1671 = vpack.c.bf16 %v1670, %v1669
  %s1672 = scalar_lea.vmem %s15, 16
  %v1673 = vld [vmem:[%s1672] sm:$0xf]
  %v1674 = vld [vmem:[%s1672 + $0x4] sm:$0xf]
  %v1675 = vld [vmem:[%s1672 + $0x8] sm:$0xf]
  %v1676 = vld [vmem:[%s1672 + $0xc] sm:$0xf]
  %s1677 = scalar_lea.vmem %s17, 1
  %v1678 = vld [vmem:[%s1677] sm:$0x1]
  %v1680 = vlaneseq
  %v1681 = vshrl.u32 %v1680, 7
  %v1682 = vsub.s32 0, %v1681
  %v1683 = vrot.slane %v1678, %v1682
  %v1689 = vunpack.c.l.b16 %v1673
  %v1690 = vunpack.c.l.b16 %v1674
  %v1691 = vunpack.c.l.b16 %v1675
  %v1692 = vunpack.c.l.b16 %v1676
  %v1693 = vpack.c.b16 %v1690, %v1689
  %v1694 = vpack.c.b16 %v1692, %v1691
  %v1698 = vsel %vm162, %v1671, 0
  %1700 = vmatprep.subr.bf16.mxu0 0
  %1701 = vmatpush1.bf16.msra.mxu0 0
  %1702 = vmatprep.subr.bf16.mxu0 0
  %1703 = vmatpush1.bf16.msra.mxu0 0
  %1704 = vmatprep.subr.bf16.mxu0 0
  %1705 = vmatpush1.bf16.msra.mxu0 0
  %1706 = vmatprep.subr.bf16.mxu0 0
  %1707 = vmatpush1.bf16.msra.mxu0 0
  %1708 = vmatprep.subr.bf16.mxu0 0
  %1709 = vmatpush1.bf16.msra.mxu0 0
  %1710 = vmatprep.subr.bf16.mxu0 0
  %1711 = vmatpush1.bf16.msra.mxu0 0
  %1712 = vmatprep.subr.bf16.mxu0 0
  %1713 = vmatpush1.bf16.msra.mxu0 %v1694
  %1714 = vmatprep.subr.bf16.mxu0 0
  %1715 = vmatpush1.bf16.msra.mxu0 %v1693
  %1716 = vmatprep.subr.bf16.mxu0 0
  %1717 = vmatpush2.bf16.msra.mxu0 0
  %1718 = vmatprep.subr.bf16.mxu0 0
  %1719 = vmatpush2.bf16.msra.mxu0 0
  %1720 = vmatprep.subr.bf16.mxu0 0
  %1721 = vmatpush2.bf16.msra.mxu0 0
  %1722 = vmatprep.subr.bf16.mxu0 0
  %1723 = vmatpush2.bf16.msra.mxu0 0
  %1724 = vmatprep.subr.bf16.mxu0 0
  %1725 = vmatpush2.bf16.msra.mxu0 0
  %1726 = vmatprep.subr.bf16.mxu0 0
  %1727 = vmatpush2.bf16.msra.mxu0 0
  %1728 = vmatprep.subr.bf16.mxu0 0
  %1729 = vmatpush2.bf16.msra.mxu0 0
  %1730 = vmatprep.subr.bf16.mxu0 0
  %1731 = vmatpush2.bf16.msra.mxu0 0
  %1732 = vmatprep.mubr.bf16.mxu0 0
  %1733 = vmatmul.mubr.bf16.gmra.mxu0 %v1698
  %v1734 = vpop.f32.mrf.mxu0
  %v1735 = vadd.f32 %v1683, %v1734
  %v1736 = vpop.f32.mrf.mxu0
  %v1737 = vpop.f32.mrf.mxu0
  %v1738 = vadd.f32 %v1683, %v1737
  %v1739 = vpop.f32.mrf.mxu0
  %1740 = vdwg.mxu0
  %s1741 = scalar_lea.vmem %s19, 16
  %v1742 = vld [vmem:[%s1741] sm:$0xf]
  %v1743 = vld [vmem:[%s1741 + $0x4] sm:$0xf]
  %v1744 = vld [vmem:[%s1741 + $0x8] sm:$0xf]
  %v1745 = vld [vmem:[%s1741 + $0xc] sm:$0xf]
  %s1746 = scalar_lea.vmem %s21, 1
  %v1747 = vld [vmem:[%s1746] sm:$0x1]
  %v1749 = vlaneseq
  %v1750 = vshrl.u32 %v1749, 7
  %v1751 = vsub.s32 0, %v1750
  %v1752 = vrot.slane %v1747, %v1751
  %v1758 = vunpack.c.l.b16 %v1742
  %v1759 = vunpack.c.l.b16 %v1743
  %v1760 = vunpack.c.l.b16 %v1744
  %v1761 = vunpack.c.l.b16 %v1745
  %v1762 = vpack.c.b16 %v1759, %v1758
  %v1763 = vpack.c.b16 %v1761, %v1760
  %1766 = vmatprep.subr.bf16.mxu0 0
  %1767 = vmatpush1.bf16.msra.mxu0 0
  %1768 = vmatprep.subr.bf16.mxu0 0
  %1769 = vmatpush1.bf16.msra.mxu0 0
  %1770 = vmatprep.subr.bf16.mxu0 0
  %1771 = vmatpush1.bf16.msra.mxu0 0
  %1772 = vmatprep.subr.bf16.mxu0 0
  %1773 = vmatpush1.bf16.msra.mxu0 0
  %1774 = vmatprep.subr.bf16.mxu0 0
  %1775 = vmatpush1.bf16.msra.mxu0 0
  %1776 = vmatprep.subr.bf16.mxu0 0
  %1777 = vmatpush1.bf16.msra.mxu0 0
  %1778 = vmatprep.subr.bf16.mxu0 0
  %1779 = vmatpush1.bf16.msra.mxu0 %v1763
  %1780 = vmatprep.subr.bf16.mxu0 0
  %1781 = vmatpush1.bf16.msra.mxu0 %v1762
  %1782 = vmatprep.subr.bf16.mxu0 0
  %1783 = vmatpush2.bf16.msra.mxu0 0
  %1784 = vmatprep.subr.bf16.mxu0 0
  %1785 = vmatpush2.bf16.msra.mxu0 0
  %1786 = vmatprep.subr.bf16.mxu0 0
  %1787 = vmatpush2.bf16.msra.mxu0 0
  %1788 = vmatprep.subr.bf16.mxu0 0
  %1789 = vmatpush2.bf16.msra.mxu0 0
  %1790 = vmatprep.subr.bf16.mxu0 0
  %1791 = vmatpush2.bf16.msra.mxu0 0
  %1792 = vmatprep.subr.bf16.mxu0 0
  %1793 = vmatpush2.bf16.msra.mxu0 0
  %1794 = vmatprep.subr.bf16.mxu0 0
  %1795 = vmatpush2.bf16.msra.mxu0 0
  %1796 = vmatprep.subr.bf16.mxu0 0
  %1797 = vmatpush2.bf16.msra.mxu0 0
  %1798 = vmatprep.mubr.bf16.mxu0 0
  %1799 = vmatmul.mubr.bf16.gmra.mxu0 %v1698
  %v1800 = vpop.f32.mrf.mxu0
  %v1801 = vadd.f32 %v1752, %v1800
  %v1802 = vpop.f32.mrf.mxu0
  %v1803 = vpop.f32.mrf.mxu0
  %v1804 = vadd.f32 %v1752, %v1803
  %v1805 = vpop.f32.mrf.mxu0
  %1806 = vdwg.mxu0
  %s1807 = scalar_lea.vmem %s23, 16
  %v1808 = vld [vmem:[%s1807] sm:$0xf]
  %v1809 = vld [vmem:[%s1807 + $0x4] sm:$0xf]
  %v1810 = vld [vmem:[%s1807 + $0x8] sm:$0xf]
  %v1811 = vld [vmem:[%s1807 + $0xc] sm:$0xf]
  %s1812 = scalar_lea.vmem %s25, 1
  %v1813 = vld [vmem:[%s1812] sm:$0x1]
  %v1815 = vlaneseq
  %v1816 = vshrl.u32 %v1815, 7
  %v1817 = vsub.s32 0, %v1816
  %v1818 = vrot.slane %v1813, %v1817
  %v1824 = vunpack.c.l.b16 %v1808
  %v1825 = vunpack.c.l.b16 %v1809
  %v1826 = vunpack.c.l.b16 %v1810
  %v1827 = vunpack.c.l.b16 %v1811
  %v1828 = vpack.c.b16 %v1825, %v1824
  %v1829 = vpack.c.b16 %v1827, %v1826
  %1832 = vmatprep.subr.bf16.mxu0 0
  %1833 = vmatpush1.bf16.msra.mxu0 0
  %1834 = vmatprep.subr.bf16.mxu0 0
  %1835 = vmatpush1.bf16.msra.mxu0 0
  %1836 = vmatprep.subr.bf16.mxu0 0
  %1837 = vmatpush1.bf16.msra.mxu0 0
  %1838 = vmatprep.subr.bf16.mxu0 0
  %1839 = vmatpush1.bf16.msra.mxu0 0
  %1840 = vmatprep.subr.bf16.mxu0 0
  %1841 = vmatpush1.bf16.msra.mxu0 0
  %1842 = vmatprep.subr.bf16.mxu0 0
  %1843 = vmatpush1.bf16.msra.mxu0 0
  %1844 = vmatprep.subr.bf16.mxu0 0
  %1845 = vmatpush1.bf16.msra.mxu0 %v1829
  %1846 = vmatprep.subr.bf16.mxu0 0
  %1847 = vmatpush1.bf16.msra.mxu0 %v1828
  %1848 = vmatprep.subr.bf16.mxu0 0
  %1849 = vmatpush2.bf16.msra.mxu0 0
  %1850 = vmatprep.subr.bf16.mxu0 0
  %1851 = vmatpush2.bf16.msra.mxu0 0
  %1852 = vmatprep.subr.bf16.mxu0 0
  %1853 = vmatpush2.bf16.msra.mxu0 0
  %1854 = vmatprep.subr.bf16.mxu0 0
  %1855 = vmatpush2.bf16.msra.mxu0 0
  %1856 = vmatprep.subr.bf16.mxu0 0
  %1857 = vmatpush2.bf16.msra.mxu0 0
  %1858 = vmatprep.subr.bf16.mxu0 0
  %1859 = vmatpush2.bf16.msra.mxu0 0
  %1860 = vmatprep.subr.bf16.mxu0 0
  %1861 = vmatpush2.bf16.msra.mxu0 0
  %1862 = vmatprep.subr.bf16.mxu0 0
  %1863 = vmatpush2.bf16.msra.mxu0 0
  %1864 = vmatprep.mubr.bf16.mxu0 0
  %1865 = vmatmul.mubr.bf16.gmra.mxu0 %v1698
  %v1866 = vpop.f32.mrf.mxu0
  %v1867 = vadd.f32 %v1818, %v1866
  %v1868 = vpop.f32.mrf.mxu0
  %v1869 = vpop.f32.mrf.mxu0
  %v1870 = vadd.f32 %v1818, %v1869
  %v1871 = vpop.f32.mrf.mxu0
  %1872 = vdwg.mxu0
  %s1873 = scalar_lea.vmem %s27, 16
  %v1874 = vld [vmem:[%s1873] sm:$0xf]
  %v1875 = vld [vmem:[%s1873 + $0x4] sm:$0xf]
  %v1876 = vld [vmem:[%s1873 + $0x8] sm:$0xf]
  %v1877 = vld [vmem:[%s1873 + $0xc] sm:$0xf]
  %s1878 = scalar_lea.vmem %s29, 1
  %v1879 = vld [vmem:[%s1878] sm:$0x1]
  %v1881 = vlaneseq
  %v1882 = vshrl.u32 %v1881, 7
  %v1883 = vsub.s32 0, %v1882
  %v1884 = vrot.slane %v1879, %v1883
  %v1890 = vunpack.c.l.b16 %v1874
  %v1891 = vunpack.c.l.b16 %v1875
  %v1892 = vunpack.c.l.b16 %v1876
  %v1893 = vunpack.c.l.b16 %v1877
  %v1894 = vpack.c.b16 %v1891, %v1890
  %v1895 = vpack.c.b16 %v1893, %v1892
  %1898 = vmatprep.subr.bf16.mxu0 0
  %1899 = vmatpush1.bf16.msra.mxu0 0
  %1900 = vmatprep.subr.bf16.mxu0 0
  %1901 = vmatpush1.bf16.msra.mxu0 0
  %1902 = vmatprep.subr.bf16.mxu0 0
  %1903 = vmatpush1.bf16.msra.mxu0 0
  %1904 = vmatprep.subr.bf16.mxu0 0
  %1905 = vmatpush1.bf16.msra.mxu0 0
  %1906 = vmatprep.subr.bf16.mxu0 0
  %1907 = vmatpush1.bf16.msra.mxu0 0
  %1908 = vmatprep.subr.bf16.mxu0 0
  %1909 = vmatpush1.bf16.msra.mxu0 0
  %1910 = vmatprep.subr.bf16.mxu0 0
  %1911 = vmatpush1.bf16.msra.mxu0 %v1895
  %1912 = vmatprep.subr.bf16.mxu0 0
  %1913 = vmatpush1.bf16.msra.mxu0 %v1894
  %1914 = vmatprep.subr.bf16.mxu0 0
  %1915 = vmatpush2.bf16.msra.mxu0 0
  %1916 = vmatprep.subr.bf16.mxu0 0
  %1917 = vmatpush2.bf16.msra.mxu0 0
  %1918 = vmatprep.subr.bf16.mxu0 0
  %1919 = vmatpush2.bf16.msra.mxu0 0
  %1920 = vmatprep.subr.bf16.mxu0 0
  %1921 = vmatpush2.bf16.msra.mxu0 0
  %1922 = vmatprep.subr.bf16.mxu0 0
  %1923 = vmatpush2.bf16.msra.mxu0 0
  %1924 = vmatprep.subr.bf16.mxu0 0
  %1925 = vmatpush2.bf16.msra.mxu0 0
  %1926 = vmatprep.subr.bf16.mxu0 0
  %1927 = vmatpush2.bf16.msra.mxu0 0
  %1928 = vmatprep.subr.bf16.mxu0 0
  %1929 = vmatpush2.bf16.msra.mxu0 0
  %1930 = vmatprep.mubr.bf16.mxu0 0
  %1931 = vmatmul.mubr.bf16.gmra.mxu0 %v1698
  %v1932 = vpop.f32.mrf.mxu0
  %v1933 = vadd.f32 %v1884, %v1932
  %v1934 = vpop.f32.mrf.mxu0
  %v1935 = vpop.f32.mrf.mxu0
  %v1936 = vadd.f32 %v1884, %v1935
  %v1937 = vpop.f32.mrf.mxu0
  %1938 = vdwg.mxu0
  %v1939 = vtanh.pop %v1933
  %v1940 = vtanh.pop %v1936
  %v1941 = vmul.f32 %v1735, %v472
  %v1942 = vmul.f32 %v1738, %v472
  %v1944 = vsel %vm162, %v1941, 0
  %v1947 = vsel %vm162, %v1942, 0
  %v1950 = vsel %vm162, %v1801, 0
  %v1953 = vsel %vm162, %v1804, 0
  %1955 = vmatprep.subr.mxu0 0.0
  %1956 = vmatpush1.xpose.msra.mxu0 0.0
  %1957 = vmatprep.subr.mxu0 0.0
  %1958 = vmatpush1.xpose.msra.mxu0 0.0
  %1959 = vmatprep.subr.mxu0 0.0
  %1960 = vmatpush1.xpose.msra.mxu0 0.0
  %1961 = vmatprep.subr.mxu0 0.0
  %1962 = vmatpush1.xpose.msra.mxu0 0.0
  %1963 = vmatprep.subr.mxu0 0.0
  %1964 = vmatpush1.xpose.msra.mxu0 0.0
  %1965 = vmatprep.subr.mxu0 0.0
  %1966 = vmatpush1.xpose.msra.mxu0 0.0
  %1967 = vmatprep.subr.mxu0 0.0
  %1968 = vmatpush1.xpose.msra.mxu0 0.0
  %1969 = vmatprep.subr.mxu0 0.0
  %1970 = vmatpush1.xpose.msra.mxu0 0.0
  %1971 = vmatprep.subr.mxu0 0.0
  %1972 = vmatpush1.xpose.msra.mxu0 0.0
  %1973 = vmatprep.subr.mxu0 0.0
  %1974 = vmatpush1.xpose.msra.mxu0 0.0
  %1975 = vmatprep.subr.mxu0 0.0
  %1976 = vmatpush1.xpose.msra.mxu0 0.0
  %1977 = vmatprep.subr.mxu0 0.0
  %1978 = vmatpush1.xpose.msra.mxu0 0.0
  %1979 = vmatprep.subr.mxu0 0.0
  %1980 = vmatpush1.xpose.msra.mxu0 0.0
  %1981 = vmatprep.subr.mxu0 0.0
  %1982 = vmatpush1.xpose.msra.mxu0 0.0
  %1983 = vmatprep.subr.mxu0 0.0
  %1984 = vmatpush1.xpose.msra.mxu0 %v1953
  %1985 = vmatprep.subr.mxu0 0.0
  %1986 = vmatpush1.xpose.msra.mxu0 %v1950
  %1987 = vmatprep.subr.mxu0 0.0
  %1988 = vmatpush2.xpose.msra.mxu0 0.0
  %1989 = vmatprep.subr.mxu0 0.0
  %1990 = vmatpush2.xpose.msra.mxu0 0.0
  %1991 = vmatprep.subr.mxu0 0.0
  %1992 = vmatpush2.xpose.msra.mxu0 0.0
  %1993 = vmatprep.subr.mxu0 0.0
  %1994 = vmatpush2.xpose.msra.mxu0 0.0
  %1995 = vmatprep.subr.mxu0 0.0
  %1996 = vmatpush2.xpose.msra.mxu0 0.0
  %1997 = vmatprep.subr.mxu0 0.0
  %1998 = vmatpush2.xpose.msra.mxu0 0.0
  %1999 = vmatprep.subr.mxu0 0.0
  %2000 = vmatpush2.xpose.msra.mxu0 0.0
  %2001 = vmatprep.subr.mxu0 0.0
  %2002 = vmatpush2.xpose.msra.mxu0 0.0
  %2003 = vmatprep.subr.mxu0 0.0
  %2004 = vmatpush2.xpose.msra.mxu0 0.0
  %2005 = vmatprep.subr.mxu0 0.0
  %2006 = vmatpush2.xpose.msra.mxu0 0.0
  %2007 = vmatprep.subr.mxu0 0.0
  %2008 = vmatpush2.xpose.msra.mxu0 0.0
  %2009 = vmatprep.subr.mxu0 0.0
  %2010 = vmatpush2.xpose.msra.mxu0 0.0
  %2011 = vmatprep.subr.mxu0 0.0
  %2012 = vmatpush2.xpose.msra.mxu0 0.0
  %2013 = vmatprep.subr.mxu0 0.0
  %2014 = vmatpush2.xpose.msra.mxu0 0.0
  %2015 = vmatprep.subr.mxu0 0.0
  %2016 = vmatpush2.xpose.msra.mxu0 0.0
  %2017 = vmatprep.subr.mxu0 0.0
  %2018 = vmatpush2.xpose.msra.mxu0 0.0
  %2019 = vmatprep.mubr.f32.mxu0 0.0
  %2020 = vmatmul.mubr.f32.gmra.mxu0 %v1944
  %v2021 = vpop.f32.mrf.mxu0
  %v2022 = vadd.f32 %v151, %v2021
  %v2023 = vpop.f32.mrf.mxu0
  %2024 = vmatprep.mubr.f32.mxu0 0.0
  %2025 = vmatmul.mubr.f32.gmra.mxu0 %v1947
  %v2026 = vpop.f32.mrf.mxu0
  %v2027 = vadd.f32 %v152, %v2026
  %v2028 = vpop.f32.mrf.mxu0
  %2029 = vdwg.mxu0
  %v2030 = vsel %vm563, %v2022, -inf
  %2031 = vmax.xlane.f32.xlu0 %v2030
  %v2032 = vpop.xlane.xlu0 %2031
  %v2033 = vsel %vm563, %v2027, -inf
  %2034 = vmax.xlane.f32.xlu0 %v2033
  %v2035 = vpop.xlane.xlu0 %2034
  %v2036 = vsub.f32 %v2022, %v2032
  %v2037 = vsub.f32 %v2027, %v2035
  %v2038 = vmul.f32 %v2036, 1.442695
  %v2039 = vpow.pop %v2038
  %v2040 = vmul.f32 %v2037, 1.442695
  %v2041 = vpow.pop %v2040
  %v2042 = vsel %vm563, %v2039, 0.0
  %2043 = vadd.xlane.f32.xlu0 %v2042
  %v2044 = vpop.xlane.xlu0 %2043
  %v2045 = vsel %vm563, %v2041, 0.0
  %2046 = vadd.xlane.f32.xlu0 %v2045
  %v2047 = vpop.xlane.xlu0 %2046
  %v2048 = vrcp.pop %v2044
  %v2049 = vmul.f32 %v2039, %v2048
  %v2050 = vrcp.pop %v2047
  %v2051 = vmul.f32 %v2041, %v2050
  %v2052 = vmul.f32 %v1867, %v472
  %v2053 = vmul.f32 %v1870, %v472
  %v2054 = vmul.f32 %v1735, %v592
  %v2055 = vmul.f32 %v1738, %v592
  %v2057 = vsel %vm162, %v2054, 0
  %v2060 = vsel %vm162, %v2055, 0
  %2062 = vmatprep.subr.mxu0 0.0
  %2063 = vmatpush1.xpose.msra.mxu0 0.0
  %2064 = vmatprep.subr.mxu0 0.0
  %2065 = vmatpush1.xpose.msra.mxu0 0.0
  %2066 = vmatprep.subr.mxu0 0.0
  %2067 = vmatpush1.xpose.msra.mxu0 0.0
  %2068 = vmatprep.subr.mxu0 0.0
  %2069 = vmatpush1.xpose.msra.mxu0 0.0
  %2070 = vmatprep.subr.mxu0 0.0
  %2071 = vmatpush1.xpose.msra.mxu0 0.0
  %2072 = vmatprep.subr.mxu0 0.0
  %2073 = vmatpush1.xpose.msra.mxu0 0.0
  %2074 = vmatprep.subr.mxu0 0.0
  %2075 = vmatpush1.xpose.msra.mxu0 0.0
  %2076 = vmatprep.subr.mxu0 0.0
  %2077 = vmatpush1.xpose.msra.mxu0 0.0
  %2078 = vmatprep.subr.mxu0 0.0
  %2079 = vmatpush1.xpose.msra.mxu0 0.0
  %2080 = vmatprep.subr.mxu0 0.0
  %2081 = vmatpush1.xpose.msra.mxu0 0.0
  %2082 = vmatprep.subr.mxu0 0.0
  %2083 = vmatpush1.xpose.msra.mxu0 0.0
  %2084 = vmatprep.subr.mxu0 0.0
  %2085 = vmatpush1.xpose.msra.mxu0 0.0
  %2086 = vmatprep.subr.mxu0 0.0
  %2087 = vmatpush1.xpose.msra.mxu0 0.0
  %2088 = vmatprep.subr.mxu0 0.0
  %2089 = vmatpush1.xpose.msra.mxu0 0.0
  %2090 = vmatprep.subr.mxu0 0.0
  %2091 = vmatpush1.xpose.msra.mxu0 %v1953
  %2092 = vmatprep.subr.mxu0 0.0
  %2093 = vmatpush1.xpose.msra.mxu0 %v1950
  %2094 = vmatprep.subr.mxu0 0.0
  %2095 = vmatpush2.xpose.msra.mxu0 0.0
  %2096 = vmatprep.subr.mxu0 0.0
  %2097 = vmatpush2.xpose.msra.mxu0 0.0
  %2098 = vmatprep.subr.mxu0 0.0
  %2099 = vmatpush2.xpose.msra.mxu0 0.0
  %2100 = vmatprep.subr.mxu0 0.0
  %2101 = vmatpush2.xpose.msra.mxu0 0.0
  %2102 = vmatprep.subr.mxu0 0.0
  %2103 = vmatpush2.xpose.msra.mxu0 0.0
  %2104 = vmatprep.subr.mxu0 0.0
  %2105 = vmatpush2.xpose.msra.mxu0 0.0
  %2106 = vmatprep.subr.mxu0 0.0
  %2107 = vmatpush2.xpose.msra.mxu0 0.0
  %2108 = vmatprep.subr.mxu0 0.0
  %2109 = vmatpush2.xpose.msra.mxu0 0.0
  %2110 = vmatprep.subr.mxu0 0.0
  %2111 = vmatpush2.xpose.msra.mxu0 0.0
  %2112 = vmatprep.subr.mxu0 0.0
  %2113 = vmatpush2.xpose.msra.mxu0 0.0
  %2114 = vmatprep.subr.mxu0 0.0
  %2115 = vmatpush2.xpose.msra.mxu0 0.0
  %2116 = vmatprep.subr.mxu0 0.0
  %2117 = vmatpush2.xpose.msra.mxu0 0.0
  %2118 = vmatprep.subr.mxu0 0.0
  %2119 = vmatpush2.xpose.msra.mxu0 0.0
  %2120 = vmatprep.subr.mxu0 0.0
  %2121 = vmatpush2.xpose.msra.mxu0 0.0
  %2122 = vmatprep.subr.mxu0 0.0
  %2123 = vmatpush2.xpose.msra.mxu0 0.0
  %2124 = vmatprep.subr.mxu0 0.0
  %2125 = vmatpush2.xpose.msra.mxu0 0.0
  %2126 = vmatprep.mubr.f32.mxu0 0.0
  %2127 = vmatmul.mubr.f32.gmra.mxu0 %v2057
  %v2128 = vpop.f32.mrf.mxu0
  %v2129 = vadd.f32 %v151, %v2128
  %v2130 = vpop.f32.mrf.mxu0
  %2131 = vmatprep.mubr.f32.mxu0 0.0
  %2132 = vmatmul.mubr.f32.gmra.mxu0 %v2060
  %v2133 = vpop.f32.mrf.mxu0
  %v2134 = vadd.f32 %v152, %v2133
  %v2135 = vpop.f32.mrf.mxu0
  %2136 = vdwg.mxu0
  %v2137 = vsel %vm563, %v2129, -inf
  %2138 = vmax.xlane.f32.xlu0 %v2137
  %v2139 = vpop.xlane.xlu0 %2138
  %v2140 = vsel %vm563, %v2134, -inf
  %2141 = vmax.xlane.f32.xlu0 %v2140
  %v2142 = vpop.xlane.xlu0 %2141
  %v2143 = vsub.f32 %v2129, %v2139
  %v2144 = vsub.f32 %v2134, %v2142
  %v2145 = vmul.f32 %v2143, 1.442695
  %v2146 = vpow.pop %v2145
  %v2147 = vmul.f32 %v2144, 1.442695
  %v2148 = vpow.pop %v2147
  %v2149 = vsel %vm563, %v2146, 0.0
  %2150 = vadd.xlane.f32.xlu0 %v2149
  %v2151 = vpop.xlane.xlu0 %2150
  %v2152 = vsel %vm563, %v2148, 0.0
  %2153 = vadd.xlane.f32.xlu0 %v2152
  %v2154 = vpop.xlane.xlu0 %2153
  %v2155 = vrcp.pop %v2151
  %v2156 = vmul.f32 %v2146, %v2155
  %v2157 = vrcp.pop %v2154
  %v2158 = vmul.f32 %v2148, %v2157
  %v2159 = vmul.f32 %v1867, %v592
  %v2160 = vmul.f32 %v1870, %v592
  %v2162 = vsel %vm563, %v2156, 0
  %v2165 = vsel %vm563, %v2158, 0
  %2167 = vmatprep.subr.mxu0 0.0
  %2168 = vmatpush1.msra.mxu0 0.0
  %2169 = vmatprep.subr.mxu0 0.0
  %2170 = vmatpush1.msra.mxu0 0.0
  %2171 = vmatprep.subr.mxu0 0.0
  %2172 = vmatpush1.msra.mxu0 0.0
  %2173 = vmatprep.subr.mxu0 0.0
  %2174 = vmatpush1.msra.mxu0 0.0
  %2175 = vmatprep.subr.mxu0 0.0
  %2176 = vmatpush1.msra.mxu0 0.0
  %2177 = vmatprep.subr.mxu0 0.0
  %2178 = vmatpush1.msra.mxu0 0.0
  %2179 = vmatprep.subr.mxu0 0.0
  %2180 = vmatpush1.msra.mxu0 0.0
  %2181 = vmatprep.subr.mxu0 0.0
  %2182 = vmatpush1.msra.mxu0 0.0
  %2183 = vmatprep.subr.mxu0 0.0
  %2184 = vmatpush1.msra.mxu0 0.0
  %2185 = vmatprep.subr.mxu0 0.0
  %2186 = vmatpush1.msra.mxu0 0.0
  %2187 = vmatprep.subr.mxu0 0.0
  %2188 = vmatpush1.msra.mxu0 0.0
  %2189 = vmatprep.subr.mxu0 0.0
  %2190 = vmatpush1.msra.mxu0 0.0
  %2191 = vmatprep.subr.mxu0 0.0
  %2192 = vmatpush1.msra.mxu0 0.0
  %2193 = vmatprep.subr.mxu0 0.0
  %2194 = vmatpush1.msra.mxu0 0.0
  %2195 = vmatprep.subr.mxu0 0.0
  %2196 = vmatpush1.msra.mxu0 %v2160
  %2197 = vmatprep.subr.mxu0 0.0
  %2198 = vmatpush1.msra.mxu0 %v2159
  %2199 = vmatprep.subr.mxu0 0.0
  %2200 = vmatpush2.msra.mxu0 0.0
  %2201 = vmatprep.subr.mxu0 0.0
  %2202 = vmatpush2.msra.mxu0 0.0
  %2203 = vmatprep.subr.mxu0 0.0
  %2204 = vmatpush2.msra.mxu0 0.0
  %2205 = vmatprep.subr.mxu0 0.0
  %2206 = vmatpush2.msra.mxu0 0.0
  %2207 = vmatprep.subr.mxu0 0.0
  %2208 = vmatpush2.msra.mxu0 0.0
  %2209 = vmatprep.subr.mxu0 0.0
  %2210 = vmatpush2.msra.mxu0 0.0
  %2211 = vmatprep.subr.mxu0 0.0
  %2212 = vmatpush2.msra.mxu0 0.0
  %2213 = vmatprep.subr.mxu0 0.0
  %2214 = vmatpush2.msra.mxu0 0.0
  %2215 = vmatprep.subr.mxu0 0.0
  %2216 = vmatpush2.msra.mxu0 0.0
  %2217 = vmatprep.subr.mxu0 0.0
  %2218 = vmatpush2.msra.mxu0 0.0
  %2219 = vmatprep.subr.mxu0 0.0
  %2220 = vmatpush2.msra.mxu0 0.0
  %2221 = vmatprep.subr.mxu0 0.0
  %2222 = vmatpush2.msra.mxu0 0.0
  %2223 = vmatprep.subr.mxu0 0.0
  %2224 = vmatpush2.msra.mxu0 0.0
  %2225 = vmatprep.subr.mxu0 0.0
  %2226 = vmatpush2.msra.mxu0 0.0
  %2227 = vmatprep.subr.mxu0 0.0
  %2228 = vmatpush2.msra.mxu0 0.0
  %2229 = vmatprep.subr.mxu0 0.0
  %2230 = vmatpush2.msra.mxu0 0.0
  %2231 = vmatprep.mubr.f32.mxu0 0.0
  %2232 = vmatmul.mubr.f32.gmra.mxu0 %v2162
  %v2233 = vpop.f32.mrf.mxu0
  %v2234 = vadd.f32 0.0, %v2233
  %v2235 = vpop.f32.mrf.mxu0
  %2236 = vmatprep.mubr.f32.mxu0 0.0
  %2237 = vmatmul.mubr.f32.gmra.mxu0 %v2165
  %v2238 = vpop.f32.mrf.mxu0
  %v2239 = vadd.f32 0.0, %v2238
  %v2240 = vpop.f32.mrf.mxu0
  %2241 = vdwg.mxu0
  %v2243 = vsel %vm563, %v2049, 0
  %v2246 = vsel %vm563, %v2051, 0
  %2248 = vmatprep.subr.mxu0 0.0
  %2249 = vmatpush1.msra.mxu0 0.0
  %2250 = vmatprep.subr.mxu0 0.0
  %2251 = vmatpush1.msra.mxu0 0.0
  %2252 = vmatprep.subr.mxu0 0.0
  %2253 = vmatpush1.msra.mxu0 0.0
  %2254 = vmatprep.subr.mxu0 0.0
  %2255 = vmatpush1.msra.mxu0 0.0
  %2256 = vmatprep.subr.mxu0 0.0
  %2257 = vmatpush1.msra.mxu0 0.0
  %2258 = vmatprep.subr.mxu0 0.0
  %2259 = vmatpush1.msra.mxu0 0.0
  %2260 = vmatprep.subr.mxu0 0.0
  %2261 = vmatpush1.msra.mxu0 0.0
  %2262 = vmatprep.subr.mxu0 0.0
  %2263 = vmatpush1.msra.mxu0 0.0
  %2264 = vmatprep.subr.mxu0 0.0
  %2265 = vmatpush1.msra.mxu0 0.0
  %2266 = vmatprep.subr.mxu0 0.0
  %2267 = vmatpush1.msra.mxu0 0.0
  %2268 = vmatprep.subr.mxu0 0.0
  %2269 = vmatpush1.msra.mxu0 0.0
  %2270 = vmatprep.subr.mxu0 0.0
  %2271 = vmatpush1.msra.mxu0 0.0
  %2272 = vmatprep.subr.mxu0 0.0
  %2273 = vmatpush1.msra.mxu0 0.0
  %2274 = vmatprep.subr.mxu0 0.0
  %2275 = vmatpush1.msra.mxu0 0.0
  %2276 = vmatprep.subr.mxu0 0.0
  %2277 = vmatpush1.msra.mxu0 %v2053
  %2278 = vmatprep.subr.mxu0 0.0
  %2279 = vmatpush1.msra.mxu0 %v2052
  %2280 = vmatprep.subr.mxu0 0.0
  %2281 = vmatpush2.msra.mxu0 0.0
  %2282 = vmatprep.subr.mxu0 0.0
  %2283 = vmatpush2.msra.mxu0 0.0
  %2284 = vmatprep.subr.mxu0 0.0
  %2285 = vmatpush2.msra.mxu0 0.0
  %2286 = vmatprep.subr.mxu0 0.0
  %2287 = vmatpush2.msra.mxu0 0.0
  %2288 = vmatprep.subr.mxu0 0.0
  %2289 = vmatpush2.msra.mxu0 0.0
  %2290 = vmatprep.subr.mxu0 0.0
  %2291 = vmatpush2.msra.mxu0 0.0
  %2292 = vmatprep.subr.mxu0 0.0
  %2293 = vmatpush2.msra.mxu0 0.0
  %2294 = vmatprep.subr.mxu0 0.0
  %2295 = vmatpush2.msra.mxu0 0.0
  %2296 = vmatprep.subr.mxu0 0.0
  %2297 = vmatpush2.msra.mxu0 0.0
  %2298 = vmatprep.subr.mxu0 0.0
  %2299 = vmatpush2.msra.mxu0 0.0
  %2300 = vmatprep.subr.mxu0 0.0
  %2301 = vmatpush2.msra.mxu0 0.0
  %2302 = vmatprep.subr.mxu0 0.0
  %2303 = vmatpush2.msra.mxu0 0.0
  %2304 = vmatprep.subr.mxu0 0.0
  %2305 = vmatpush2.msra.mxu0 0.0
  %2306 = vmatprep.subr.mxu0 0.0
  %2307 = vmatpush2.msra.mxu0 0.0
  %2308 = vmatprep.subr.mxu0 0.0
  %2309 = vmatpush2.msra.mxu0 0.0
  %2310 = vmatprep.subr.mxu0 0.0
  %2311 = vmatpush2.msra.mxu0 0.0
  %2312 = vmatprep.mubr.f32.mxu0 0.0
  %2313 = vmatmul.mubr.f32.gmra.mxu0 %v2243
  %v2314 = vpop.f32.mrf.mxu0
  %v2315 = vadd.f32 %v2234, %v2314
  %v2316 = vpop.f32.mrf.mxu0
  %2317 = vmatprep.mubr.f32.mxu0 0.0
  %2318 = vmatmul.mubr.f32.gmra.mxu0 %v2246
  %v2319 = vpop.f32.mrf.mxu0
  %v2320 = vadd.f32 %v2239, %v2319
  %v2321 = vpop.f32.mrf.mxu0
  %2322 = vdwg.mxu0
  %v2323 = vmul.f32 %v1735, %v867
  %v2324 = vmul.f32 %v1738, %v867
  %v2326 = vsel %vm162, %v2323, 0
  %v2329 = vsel %vm162, %v2324, 0
  %2331 = vmatprep.subr.mxu0 0.0
  %2332 = vmatpush1.xpose.msra.mxu0 0.0
  %2333 = vmatprep.subr.mxu0 0.0
  %2334 = vmatpush1.xpose.msra.mxu0 0.0
  %2335 = vmatprep.subr.mxu0 0.0
  %2336 = vmatpush1.xpose.msra.mxu0 0.0
  %2337 = vmatprep.subr.mxu0 0.0
  %2338 = vmatpush1.xpose.msra.mxu0 0.0
  %2339 = vmatprep.subr.mxu0 0.0
  %2340 = vmatpush1.xpose.msra.mxu0 0.0
  %2341 = vmatprep.subr.mxu0 0.0
  %2342 = vmatpush1.xpose.msra.mxu0 0.0
  %2343 = vmatprep.subr.mxu0 0.0
  %2344 = vmatpush1.xpose.msra.mxu0 0.0
  %2345 = vmatprep.subr.mxu0 0.0
  %2346 = vmatpush1.xpose.msra.mxu0 0.0
  %2347 = vmatprep.subr.mxu0 0.0
  %2348 = vmatpush1.xpose.msra.mxu0 0.0
  %2349 = vmatprep.subr.mxu0 0.0
  %2350 = vmatpush1.xpose.msra.mxu0 0.0
  %2351 = vmatprep.subr.mxu0 0.0
  %2352 = vmatpush1.xpose.msra.mxu0 0.0
  %2353 = vmatprep.subr.mxu0 0.0
  %2354 = vmatpush1.xpose.msra.mxu0 0.0
  %2355 = vmatprep.subr.mxu0 0.0
  %2356 = vmatpush1.xpose.msra.mxu0 0.0
  %2357 = vmatprep.subr.mxu0 0.0
  %2358 = vmatpush1.xpose.msra.mxu0 0.0
  %2359 = vmatprep.subr.mxu0 0.0
  %2360 = vmatpush1.xpose.msra.mxu0 %v1953
  %2361 = vmatprep.subr.mxu0 0.0
  %2362 = vmatpush1.xpose.msra.mxu0 %v1950
  %2363 = vmatprep.subr.mxu0 0.0
  %2364 = vmatpush2.xpose.msra.mxu0 0.0
  %2365 = vmatprep.subr.mxu0 0.0
  %2366 = vmatpush2.xpose.msra.mxu0 0.0
  %2367 = vmatprep.subr.mxu0 0.0
  %2368 = vmatpush2.xpose.msra.mxu0 0.0
  %2369 = vmatprep.subr.mxu0 0.0
  %2370 = vmatpush2.xpose.msra.mxu0 0.0
  %2371 = vmatprep.subr.mxu0 0.0
  %2372 = vmatpush2.xpose.msra.mxu0 0.0
  %2373 = vmatprep.subr.mxu0 0.0
  %2374 = vmatpush2.xpose.msra.mxu0 0.0
  %2375 = vmatprep.subr.mxu0 0.0
  %2376 = vmatpush2.xpose.msra.mxu0 0.0
  %2377 = vmatprep.subr.mxu0 0.0
  %2378 = vmatpush2.xpose.msra.mxu0 0.0
  %2379 = vmatprep.subr.mxu0 0.0
  %2380 = vmatpush2.xpose.msra.mxu0 0.0
  %2381 = vmatprep.subr.mxu0 0.0
  %2382 = vmatpush2.xpose.msra.mxu0 0.0
  %2383 = vmatprep.subr.mxu0 0.0
  %2384 = vmatpush2.xpose.msra.mxu0 0.0
  %2385 = vmatprep.subr.mxu0 0.0
  %2386 = vmatpush2.xpose.msra.mxu0 0.0
  %2387 = vmatprep.subr.mxu0 0.0
  %2388 = vmatpush2.xpose.msra.mxu0 0.0
  %2389 = vmatprep.subr.mxu0 0.0
  %2390 = vmatpush2.xpose.msra.mxu0 0.0
  %2391 = vmatprep.subr.mxu0 0.0
  %2392 = vmatpush2.xpose.msra.mxu0 0.0
  %2393 = vmatprep.subr.mxu0 0.0
  %2394 = vmatpush2.xpose.msra.mxu0 0.0
  %2395 = vmatprep.mubr.f32.mxu0 0.0
  %2396 = vmatmul.mubr.f32.gmra.mxu0 %v2326
  %v2397 = vpop.f32.mrf.mxu0
  %v2398 = vadd.f32 %v151, %v2397
  %v2399 = vpop.f32.mrf.mxu0
  %2400 = vmatprep.mubr.f32.mxu0 0.0
  %2401 = vmatmul.mubr.f32.gmra.mxu0 %v2329
  %v2402 = vpop.f32.mrf.mxu0
  %v2403 = vadd.f32 %v152, %v2402
  %v2404 = vpop.f32.mrf.mxu0
  %2405 = vdwg.mxu0
  %v2406 = vsel %vm563, %v2398, -inf
  %2407 = vmax.xlane.f32.xlu0 %v2406
  %v2408 = vpop.xlane.xlu0 %2407
  %v2409 = vsel %vm563, %v2403, -inf
  %2410 = vmax.xlane.f32.xlu0 %v2409
  %v2411 = vpop.xlane.xlu0 %2410
  %v2412 = vsub.f32 %v2398, %v2408
  %v2413 = vsub.f32 %v2403, %v2411
  %v2414 = vmul.f32 %v2412, 1.442695
  %v2415 = vpow.pop %v2414
  %v2416 = vmul.f32 %v2413, 1.442695
  %v2417 = vpow.pop %v2416
  %v2418 = vsel %vm563, %v2415, 0.0
  %2419 = vadd.xlane.f32.xlu0 %v2418
  %v2420 = vpop.xlane.xlu0 %2419
  %v2421 = vsel %vm563, %v2417, 0.0
  %2422 = vadd.xlane.f32.xlu0 %v2421
  %v2423 = vpop.xlane.xlu0 %2422
  %v2424 = vrcp.pop %v2420
  %v2425 = vmul.f32 %v2415, %v2424
  %v2426 = vrcp.pop %v2423
  %v2427 = vmul.f32 %v2417, %v2426
  %v2428 = vmul.f32 %v1867, %v867
  %v2429 = vmul.f32 %v1870, %v867
  %v2431 = vsel %vm563, %v2425, 0
  %v2434 = vsel %vm563, %v2427, 0
  %2436 = vmatprep.subr.mxu0 0.0
  %2437 = vmatpush1.msra.mxu0 0.0
  %2438 = vmatprep.subr.mxu0 0.0
  %2439 = vmatpush1.msra.mxu0 0.0
  %2440 = vmatprep.subr.mxu0 0.0
  %2441 = vmatpush1.msra.mxu0 0.0
  %2442 = vmatprep.subr.mxu0 0.0
  %2443 = vmatpush1.msra.mxu0 0.0
  %2444 = vmatprep.subr.mxu0 0.0
  %2445 = vmatpush1.msra.mxu0 0.0
  %2446 = vmatprep.subr.mxu0 0.0
  %2447 = vmatpush1.msra.mxu0 0.0
  %2448 = vmatprep.subr.mxu0 0.0
  %2449 = vmatpush1.msra.mxu0 0.0
  %2450 = vmatprep.subr.mxu0 0.0
  %2451 = vmatpush1.msra.mxu0 0.0
  %2452 = vmatprep.subr.mxu0 0.0
  %2453 = vmatpush1.msra.mxu0 0.0
  %2454 = vmatprep.subr.mxu0 0.0
  %2455 = vmatpush1.msra.mxu0 0.0
  %2456 = vmatprep.subr.mxu0 0.0
  %2457 = vmatpush1.msra.mxu0 0.0
  %2458 = vmatprep.subr.mxu0 0.0
  %2459 = vmatpush1.msra.mxu0 0.0
  %2460 = vmatprep.subr.mxu0 0.0
  %2461 = vmatpush1.msra.mxu0 0.0
  %2462 = vmatprep.subr.mxu0 0.0
  %2463 = vmatpush1.msra.mxu0 0.0
  %2464 = vmatprep.subr.mxu0 0.0
  %2465 = vmatpush1.msra.mxu0 %v2429
  %2466 = vmatprep.subr.mxu0 0.0
  %2467 = vmatpush1.msra.mxu0 %v2428
  %2468 = vmatprep.subr.mxu0 0.0
  %2469 = vmatpush2.msra.mxu0 0.0
  %2470 = vmatprep.subr.mxu0 0.0
  %2471 = vmatpush2.msra.mxu0 0.0
  %2472 = vmatprep.subr.mxu0 0.0
  %2473 = vmatpush2.msra.mxu0 0.0
  %2474 = vmatprep.subr.mxu0 0.0
  %2475 = vmatpush2.msra.mxu0 0.0
  %2476 = vmatprep.subr.mxu0 0.0
  %2477 = vmatpush2.msra.mxu0 0.0
  %2478 = vmatprep.subr.mxu0 0.0
  %2479 = vmatpush2.msra.mxu0 0.0
  %2480 = vmatprep.subr.mxu0 0.0
  %2481 = vmatpush2.msra.mxu0 0.0
  %2482 = vmatprep.subr.mxu0 0.0
  %2483 = vmatpush2.msra.mxu0 0.0
  %2484 = vmatprep.subr.mxu0 0.0
  %2485 = vmatpush2.msra.mxu0 0.0
  %2486 = vmatprep.subr.mxu0 0.0
  %2487 = vmatpush2.msra.mxu0 0.0
  %2488 = vmatprep.subr.mxu0 0.0
  %2489 = vmatpush2.msra.mxu0 0.0
  %2490 = vmatprep.subr.mxu0 0.0
  %2491 = vmatpush2.msra.mxu0 0.0
  %2492 = vmatprep.subr.mxu0 0.0
  %2493 = vmatpush2.msra.mxu0 0.0
  %2494 = vmatprep.subr.mxu0 0.0
  %2495 = vmatpush2.msra.mxu0 0.0
  %2496 = vmatprep.subr.mxu0 0.0
  %2497 = vmatpush2.msra.mxu0 0.0
  %2498 = vmatprep.subr.mxu0 0.0
  %2499 = vmatpush2.msra.mxu0 0.0
  %2500 = vmatprep.mubr.f32.mxu0 0.0
  %2501 = vmatmul.mubr.f32.gmra.mxu0 %v2431
  %v2502 = vpop.f32.mrf.mxu0
  %v2503 = vadd.f32 0.0, %v2502
  %v2504 = vpop.f32.mrf.mxu0
  %2505 = vmatprep.mubr.f32.mxu0 0.0
  %2506 = vmatmul.mubr.f32.gmra.mxu0 %v2434
  %v2507 = vpop.f32.mrf.mxu0
  %v2508 = vadd.f32 0.0, %v2507
  %v2509 = vpop.f32.mrf.mxu0
  %2510 = vdwg.mxu0
  %v2511 = vadd.f32 %v2315, %v2503
  %v2512 = vadd.f32 %v2320, %v2508
  %v2513 = vmul.f32 %v1735, %v1063
  %v2514 = vmul.f32 %v1738, %v1063
  %v2516 = vsel %vm162, %v2513, 0
  %v2519 = vsel %vm162, %v2514, 0
  %2521 = vmatprep.subr.mxu0 0.0
  %2522 = vmatpush1.xpose.msra.mxu0 0.0
  %2523 = vmatprep.subr.mxu0 0.0
  %2524 = vmatpush1.xpose.msra.mxu0 0.0
  %2525 = vmatprep.subr.mxu0 0.0
  %2526 = vmatpush1.xpose.msra.mxu0 0.0
  %2527 = vmatprep.subr.mxu0 0.0
  %2528 = vmatpush1.xpose.msra.mxu0 0.0
  %2529 = vmatprep.subr.mxu0 0.0
  %2530 = vmatpush1.xpose.msra.mxu0 0.0
  %2531 = vmatprep.subr.mxu0 0.0
  %2532 = vmatpush1.xpose.msra.mxu0 0.0
  %2533 = vmatprep.subr.mxu0 0.0
  %2534 = vmatpush1.xpose.msra.mxu0 0.0
  %2535 = vmatprep.subr.mxu0 0.0
  %2536 = vmatpush1.xpose.msra.mxu0 0.0
  %2537 = vmatprep.subr.mxu0 0.0
  %2538 = vmatpush1.xpose.msra.mxu0 0.0
  %2539 = vmatprep.subr.mxu0 0.0
  %2540 = vmatpush1.xpose.msra.mxu0 0.0
  %2541 = vmatprep.subr.mxu0 0.0
  %2542 = vmatpush1.xpose.msra.mxu0 0.0
  %2543 = vmatprep.subr.mxu0 0.0
  %2544 = vmatpush1.xpose.msra.mxu0 0.0
  %2545 = vmatprep.subr.mxu0 0.0
  %2546 = vmatpush1.xpose.msra.mxu0 0.0
  %2547 = vmatprep.subr.mxu0 0.0
  %2548 = vmatpush1.xpose.msra.mxu0 0.0
  %2549 = vmatprep.subr.mxu0 0.0
  %2550 = vmatpush1.xpose.msra.mxu0 %v1953
  %2551 = vmatprep.subr.mxu0 0.0
  %2552 = vmatpush1.xpose.msra.mxu0 %v1950
  %2553 = vmatprep.subr.mxu0 0.0
  %2554 = vmatpush2.xpose.msra.mxu0 0.0
  %2555 = vmatprep.subr.mxu0 0.0
  %2556 = vmatpush2.xpose.msra.mxu0 0.0
  %2557 = vmatprep.subr.mxu0 0.0
  %2558 = vmatpush2.xpose.msra.mxu0 0.0
  %2559 = vmatprep.subr.mxu0 0.0
  %2560 = vmatpush2.xpose.msra.mxu0 0.0
  %2561 = vmatprep.subr.mxu0 0.0
  %2562 = vmatpush2.xpose.msra.mxu0 0.0
  %2563 = vmatprep.subr.mxu0 0.0
  %2564 = vmatpush2.xpose.msra.mxu0 0.0
  %2565 = vmatprep.subr.mxu0 0.0
  %2566 = vmatpush2.xpose.msra.mxu0 0.0
  %2567 = vmatprep.subr.mxu0 0.0
  %2568 = vmatpush2.xpose.msra.mxu0 0.0
  %2569 = vmatprep.subr.mxu0 0.0
  %2570 = vmatpush2.xpose.msra.mxu0 0.0
  %2571 = vmatprep.subr.mxu0 0.0
  %2572 = vmatpush2.xpose.msra.mxu0 0.0
  %2573 = vmatprep.subr.mxu0 0.0
  %2574 = vmatpush2.xpose.msra.mxu0 0.0
  %2575 = vmatprep.subr.mxu0 0.0
  %2576 = vmatpush2.xpose.msra.mxu0 0.0
  %2577 = vmatprep.subr.mxu0 0.0
  %2578 = vmatpush2.xpose.msra.mxu0 0.0
  %2579 = vmatprep.subr.mxu0 0.0
  %2580 = vmatpush2.xpose.msra.mxu0 0.0
  %2581 = vmatprep.subr.mxu0 0.0
  %2582 = vmatpush2.xpose.msra.mxu0 0.0
  %2583 = vmatprep.subr.mxu0 0.0
  %2584 = vmatpush2.xpose.msra.mxu0 0.0
  %2585 = vmatprep.mubr.f32.mxu0 0.0
  %2586 = vmatmul.mubr.f32.gmra.mxu0 %v2516
  %v2587 = vpop.f32.mrf.mxu0
  %v2588 = vadd.f32 %v151, %v2587
  %v2589 = vpop.f32.mrf.mxu0
  %2590 = vmatprep.mubr.f32.mxu0 0.0
  %2591 = vmatmul.mubr.f32.gmra.mxu0 %v2519
  %v2592 = vpop.f32.mrf.mxu0
  %v2593 = vadd.f32 %v152, %v2592
  %v2594 = vpop.f32.mrf.mxu0
  %2595 = vdwg.mxu0
  %v2596 = vsel %vm563, %v2588, -inf
  %2597 = vmax.xlane.f32.xlu0 %v2596
  %v2598 = vpop.xlane.xlu0 %2597
  %v2599 = vsel %vm563, %v2593, -inf
  %2600 = vmax.xlane.f32.xlu0 %v2599
  %v2601 = vpop.xlane.xlu0 %2600
  %v2602 = vsub.f32 %v2588, %v2598
  %v2603 = vsub.f32 %v2593, %v2601
  %v2604 = vmul.f32 %v2602, 1.442695
  %v2605 = vpow.pop %v2604
  %v2606 = vmul.f32 %v2603, 1.442695
  %v2607 = vpow.pop %v2606
  %v2608 = vsel %vm563, %v2605, 0.0
  %2609 = vadd.xlane.f32.xlu0 %v2608
  %v2610 = vpop.xlane.xlu0 %2609
  %v2611 = vsel %vm563, %v2607, 0.0
  %2612 = vadd.xlane.f32.xlu0 %v2611
  %v2613 = vpop.xlane.xlu0 %2612
  %v2614 = vrcp.pop %v2610
  %v2615 = vmul.f32 %v2605, %v2614
  %v2616 = vrcp.pop %v2613
  %v2617 = vmul.f32 %v2607, %v2616
  %v2618 = vmul.f32 %v1867, %v1063
  %v2619 = vmul.f32 %v1870, %v1063
  %v2621 = vsel %vm563, %v2615, 0
  %v2624 = vsel %vm563, %v2617, 0
  %2626 = vmatprep.subr.mxu0 0.0
  %2627 = vmatpush1.msra.mxu0 0.0
  %2628 = vmatprep.subr.mxu0 0.0
  %2629 = vmatpush1.msra.mxu0 0.0
  %2630 = vmatprep.subr.mxu0 0.0
  %2631 = vmatpush1.msra.mxu0 0.0
  %2632 = vmatprep.subr.mxu0 0.0
  %2633 = vmatpush1.msra.mxu0 0.0
  %2634 = vmatprep.subr.mxu0 0.0
  %2635 = vmatpush1.msra.mxu0 0.0
  %2636 = vmatprep.subr.mxu0 0.0
  %2637 = vmatpush1.msra.mxu0 0.0
  %2638 = vmatprep.subr.mxu0 0.0
  %2639 = vmatpush1.msra.mxu0 0.0
  %2640 = vmatprep.subr.mxu0 0.0
  %2641 = vmatpush1.msra.mxu0 0.0
  %2642 = vmatprep.subr.mxu0 0.0
  %2643 = vmatpush1.msra.mxu0 0.0
  %2644 = vmatprep.subr.mxu0 0.0
  %2645 = vmatpush1.msra.mxu0 0.0
  %2646 = vmatprep.subr.mxu0 0.0
  %2647 = vmatpush1.msra.mxu0 0.0
  %2648 = vmatprep.subr.mxu0 0.0
  %2649 = vmatpush1.msra.mxu0 0.0
  %2650 = vmatprep.subr.mxu0 0.0
  %2651 = vmatpush1.msra.mxu0 0.0
  %2652 = vmatprep.subr.mxu0 0.0
  %2653 = vmatpush1.msra.mxu0 0.0
  %2654 = vmatprep.subr.mxu0 0.0
  %2655 = vmatpush1.msra.mxu0 %v2619
  %2656 = vmatprep.subr.mxu0 0.0
  %2657 = vmatpush1.msra.mxu0 %v2618
  %2658 = vmatprep.subr.mxu0 0.0
  %2659 = vmatpush2.msra.mxu0 0.0
  %2660 = vmatprep.subr.mxu0 0.0
  %2661 = vmatpush2.msra.mxu0 0.0
  %2662 = vmatprep.subr.mxu0 0.0
  %2663 = vmatpush2.msra.mxu0 0.0
  %2664 = vmatprep.subr.mxu0 0.0
  %2665 = vmatpush2.msra.mxu0 0.0
  %2666 = vmatprep.subr.mxu0 0.0
  %2667 = vmatpush2.msra.mxu0 0.0
  %2668 = vmatprep.subr.mxu0 0.0
  %2669 = vmatpush2.msra.mxu0 0.0
  %2670 = vmatprep.subr.mxu0 0.0
  %2671 = vmatpush2.msra.mxu0 0.0
  %2672 = vmatprep.subr.mxu0 0.0
  %2673 = vmatpush2.msra.mxu0 0.0
  %2674 = vmatprep.subr.mxu0 0.0
  %2675 = vmatpush2.msra.mxu0 0.0
  %2676 = vmatprep.subr.mxu0 0.0
  %2677 = vmatpush2.msra.mxu0 0.0
  %2678 = vmatprep.subr.mxu0 0.0
  %2679 = vmatpush2.msra.mxu0 0.0
  %2680 = vmatprep.subr.mxu0 0.0
  %2681 = vmatpush2.msra.mxu0 0.0
  %2682 = vmatprep.subr.mxu0 0.0
  %2683 = vmatpush2.msra.mxu0 0.0
  %2684 = vmatprep.subr.mxu0 0.0
  %2685 = vmatpush2.msra.mxu0 0.0
  %2686 = vmatprep.subr.mxu0 0.0
  %2687 = vmatpush2.msra.mxu0 0.0
  %2688 = vmatprep.subr.mxu0 0.0
  %2689 = vmatpush2.msra.mxu0 0.0
  %2690 = vmatprep.mubr.f32.mxu0 0.0
  %2691 = vmatmul.mubr.f32.gmra.mxu0 %v2621
  %v2692 = vpop.f32.mrf.mxu0
  %v2693 = vadd.f32 0.0, %v2692
  %v2694 = vpop.f32.mrf.mxu0
  %2695 = vmatprep.mubr.f32.mxu0 0.0
  %2696 = vmatmul.mubr.f32.gmra.mxu0 %v2624
  %v2697 = vpop.f32.mrf.mxu0
  %v2698 = vadd.f32 0.0, %v2697
  %v2699 = vpop.f32.mrf.mxu0
  %2700 = vdwg.mxu0
  %v2701 = vadd.f32 %v2511, %v2693
  %v2702 = vadd.f32 %v2512, %v2698
  %v2703 = vpack.c.bf16 %v2702, %v2701
  %s2704 = scalar_lea.vmem %s31, 16
  %v2705 = vld [vmem:[%s2704] sm:$0xf]
  %v2706 = vld [vmem:[%s2704 + $0x4] sm:$0xf]
  %v2707 = vld [vmem:[%s2704 + $0x8] sm:$0xf]
  %v2708 = vld [vmem:[%s2704 + $0xc] sm:$0xf]
  %v2709 = vpack.c.bf16 %v1940, %v1939
  %s2710 = scalar_lea.vmem %s33, 8
  %v2711 = vld [vmem:[%s2710] sm:$0xf]
  %v2712 = vld [vmem:[%s2710 + $0x4] sm:$0xf]
  %v2715 = vunpack.c.l.b16 %v2711
  %v2716 = vunpack.c.l.b16 %v2712
  %v2717 = vpack.c.b16 %v2716, %v2715
  %v2720 = vsel %vm563, %v2709, 0
  %2722 = vmatprep.subr.bf16.mxu0 0
  %2723 = vmatpush1.bf16.msra.mxu0 0
  %2724 = vmatprep.subr.bf16.mxu0 0
  %2725 = vmatpush1.bf16.msra.mxu0 0
  %2726 = vmatprep.subr.bf16.mxu0 0
  %2727 = vmatpush1.bf16.msra.mxu0 0
  %2728 = vmatprep.subr.bf16.mxu0 0
  %2729 = vmatpush1.bf16.msra.mxu0 0
  %2730 = vmatprep.subr.bf16.mxu0 0
  %2731 = vmatpush1.bf16.msra.mxu0 0
  %2732 = vmatprep.subr.bf16.mxu0 0
  %2733 = vmatpush1.bf16.msra.mxu0 0
  %2734 = vmatprep.subr.bf16.mxu0 0
  %2735 = vmatpush1.bf16.msra.mxu0 0
  %2736 = vmatprep.subr.bf16.mxu0 0
  %2737 = vmatpush1.bf16.msra.mxu0 %v2717
  %2738 = vmatprep.subr.bf16.mxu0 0
  %2739 = vmatpush2.bf16.msra.mxu0 0
  %2740 = vmatprep.subr.bf16.mxu0 0
  %2741 = vmatpush2.bf16.msra.mxu0 0
  %2742 = vmatprep.subr.bf16.mxu0 0
  %2743 = vmatpush2.bf16.msra.mxu0 0
  %2744 = vmatprep.subr.bf16.mxu0 0
  %2745 = vmatpush2.bf16.msra.mxu0 0
  %2746 = vmatprep.subr.bf16.mxu0 0
  %2747 = vmatpush2.bf16.msra.mxu0 0
  %2748 = vmatprep.subr.bf16.mxu0 0
  %2749 = vmatpush2.bf16.msra.mxu0 0
  %2750 = vmatprep.subr.bf16.mxu0 0
  %2751 = vmatpush2.bf16.msra.mxu0 0
  %2752 = vmatprep.subr.bf16.mxu0 0
  %2753 = vmatpush2.bf16.msra.mxu0 0
  %2754 = vmatprep.mubr.bf16.mxu0 0
  %2755 = vmatmul.mubr.bf16.gmra.mxu0 %v2720
  %v2756 = vpop.f32.mrf.mxu0
  %v2757 = vadd.f32 0.0, %v2756
  %v2758 = vpop.f32.mrf.mxu0
  %v2759 = vpop.f32.mrf.mxu0
  %v2760 = vadd.f32 0.0, %v2759
  %v2761 = vpop.f32.mrf.mxu0
  %2762 = vdwg.mxu0
  %v2767 = vunpack.c.l.b16 %v2705
  %v2768 = vunpack.c.l.b16 %v2706
  %v2769 = vunpack.c.l.b16 %v2707
  %v2770 = vunpack.c.l.b16 %v2708
  %v2771 = vpack.c.b16 %v2768, %v2767
  %v2772 = vpack.c.b16 %v2770, %v2769
  %v2776 = vsel %vm162, %v2703, 0
  %2778 = vmatprep.subr.bf16.mxu0 0
  %2779 = vmatpush1.bf16.msra.mxu0 0
  %2780 = vmatprep.subr.bf16.mxu0 0
  %2781 = vmatpush1.bf16.msra.mxu0 0
  %2782 = vmatprep.subr.bf16.mxu0 0
  %2783 = vmatpush1.bf16.msra.mxu0 0
  %2784 = vmatprep.subr.bf16.mxu0 0
  %2785 = vmatpush1.bf16.msra.mxu0 0
  %2786 = vmatprep.subr.bf16.mxu0 0
  %2787 = vmatpush1.bf16.msra.mxu0 0
  %2788 = vmatprep.subr.bf16.mxu0 0
  %2789 = vmatpush1.bf16.msra.mxu0 0
  %2790 = vmatprep.subr.bf16.mxu0 0
  %2791 = vmatpush1.bf16.msra.mxu0 %v2772
  %2792 = vmatprep.subr.bf16.mxu0 0
  %2793 = vmatpush1.bf16.msra.mxu0 %v2771
  %2794 = vmatprep.subr.bf16.mxu0 0
  %2795 = vmatpush2.bf16.msra.mxu0 0
  %2796 = vmatprep.subr.bf16.mxu0 0
  %2797 = vmatpush2.bf16.msra.mxu0 0
  %2798 = vmatprep.subr.bf16.mxu0 0
  %2799 = vmatpush2.bf16.msra.mxu0 0
  %2800 = vmatprep.subr.bf16.mxu0 0
  %2801 = vmatpush2.bf16.msra.mxu0 0
  %2802 = vmatprep.subr.bf16.mxu0 0
  %2803 = vmatpush2.bf16.msra.mxu0 0
  %2804 = vmatprep.subr.bf16.mxu0 0
  %2805 = vmatpush2.bf16.msra.mxu0 0
  %2806 = vmatprep.subr.bf16.mxu0 0
  %2807 = vmatpush2.bf16.msra.mxu0 0
  %2808 = vmatprep.subr.bf16.mxu0 0
  %2809 = vmatpush2.bf16.msra.mxu0 0
  %2810 = vmatprep.mubr.bf16.mxu0 0
  %2811 = vmatmul.mubr.bf16.gmra.mxu0 %v2776
  %v2812 = vpop.f32.mrf.mxu0
  %v2813 = vadd.f32 %v2757, %v2812
  %v2814 = vpop.f32.mrf.mxu0
  %v2815 = vpop.f32.mrf.mxu0
  %v2816 = vadd.f32 %v2760, %v2815
  %v2817 = vpop.f32.mrf.mxu0
  %2818 = vdwg.mxu0
  %s2819 = scalar_lea.vmem %s35, 1
  %v2820 = vld [vmem:[%s2819] sm:$0x1]
  %v2822 = vlaneseq
  %v2823 = vshrl.u32 %v2822, 7
  %v2824 = vsub.s32 0, %v2823
  %v2825 = vrot.slane %v2820, %v2824
  %v2827 = vadd.f32 %v2813, %v2825
  %v2828 = vadd.f32 %v2816, %v2825
  %v2829 = vadd.f32 %v1623, %v2827
  %v2830 = vadd.f32 %v1624, %v2828
  %s2831 = scalar_lea.vmem %s37, 1
  %v2832 = vld [vmem:[%s2831] sm:$0x1]
  %s2833 = scalar_lea.vmem %s39, 1
  %v2834 = vld [vmem:[%s2833] sm:$0x1]
  %v2835 = vsel %vm162, %v2829, 0.0
  %2836 = vadd.xlane.f32.xlu0 %v2835
  %v2837 = vpop.xlane.xlu0 %2836
  %v2838 = vsel %vm162, %v2830, 0.0
  %2839 = vadd.xlane.f32.xlu0 %v2838
  %v2840 = vpop.xlane.xlu0 %2839
  %v2841 = vmul.f32 %v2837, %v169
  %v2842 = vmul.f32 %v2840, %v169
  %v2843 = vsub.f32 %v2829, %v2841
  %v2844 = vsub.f32 %v2830, %v2842
  %v2845 = vmul.f32 %v2843, %v2843
  %v2846 = vmul.f32 %v2844, %v2844
  %v2847 = vsel %vm162, %v2845, 0.0
  %2848 = vadd.xlane.f32.xlu0 %v2847
  %v2849 = vpop.xlane.xlu0 %2848
  %v2850 = vsel %vm162, %v2846, 0.0
  %2851 = vadd.xlane.f32.xlu0 %v2850
  %v2852 = vpop.xlane.xlu0 %2851
  %v2853 = vmul.f32 %v2849, %v169
  %v2854 = vmul.f32 %v2852, %v169
  %v2855 = vadd.f32 %v2853, 1e-05
  %v2856 = vadd.f32 %v2854, 1e-05
  %v2857 = vrsqrt.pop %v2855
  %v2858 = vrsqrt.pop %v2856
  %v2859 = vmul.f32 %v2843, %v2857
  %v2860 = vmul.f32 %v2844, %v2858
  %v2862 = vlaneseq
  %v2863 = vshrl.u32 %v2862, 7
  %v2864 = vsub.s32 0, %v2863
  %v2865 = vrot.slane %v2832, %v2864
  %v2867 = vmul.f32 %v2859, %v2865
  %v2868 = vmul.f32 %v2860, %v2865
  %v2870 = vlaneseq
  %v2871 = vshrl.u32 %v2870, 7
  %v2872 = vsub.s32 0, %v2871
  %v2873 = vrot.slane %v2834, %v2872
  %v2875 = vadd.f32 %v2867, %v2873
  %v2876 = vadd.f32 %v2868, %v2873
  %v2877 = vpack.c.bf16 %v2876, %v2875
  %s2878 = scalar_lea.vmem %s41, 16
  %v2879 = vld [vmem:[%s2878] sm:$0xf]
  %v2880 = vld [vmem:[%s2878 + $0x4] sm:$0xf]
  %v2881 = vld [vmem:[%s2878 + $0x8] sm:$0xf]
  %v2882 = vld [vmem:[%s2878 + $0xc] sm:$0xf]
  %s2883 = scalar_lea.vmem %s43, 1
  %v2884 = vld [vmem:[%s2883] sm:$0x1]
  %v2886 = vlaneseq
  %v2887 = vshrl.u32 %v2886, 7
  %v2888 = vsub.s32 0, %v2887
  %v2889 = vrot.slane %v2884, %v2888
  %v2895 = vunpack.c.l.b16 %v2879
  %v2896 = vunpack.c.l.b16 %v2880
  %v2897 = vunpack.c.l.b16 %v2881
  %v2898 = vunpack.c.l.b16 %v2882
  %v2899 = vpack.c.b16 %v2896, %v2895
  %v2900 = vpack.c.b16 %v2898, %v2897
  %v2904 = vsel %vm162, %v2877, 0
  %2906 = vmatprep.subr.bf16.mxu0 0
  %2907 = vmatpush1.bf16.msra.mxu0 0
  %2908 = vmatprep.subr.bf16.mxu0 0
  %2909 = vmatpush1.bf16.msra.mxu0 0
  %2910 = vmatprep.subr.bf16.mxu0 0
  %2911 = vmatpush1.bf16.msra.mxu0 0
  %2912 = vmatprep.subr.bf16.mxu0 0
  %2913 = vmatpush1.bf16.msra.mxu0 0
  %2914 = vmatprep.subr.bf16.mxu0 0
  %2915 = vmatpush1.bf16.msra.mxu0 0
  %2916 = vmatprep.subr.bf16.mxu0 0
  %2917 = vmatpush1.bf16.msra.mxu0 0
  %2918 = vmatprep.subr.bf16.mxu0 0
  %2919 = vmatpush1.bf16.msra.mxu0 %v2900
  %2920 = vmatprep.subr.bf16.mxu0 0
  %2921 = vmatpush1.bf16.msra.mxu0 %v2899
  %2922 = vmatprep.subr.bf16.mxu0 0
  %2923 = vmatpush2.bf16.msra.mxu0 0
  %2924 = vmatprep.subr.bf16.mxu0 0
  %2925 = vmatpush2.bf16.msra.mxu0 0
  %2926 = vmatprep.subr.bf16.mxu0 0
  %2927 = vmatpush2.bf16.msra.mxu0 0
  %2928 = vmatprep.subr.bf16.mxu0 0
  %2929 = vmatpush2.bf16.msra.mxu0 0
  %2930 = vmatprep.subr.bf16.mxu0 0
  %2931 = vmatpush2.bf16.msra.mxu0 0
  %2932 = vmatprep.subr.bf16.mxu0 0
  %2933 = vmatpush2.bf16.msra.mxu0 0
  %2934 = vmatprep.subr.bf16.mxu0 0
  %2935 = vmatpush2.bf16.msra.mxu0 0
  %2936 = vmatprep.subr.bf16.mxu0 0
  %2937 = vmatpush2.bf16.msra.mxu0 0
  %2938 = vmatprep.mubr.bf16.mxu0 0
  %2939 = vmatmul.mubr.bf16.gmra.mxu0 %v2904
  %v2940 = vpop.f32.mrf.mxu0
  %v2941 = vadd.f32 %v2889, %v2940
  %v2942 = vpop.f32.mrf.mxu0
  %v2943 = vpop.f32.mrf.mxu0
  %v2944 = vadd.f32 %v2889, %v2943
  %v2945 = vpop.f32.mrf.mxu0
  %2946 = vdwg.mxu0
  %v2947 = vmul.f32 %v2941, 0.5
  %v2948 = vmul.f32 %v2944, 0.5
  %v2949 = vmul.f32 %v2941, 0.044715
  %v2950 = vmul.f32 %v2944, 0.044715
  %v2951 = vmul.f32 %v2949, %v2941
  %v2952 = vmul.f32 %v2950, %v2944
  %v2953 = vmul.f32 %v2951, %v2941
  %v2954 = vmul.f32 %v2952, %v2944
  %v2955 = vadd.f32 %v2941, %v2953
  %v2956 = vadd.f32 %v2944, %v2954
  %v2957 = vmul.f32 %v2955, 0.7978846
  %v2958 = vmul.f32 %v2956, 0.7978846
  %v2959 = vtanh.pop %v2957
  %v2960 = vtanh.pop %v2958
  %v2961 = vadd.f32 %v2959, 1.0
  %v2962 = vadd.f32 %v2960, 1.0
  %v2963 = vmul.f32 %v2947, %v2961
  %v2964 = vmul.f32 %v2948, %v2962
  %v2965 = vpack.c.bf16 %v2964, %v2963
  %s2966 = scalar_lea.vmem %s45, 64
  %v2967 = vld [vmem:[%s2966] sm:$0xf]
  %v2968 = vld [vmem:[%s2966 + $0x4] sm:$0xf]
  %v2969 = vld [vmem:[%s2966 + $0x8] sm:$0xf]
  %v2970 = vld [vmem:[%s2966 + $0xc] sm:$0xf]
  %v2971 = vld [vmem:[%s2966 + $0x10] sm:$0xf]
  %v2972 = vld [vmem:[%s2966 + $0x14] sm:$0xf]
  %v2973 = vld [vmem:[%s2966 + $0x18] sm:$0xf]
  %v2974 = vld [vmem:[%s2966 + $0x1c] sm:$0xf]
  %v2975 = vld [vmem:[%s2966 + $0x20] sm:$0xf]
  %v2976 = vld [vmem:[%s2966 + $0x24] sm:$0xf]
  %v2977 = vld [vmem:[%s2966 + $0x28] sm:$0xf]
  %v2978 = vld [vmem:[%s2966 + $0x2c] sm:$0xf]
  %v2979 = vld [vmem:[%s2966 + $0x30] sm:$0xf]
  %v2980 = vld [vmem:[%s2966 + $0x34] sm:$0xf]
  %v2981 = vld [vmem:[%s2966 + $0x38] sm:$0xf]
  %v2982 = vld [vmem:[%s2966 + $0x3c] sm:$0xf]
  %s2983 = scalar_lea.vmem %s47, 1
  %v2984 = vld [vmem:[%s2983] sm:$0x1]
  %v2986 = vlaneseq
  %v2987 = vshrl.u32 %v2986, 7
  %v2988 = vsub.s32 0, %v2987
  %v2989 = vrot.slane %v2984, %v2988
  %v3007 = vunpack.c.l.b16 %v2967
  %v3008 = vunpack.c.l.b16 %v2968
  %v3009 = vunpack.c.l.b16 %v2969
  %v3010 = vunpack.c.l.b16 %v2970
  %v3011 = vunpack.c.l.b16 %v2971
  %v3012 = vunpack.c.l.b16 %v2972
  %v3013 = vunpack.c.l.b16 %v2973
  %v3014 = vunpack.c.l.b16 %v2974
  %v3015 = vunpack.c.l.b16 %v2975
  %v3016 = vunpack.c.l.b16 %v2976
  %v3017 = vunpack.c.l.b16 %v2977
  %v3018 = vunpack.c.l.b16 %v2978
  %v3019 = vunpack.c.l.b16 %v2979
  %v3020 = vunpack.c.l.b16 %v2980
  %v3021 = vunpack.c.l.b16 %v2981
  %v3022 = vunpack.c.l.b16 %v2982
  %v3023 = vpack.c.b16 %v3008, %v3007
  %v3024 = vpack.c.b16 %v3010, %v3009
  %v3025 = vpack.c.b16 %v3012, %v3011
  %v3026 = vpack.c.b16 %v3014, %v3013
  %v3027 = vpack.c.b16 %v3016, %v3015
  %v3028 = vpack.c.b16 %v3018, %v3017
  %v3029 = vpack.c.b16 %v3020, %v3019
  %v3030 = vpack.c.b16 %v3022, %v3021
  %3039 = vmatprep.subr.bf16.mxu0 0
  %3040 = vmatpush1.bf16.msra.mxu0 %v3030
  %3041 = vmatprep.subr.bf16.mxu0 0
  %3042 = vmatpush1.bf16.msra.mxu0 %v3029
  %3043 = vmatprep.subr.bf16.mxu0 0
  %3044 = vmatpush1.bf16.msra.mxu0 %v3028
  %3045 = vmatprep.subr.bf16.mxu0 0
  %3046 = vmatpush1.bf16.msra.mxu0 %v3027
  %3047 = vmatprep.subr.bf16.mxu0 0
  %3048 = vmatpush1.bf16.msra.mxu0 %v3026
  %3049 = vmatprep.subr.bf16.mxu0 0
  %3050 = vmatpush1.bf16.msra.mxu0 %v3025
  %3051 = vmatprep.subr.bf16.mxu0 0
  %3052 = vmatpush1.bf16.msra.mxu0 %v3024
  %3053 = vmatprep.subr.bf16.mxu0 0
  %3054 = vmatpush1.bf16.msra.mxu0 %v3023
  %3055 = vmatprep.subr.bf16.mxu0 0
  %3056 = vmatpush2.bf16.msra.mxu0 0
  %3057 = vmatprep.subr.bf16.mxu0 0
  %3058 = vmatpush2.bf16.msra.mxu0 0
  %3059 = vmatprep.subr.bf16.mxu0 0
  %3060 = vmatpush2.bf16.msra.mxu0 0
  %3061 = vmatprep.subr.bf16.mxu0 0
  %3062 = vmatpush2.bf16.msra.mxu0 0
  %3063 = vmatprep.subr.bf16.mxu0 0
  %3064 = vmatpush2.bf16.msra.mxu0 0
  %3065 = vmatprep.subr.bf16.mxu0 0
  %3066 = vmatpush2.bf16.msra.mxu0 0
  %3067 = vmatprep.subr.bf16.mxu0 0
  %3068 = vmatpush2.bf16.msra.mxu0 0
  %3069 = vmatprep.subr.bf16.mxu0 0
  %3070 = vmatpush2.bf16.msra.mxu0 0
  %3071 = vmatprep.mubr.bf16.mxu0 0
  %3072 = vmatmul.mubr.bf16.gmra.mxu0 %v2965
  %v3073 = vpop.f32.mrf.mxu0
  %v3074 = vadd.f32 %v2989, %v3073
  %v3075 = vpop.f32.mrf.mxu0
  %v3076 = vpop.f32.mrf.mxu0
  %v3077 = vadd.f32 %v2989, %v3076
  %v3078 = vpop.f32.mrf.mxu0
  %3079 = vdwg.mxu0
  %v3080 = vadd.f32 %v2829, %v3074
  %v3081 = vadd.f32 %v2830, %v3077
  %v3082 = vpack.c.bf16 %v3081, %v3080
  %v3083 = vld [vmem:[%s49] sm:$0xf]
  %v3084 = vld [vmem:[%s49 + $0x4] sm:$0xf]
  %v3085 = vld [vmem:[%s49 + $0x8] sm:$0xf]
  %v3086 = vld [vmem:[%s49 + $0xc] sm:$0xf]
  %v3087 = vld [vmem:[%s51] sm:$0x1]
  %v3089 = vlaneseq
  %v3090 = vshrl.u32 %v3089, 7
  %v3091 = vsub.s32 0, %v3090
  %v3092 = vrot.slane %v3087, %v3091
  %v3098 = vunpack.c.l.b16 %v3083
  %v3099 = vunpack.c.l.b16 %v3084
  %v3100 = vunpack.c.l.b16 %v3085
  %v3101 = vunpack.c.l.b16 %v3086
  %v3102 = vpack.c.b16 %v3099, %v3098
  %v3103 = vpack.c.b16 %v3101, %v3100
  %v3107 = vsel %vm162, %v3082, 0
  %3109 = vmatprep.subr.bf16.mxu0 0
  %3110 = vmatpush1.bf16.msra.mxu0 0
  %3111 = vmatprep.subr.bf16.mxu0 0
  %3112 = vmatpush1.bf16.msra.mxu0 0
  %3113 = vmatprep.subr.bf16.mxu0 0
  %3114 = vmatpush1.bf16.msra.mxu0 0
  %3115 = vmatprep.subr.bf16.mxu0 0
  %3116 = vmatpush1.bf16.msra.mxu0 0
  %3117 = vmatprep.subr.bf16.mxu0 0
  %3118 = vmatpush1.bf16.msra.mxu0 0
  %3119 = vmatprep.subr.bf16.mxu0 0
  %3120 = vmatpush1.bf16.msra.mxu0 0
  %3121 = vmatprep.subr.bf16.mxu0 0
  %3122 = vmatpush1.bf16.msra.mxu0 %v3103
  %3123 = vmatprep.subr.bf16.mxu0 0
  %3124 = vmatpush1.bf16.msra.mxu0 %v3102
  %3125 = vmatprep.subr.bf16.mxu0 0
  %3126 = vmatpush2.bf16.msra.mxu0 0
  %3127 = vmatprep.subr.bf16.mxu0 0
  %3128 = vmatpush2.bf16.msra.mxu0 0
  %3129 = vmatprep.subr.bf16.mxu0 0
  %3130 = vmatpush2.bf16.msra.mxu0 0
  %3131 = vmatprep.subr.bf16.mxu0 0
  %3132 = vmatpush2.bf16.msra.mxu0 0
  %3133 = vmatprep.subr.bf16.mxu0 0
  %3134 = vmatpush2.bf16.msra.mxu0 0
  %3135 = vmatprep.subr.bf16.mxu0 0
  %3136 = vmatpush2.bf16.msra.mxu0 0
  %3137 = vmatprep.subr.bf16.mxu0 0
  %3138 = vmatpush2.bf16.msra.mxu0 0
  %3139 = vmatprep.subr.bf16.mxu0 0
  %3140 = vmatpush2.bf16.msra.mxu0 0
  %3141 = vmatprep.mubr.bf16.mxu0 0
  %3142 = vmatmul.mubr.bf16.gmra.mxu0 %v3107
  %v3143 = vpop.f32.mrf.mxu0
  %v3144 = vadd.f32 %v3092, %v3143
  %v3145 = vpop.f32.mrf.mxu0
  %v3146 = vpop.f32.mrf.mxu0
  %v3147 = vadd.f32 %v3092, %v3146
  %v3148 = vpop.f32.mrf.mxu0
  %3149 = vdwg.mxu0
  %v3150 = vmul.f32 %v3144, 0.5
  %v3151 = vmul.f32 %v3147, 0.5
  %v3152 = vmul.f32 %v3144, 0.044715
  %v3153 = vmul.f32 %v3147, 0.044715
  %v3154 = vmul.f32 %v3152, %v3144
  %v3155 = vmul.f32 %v3153, %v3147
  %v3156 = vmul.f32 %v3154, %v3144
  %v3157 = vmul.f32 %v3155, %v3147
  %v3158 = vadd.f32 %v3144, %v3156
  %v3159 = vadd.f32 %v3147, %v3157
  %v3160 = vmul.f32 %v3158, 0.7978846
  %v3161 = vmul.f32 %v3159, 0.7978846
  %v3162 = vtanh.pop %v3160
  %v3163 = vtanh.pop %v3161
  %v3164 = vadd.f32 %v3162, 1.0
  %v3165 = vadd.f32 %v3163, 1.0
  %v3166 = vmul.f32 %v3150, %v3164
  %v3167 = vmul.f32 %v3151, %v3165
  %v3168 = vpack.c.bf16 %v3167, %v3166
  %v3169 = vld [vmem:[%s53] sm:$0xf]
  %v3170 = vld [vmem:[%s53 + $0x4] sm:$0xf]
  %v3171 = vld [vmem:[%s55] sm:$0x1]
  %v3173 = vlaneseq
  %v3174 = vshrl.u32 %v3173, 7
  %v3175 = vsub.s32 0, %v3174
  %v3176 = vrot.slane %v3171, %v3175
  %v3180 = vunpack.c.l.b16 %v3169
  %v3181 = vunpack.c.l.b16 %v3170
  %v3182 = vpack.c.b16 %v3181, %v3180
  %v3185 = vsel %vm563, %v3168, 0
  %3187 = vmatprep.subr.bf16.mxu0 0
  %3188 = vmatpush1.bf16.msra.mxu0 0
  %3189 = vmatprep.subr.bf16.mxu0 0
  %3190 = vmatpush1.bf16.msra.mxu0 0
  %3191 = vmatprep.subr.bf16.mxu0 0
  %3192 = vmatpush1.bf16.msra.mxu0 0
  %3193 = vmatprep.subr.bf16.mxu0 0
  %3194 = vmatpush1.bf16.msra.mxu0 0
  %3195 = vmatprep.subr.bf16.mxu0 0
  %3196 = vmatpush1.bf16.msra.mxu0 0
  %3197 = vmatprep.subr.bf16.mxu0 0
  %3198 = vmatpush1.bf16.msra.mxu0 0
  %3199 = vmatprep.subr.bf16.mxu0 0
  %3200 = vmatpush1.bf16.msra.mxu0 0
  %3201 = vmatprep.subr.bf16.mxu0 0
  %3202 = vmatpush1.bf16.msra.mxu0 %v3182
  %3203 = vmatprep.subr.bf16.mxu0 0
  %3204 = vmatpush2.bf16.msra.mxu0 0
  %3205 = vmatprep.subr.bf16.mxu0 0
  %3206 = vmatpush2.bf16.msra.mxu0 0
  %3207 = vmatprep.subr.bf16.mxu0 0
  %3208 = vmatpush2.bf16.msra.mxu0 0
  %3209 = vmatprep.subr.bf16.mxu0 0
  %3210 = vmatpush2.bf16.msra.mxu0 0
  %3211 = vmatprep.subr.bf16.mxu0 0
  %3212 = vmatpush2.bf16.msra.mxu0 0
  %3213 = vmatprep.subr.bf16.mxu0 0
  %3214 = vmatpush2.bf16.msra.mxu0 0
  %3215 = vmatprep.subr.bf16.mxu0 0
  %3216 = vmatpush2.bf16.msra.mxu0 0
  %3217 = vmatprep.subr.bf16.mxu0 0
  %3218 = vmatpush2.bf16.msra.mxu0 0
  %3219 = vmatprep.mubr.bf16.mxu0 0
  %3220 = vmatmul.mubr.bf16.gmra.mxu0 %v3185
  %v3221 = vpop.f32.mrf.mxu0
  %v3222 = vadd.f32 %v3176, %v3221
  %v3223 = vpop.f32.mrf.mxu0
  %v3224 = vpop.f32.mrf.mxu0
  %v3225 = vadd.f32 %v3176, %v3224
  %v3226 = vpop.f32.mrf.mxu0
  %3227 = vdwg.mxu0
  %v3228 = vmul.f32 %v3222, 0.5
  %v3229 = vmul.f32 %v3225, 0.5
  %v3230 = vmul.f32 %v3222, 0.044715
  %v3231 = vmul.f32 %v3225, 0.044715
  %v3232 = vmul.f32 %v3230, %v3222
  %v3233 = vmul.f32 %v3231, %v3225
  %v3234 = vmul.f32 %v3232, %v3222
  %v3235 = vmul.f32 %v3233, %v3225
  %v3236 = vadd.f32 %v3222, %v3234
  %v3237 = vadd.f32 %v3225, %v3235
  %v3238 = vmul.f32 %v3236, 0.7978846
  %v3239 = vmul.f32 %v3237, 0.7978846
  %v3240 = vtanh.pop %v3238
  %v3241 = vtanh.pop %v3239
  %v3242 = vadd.f32 %v3240, 1.0
  %v3243 = vadd.f32 %v3241, 1.0
  %v3244 = vmul.f32 %v3228, %v3242
  %v3245 = vmul.f32 %v3229, %v3243
  %v3246 = vpack.c.bf16 %v3245, %v3244
  %v3247 = vld [vmem:[%s57] sm:$0xf]
  %v3248 = vld [vmem:[%s59] sm:$0x1]
  %v3250 = vlaneseq
  %v3251 = vshrl.u32 %v3250, 7
  %v3252 = vsub.s32 0, %v3251
  %v3253 = vrot.slane %v3248, %v3252
  %vm3255 = vcmask 64512
  %v3257 = vsel %vm3255, %v3246, 0
  %vm3259 = vcmask 1043456
  %v3261 = vsel %vm3259, %v3247, 0
  %3263 = vmatprep.subr.bf16.mxu0 0
  %3264 = vmatpush1.bf16.msra.mxu0 0
  %3265 = vmatprep.subr.bf16.mxu0 0
  %3266 = vmatpush1.bf16.msra.mxu0 0
  %3267 = vmatprep.subr.bf16.mxu0 0
  %3268 = vmatpush1.bf16.msra.mxu0 0
  %3269 = vmatprep.subr.bf16.mxu0 0
  %3270 = vmatpush1.bf16.msra.mxu0 0
  %3271 = vmatprep.subr.bf16.mxu0 0
  %3272 = vmatpush1.bf16.msra.mxu0 0
  %3273 = vmatprep.subr.bf16.mxu0 0
  %3274 = vmatpush1.bf16.msra.mxu0 0
  %3275 = vmatprep.subr.bf16.mxu0 0
  %3276 = vmatpush1.bf16.msra.mxu0 0
  %3277 = vmatprep.subr.bf16.mxu0 0
  %3278 = vmatpush1.bf16.msra.mxu0 %v3261
  %3279 = vmatprep.subr.bf16.mxu0 0
  %3280 = vmatpush2.bf16.msra.mxu0 0
  %3281 = vmatprep.subr.bf16.mxu0 0
  %3282 = vmatpush2.bf16.msra.mxu0 0
  %3283 = vmatprep.subr.bf16.mxu0 0
  %3284 = vmatpush2.bf16.msra.mxu0 0
  %3285 = vmatprep.subr.bf16.mxu0 0
  %3286 = vmatpush2.bf16.msra.mxu0 0
  %3287 = vmatprep.subr.bf16.mxu0 0
  %3288 = vmatpush2.bf16.msra.mxu0 0
  %3289 = vmatprep.subr.bf16.mxu0 0
  %3290 = vmatpush2.bf16.msra.mxu0 0
  %3291 = vmatprep.subr.bf16.mxu0 0
  %3292 = vmatpush2.bf16.msra.mxu0 0
  %3293 = vmatprep.subr.bf16.mxu0 0
  %3294 = vmatpush2.bf16.msra.mxu0 0
  %3295 = vmatprep.mubr.bf16.mxu0 0
  %3296 = vmatmul.mubr.bf16.gmra.mxu0 %v3257
  %v3297 = vpop.f32.mrf.mxu0
  %v3298 = vadd.f32 %v3253, %v3297
  %v3299 = vpop.f32.mrf.mxu0
  %v3300 = vpop.f32.mrf.mxu0
  %v3301 = vadd.f32 %v3253, %v3300
  %v3302 = vpop.f32.mrf.mxu0
  %3303 = vdwg.mxu0
  %v3304 = vld [vmem:[%s9] sm:$0x1]
  %3305 = vadd.xlane.f32.xlu0 %v3298
  %v3306 = vpop.xlane.xlu0 %3305
  %3307 = vadd.xlane.f32.xlu0 %v3301
  %v3308 = vpop.xlane.xlu0 %3307
  %v3309 = vmul.f32 %v3306, 0.03125
  %v3310 = vmul.f32 %v3308, 0.03125
  %v3311 = vsub.f32 %v3298, %v3309
  %v3312 = vsub.f32 %v3301, %v3310
  %v3314 = vlaneseq
  %v3315 = vshrl.u32 %v3314, 7
  %v3316 = vsub.s32 0, %v3315
  %v3317 = vrot.slane %v3304, %v3316
  %v3319 = vmul.f32 %v3311, %v3317
  %v3320 = vmul.f32 %v3312, %v3317
  %v3321 = vmul.f32 %v3319, %v3319
  %v3322 = vmul.f32 %v3320, %v3320
  %3323 = vadd.xlane.f32.xlu0 %v3321
  %v3324 = vpop.xlane.xlu0 %3323
  %3325 = vadd.xlane.f32.xlu0 %v3322
  %v3326 = vpop.xlane.xlu0 %3325
  %v3327 = vmul.f32 %v3324, 0.03125
  %v3328 = vmul.f32 %v3326, 0.03125
  %v3329 = vadd.f32 %v3327, 1e-05
  %v3330 = vadd.f32 %v3328, 1e-05
  %v3331 = vrsqrt.pop %v3329
  %v3332 = vrsqrt.pop %v3330
  %v3333 = vmul.f32 %v3319, %v3331
  %v3334 = vmul.f32 %v3320, %v3332
  %v3335 = vld [vmem:[%s61] sm:$0x1]
  %v3337 = vlaneseq
  %v3338 = vshrl.u32 %v3337, 7
  %v3339 = vsub.s32 0, %v3338
  %v3340 = vrot.slane %v3335, %v3339
  %v3342 = vmul.f32 %v3333, %v3340
  %v3343 = vmul.f32 %v3334, %v3340
  %v3344 = vld [vmem:[%s63] sm:$0x1]
  %v3346 = vlaneseq
  %v3347 = vshrl.u32 %v3346, 7
  %v3348 = vsub.s32 0, %v3347
  %v3349 = vrot.slane %v3344, %v3348
  %v3351 = vadd.f32 %v3342, %v3349
  %v3352 = vadd.f32 %v3343, %v3349
  %3353 = vst [vmem:[%s71] sm:$0xff] %v3351
  %3354 = vst [vmem:[%s71 + $0x8] sm:$0xff] %v3352
  %v3355 = vpack.c.bf16 %v3352, %v3351
  %v3356 = vld [vmem:[%s65] sm:$0xf]
  %v3357 = vld [vmem:[%s65 + $0x4] sm:$0xf]
  %v3358 = vld [vmem:[%s65 + $0x8] sm:$0xf]
  %v3359 = vld [vmem:[%s65 + $0xc] sm:$0xf]
  %v3360 = vld [vmem:[%s65 + $0x10] sm:$0xf]
  %v3361 = vld [vmem:[%s65 + $0x14] sm:$0xf]
  %v3362 = vld [vmem:[%s65 + $0x18] sm:$0xf]
  %v3363 = vld [vmem:[%s65 + $0x1c] sm:$0xf]
  %v3364 = vld [vmem:[%s65 + $0x20] sm:$0xf]
  %v3365 = vld [vmem:[%s65 + $0x24] sm:$0xf]
  %v3366 = vld [vmem:[%s65 + $0x28] sm:$0xf]
  %v3367 = vld [vmem:[%s65 + $0x2c] sm:$0xf]
  %v3368 = vld [vmem:[%s65 + $0x30] sm:$0xf]
  %v3369 = vld [vmem:[%s65 + $0x34] sm:$0xf]
  %v3370 = vld [vmem:[%s65 + $0x38] sm:$0xf]
  %v3371 = vld [vmem:[%s65 + $0x3c] sm:$0xf]
  %v3372 = vld [vmem:[%s67] sm:$0x1]
  %v3374 = vlaneseq
  %v3375 = vshrl.u32 %v3374, 7
  %v3376 = vsub.s32 0, %v3375
  %v3377 = vrot.slane %v3372, %v3376
  %v3395 = vunpack.c.l.b16 %v3356
  %v3396 = vunpack.c.l.b16 %v3357
  %v3397 = vunpack.c.l.b16 %v3358
  %v3398 = vunpack.c.l.b16 %v3359
  %v3399 = vunpack.c.l.b16 %v3360
  %v3400 = vunpack.c.l.b16 %v3361
  %v3401 = vunpack.c.l.b16 %v3362
  %v3402 = vunpack.c.l.b16 %v3363
  %v3403 = vunpack.c.l.b16 %v3364
  %v3404 = vunpack.c.l.b16 %v3365
  %v3405 = vunpack.c.l.b16 %v3366
  %v3406 = vunpack.c.l.b16 %v3367
  %v3407 = vunpack.c.l.b16 %v3368
  %v3408 = vunpack.c.l.b16 %v3369
  %v3409 = vunpack.c.l.b16 %v3370
  %v3410 = vunpack.c.l.b16 %v3371
  %v3411 = vpack.c.b16 %v3396, %v3395
  %v3412 = vpack.c.b16 %v3398, %v3397
  %v3413 = vpack.c.b16 %v3400, %v3399
  %v3414 = vpack.c.b16 %v3402, %v3401
  %v3415 = vpack.c.b16 %v3404, %v3403
  %v3416 = vpack.c.b16 %v3406, %v3405
  %v3417 = vpack.c.b16 %v3408, %v3407
  %v3418 = vpack.c.b16 %v3410, %v3409
  %3427 = vmatprep.subr.bf16.mxu0 0
  %3428 = vmatpush1.bf16.msra.mxu0 %v3418
  %3429 = vmatprep.subr.bf16.mxu0 0
  %3430 = vmatpush1.bf16.msra.mxu0 %v3417
  %3431 = vmatprep.subr.bf16.mxu0 0
  %3432 = vmatpush1.bf16.msra.mxu0 %v3416
  %3433 = vmatprep.subr.bf16.mxu0 0
  %3434 = vmatpush1.bf16.msra.mxu0 %v3415
  %3435 = vmatprep.subr.bf16.mxu0 0
  %3436 = vmatpush1.bf16.msra.mxu0 %v3414
  %3437 = vmatprep.subr.bf16.mxu0 0
  %3438 = vmatpush1.bf16.msra.mxu0 %v3413
  %3439 = vmatprep.subr.bf16.mxu0 0
  %3440 = vmatpush1.bf16.msra.mxu0 %v3412
  %3441 = vmatprep.subr.bf16.mxu0 0
  %3442 = vmatpush1.bf16.msra.mxu0 %v3411
  %3443 = vmatprep.subr.bf16.mxu0 0
  %3444 = vmatpush2.bf16.msra.mxu0 0
  %3445 = vmatprep.subr.bf16.mxu0 0
  %3446 = vmatpush2.bf16.msra.mxu0 0
  %3447 = vmatprep.subr.bf16.mxu0 0
  %3448 = vmatpush2.bf16.msra.mxu0 0
  %3449 = vmatprep.subr.bf16.mxu0 0
  %3450 = vmatpush2.bf16.msra.mxu0 0
  %3451 = vmatprep.subr.bf16.mxu0 0
  %3452 = vmatpush2.bf16.msra.mxu0 0
  %3453 = vmatprep.subr.bf16.mxu0 0
  %3454 = vmatpush2.bf16.msra.mxu0 0
  %3455 = vmatprep.subr.bf16.mxu0 0
  %3456 = vmatpush2.bf16.msra.mxu0 0
  %3457 = vmatprep.subr.bf16.mxu0 0
  %3458 = vmatpush2.bf16.msra.mxu0 0
  %3459 = vmatprep.mubr.bf16.mxu0 0
  %3460 = vmatmul.mubr.bf16.gmra.mxu0 %v3355
  %v3461 = vpop.f32.mrf.mxu0
  %v3462 = vadd.f32 %v3377, %v3461
  %v3463 = vpop.f32.mrf.mxu0
  %v3464 = vpop.f32.mrf.mxu0
  %v3465 = vadd.f32 %v3377, %v3464
  %v3466 = vpop.f32.mrf.mxu0
  %3467 = vdwg.mxu0
  %3468 = vst [vmem:[%s69] sm:$0xff] %v3462
  %3469 = vst [vmem:[%s69 + $0x8] sm:$0xff] %v3465
  // Predicated region
  $region138: #{forward.1} parent=0 // pred_check
    _
  $region139: #{forward.1} parent=0 // pred_check_branch
    %3471 = sbr.rel (0) target = $region141
  $region140: #{forward.1} parent=0 // pred_region
    _
  $region141: #{forward.1} parent=0 // pred_fallthru
    _
  // Predicated region
  $region142: #{forward.1} parent=0 // pred_check
    _
  $region143: #{forward.1} parent=0 // pred_check_branch
    %3473 = sbr.rel (0) target = $region145
  $region144: #{forward.1} parent=0 // pred_region
    _
  $region145: #{forward.1} parent=0 // pred_fallthru
    _
  // Predicated region
  $region146: #{forward.1} parent=0 // pred_check
    _
  $region147: #{forward.1} parent=0 // pred_check_branch
    %3475 = sbr.rel (0) target = $region149
  $region148: #{forward.1} parent=0 // pred_region
    _
  $region149: #{forward.1} parent=0 // pred_fallthru
    _
  // Predicated region
  $region150: #{forward.1} parent=0 // pred_check
    _
  $region151: #{forward.1} parent=0 // pred_check_branch
    %3477 = sbr.rel (0) target = $region153
  $region152: #{forward.1} parent=0 // pred_region
    _
  $region153: #{forward.1} parent=0 // pred_fallthru
    _

</llo_original>
